<compile_context>
chip_gen: v7x
topology: tpu7x:2x2x1
jax: 0.10.0
libtpu: 0.0.40
codegen_flags: <defaults>
</compile_context>

<pallas_src>
import functools
import math

import jax
import jax.numpy as jnp
from jax import lax
from jax.experimental import pallas as pl
from jax.experimental.pallas import tpu as pltpu

LN_EPS = 1e-5


def _layernorm(x, w, b):
    mean = jnp.mean(x, axis=-1, keepdims=True)
    var = jnp.mean((x - mean) ** 2, axis=-1, keepdims=True)
    return (x - mean) * lax.rsqrt(var + LN_EPS) * w + b


def fused_encoder_kernel(x_ref, wqkv_ref, wo_ref, w1_ref, w2_ref, pv_ref, b1_ref,
                         o_ref, x_sc, *, nhead):
    layer = pl.program_id(1)
    TB, S, D = x_ref.shape
    rows = TB * S
    hd = D // nhead

    # Load the embedding slab for this batch block once, at the first layer.
    @pl.when(layer == 0)
    def _():
        x_sc[...] = x_ref[...].reshape(rows, D).astype(jnp.float32)

    x = x_sc[...]                                   # (rows, D) f32, resident across layers
    x_bf = x.astype(jnp.bfloat16)

    # Packed per-layer vectors: [bq, bk, bv, bo, b2, ln1w, ln1b, ln2w, ln2b]
    pv = pv_ref[0]                                  # (9, D) f32
    bq, bk, bv = pv[0:1, :], pv[1:2, :], pv[2:3, :]
    bo, b2 = pv[3:4, :], pv[4:5, :]
    ln1w, ln1b = pv[5:6, :], pv[6:7, :]
    ln2w, ln2b = pv[7:8, :], pv[8:9, :]

    # --- fused QKV projection: one dense (rows, D) @ (D, 3D) MXU matmul ---
    qkv = jnp.dot(x_bf, wqkv_ref[0], preferred_element_type=jnp.float32)   # (rows, 3D)
    q = qkv[:, 0:D] + bq            # 1/sqrt(hd) scale already folded into Q weights/bias
    k = qkv[:, D:2 * D] + bk
    v = qkv[:, 2 * D:3 * D] + bv

    # --- per-head attention (contraction depth = hd is inherent to MHA) ---
    ctx_parts = []
    for h in range(nhead):
        sl = slice(h * hd, (h + 1) * hd)
        qh = q[:, sl].reshape(TB, S, hd).astype(jnp.bfloat16)
        kh = k[:, sl].reshape(TB, S, hd).astype(jnp.bfloat16)
        vh = v[:, sl].reshape(TB, S, hd).astype(jnp.bfloat16)
        sc = jnp.einsum('bqd,bkd->bqk', qh, kh,
                        preferred_element_type=jnp.float32)               # (TB, S, S) f32
        sc = sc - jnp.max(sc, axis=-1, keepdims=True)
        p = jnp.exp(sc)
        p = p * pl.reciprocal(jnp.sum(p, axis=-1, keepdims=True), approx=True)
        ctxh = jnp.einsum('bqk,bkd->bqd', p.astype(jnp.bfloat16), vh,
                          preferred_element_type=jnp.float32)             # (TB, S, hd)
        ctx_parts.append(ctxh.reshape(rows, hd))
    ctx = jnp.concatenate(ctx_parts, axis=-1)       # (rows, D): heads merged back into lanes

    # --- output projection: one dense (rows, D) @ (D, D) MXU matmul ---
    attn = jnp.dot(ctx.astype(jnp.bfloat16), wo_ref[0],
                   preferred_element_type=jnp.float32) + bo

    # --- add & norm 1 ---
    h1 = _layernorm(x + attn, ln1w, ln1b)

    # --- feed forward (bf16 MXU inputs, f32 accumulate) ---
    ff = jnp.dot(h1.astype(jnp.bfloat16), w1_ref[0],
                 preferred_element_type=jnp.float32) + b1_ref[0]
    ff = jnp.maximum(ff, 0.0)
    ff = jnp.dot(ff.astype(jnp.bfloat16), w2_ref[0],
                 preferred_element_type=jnp.float32) + b2

    # --- add & norm 2 ---
    out = _layernorm(h1 + ff, ln2w, ln2b)
    x_sc[...] = out                                 # carry to the next layer

    @pl.when(layer == pl.num_programs(1) - 1)
    def _():
        o_ref[...] = out.reshape(TB, S, D).astype(o_ref.dtype)


def _choose_tb(B, S):
    """Batch-block size: aim for TB*S >= 256 rows (fills the 256^2 MXU on v6e/v7x), TB | B."""
    target = max(1, (256 + S - 1) // S)
    tb = min(B, target)
    while B % tb != 0:
        tb -= 1
    return tb


def _vmem_limit_bytes(tb, S, D, F, nhead):
    rows = tb * S
    bf16, f32 = 2, 4
    dbuf = 2
    weights = dbuf * bf16 * (D * 3 * D + D * D + D * F + F * D)   # streamed bf16 weight tiles
    vecs = dbuf * f32 * (9 * D + F)                               # packed per-layer vectors
    io = dbuf * f32 * rows * D * 2                                # x block + out block
    resident = f32 * rows * D                                     # activation scratch
    transient = f32 * (rows * 3 * D + 2 * rows * F + tb * S * S + 3 * rows * D)
    est = weights + vecs + io + resident + 2 * transient
    return int(min(96 * 2 ** 20, max(16 * 2 ** 20, 2 * est)))


def atacformer_encoder(x, stacked, *, nhead):
    """x: (B, S, D) f32 embeddings; stacked: dict of weights stacked along a leading layer axis."""
    B, S, D = x.shape
    L = stacked["wqkv"].shape[0]
    F = stacked["w1"].shape[2]
    tb = _choose_tb(B, S)

    def wspec(arr):
        nd = arr.ndim
        return pl.BlockSpec((1,) + arr.shape[1:],
                            lambda b, l, _nd=nd: (l,) + (0,) * (_nd - 1))

    grid_spec = pltpu.PrefetchScalarGridSpec(
        num_scalar_prefetch=0,
        grid=(B // tb, L),
        in_specs=[
            pl.BlockSpec((tb, S, D), lambda b, l: (b, 0, 0)),    # x (read only at layer 0)
            wspec(stacked["wqkv"]),
            wspec(stacked["wo"]),
            wspec(stacked["w1"]),
            wspec(stacked["w2"]),
            wspec(stacked["pv"]),
            wspec(stacked["b1"]),
        ],
        out_specs=pl.BlockSpec((tb, S, D), lambda b, l: (b, 0, 0)),
        scratch_shapes=[pltpu.VMEM((tb * S, D), jnp.float32)],   # activations resident over layers
    )

    return pl.pallas_call(
        functools.partial(fused_encoder_kernel, nhead=nhead),
        out_shape=jax.ShapeDtypeStruct((B, S, D), jnp.float32),
        grid_spec=grid_spec,
        compiler_params=pltpu.CompilerParams(
            dimension_semantics=("parallel", "arbitrary"),
            vmem_limit_bytes=_vmem_limit_bytes(tb, S, D, F, nhead)),
    )(x, stacked["wqkv"], stacked["wo"], stacked["w1"], stacked["w2"],
      stacked["pv"], stacked["b1"])


def init_params(key, vocab_size, d_model, dim_feedforward, num_layers, nhead):
    """Random init in the kernel's layout: transposed weights, fused QKV, packed bias/LN slabs."""
    D, F = d_model, dim_feedforward
    hd = D // nhead
    scale = 1.0 / math.sqrt(hd)
    keys = jax.random.split(key, 1 + num_layers)
    emb = jax.random.normal(keys[0], (vocab_size, D), jnp.float32) * 0.02

    layers = []
    for li in range(num_layers):
        kq, kk, kv, ko, k1, k2 = jax.random.split(keys[1 + li], 6)
        s_d = 1.0 / math.sqrt(D)
        s_f = 1.0 / math.sqrt(F)
        # Stored pre-transposed: y = x @ W.  The 1/sqrt(hd) attention scale is folded into Q.
        wq = jax.random.normal(kq, (D, D), jnp.float32) * s_d * scale
        wk = jax.random.normal(kk, (D, D), jnp.float32) * s_d
        wv = jax.random.normal(kv, (D, D), jnp.float32) * s_d
        wqkv = jnp.concatenate([wq, wk, wv], axis=1)               # (D, 3D)
        wo = jax.random.normal(ko, (D, D), jnp.float32) * s_d
        w1 = jax.random.normal(k1, (D, F), jnp.float32) * s_d
        w2 = jax.random.normal(k2, (F, D), jnp.float32) * s_f
        bq = jnp.zeros((D,), jnp.float32) * scale                  # scale folded (zero anyway)
        bk = jnp.zeros((D,), jnp.float32)
        bv = jnp.zeros((D,), jnp.float32)
        bo = jnp.zeros((D,), jnp.float32)
        b2 = jnp.zeros((D,), jnp.float32)
        ln1w = jnp.ones((D,), jnp.float32)
        ln1b = jnp.zeros((D,), jnp.float32)
        ln2w = jnp.ones((D,), jnp.float32)
        ln2b = jnp.zeros((D,), jnp.float32)
        pv = jnp.stack([bq, bk, bv, bo, b2, ln1w, ln1b, ln2w, ln2b], axis=0)   # (9, D)
        b1 = jnp.zeros((1, F), jnp.float32)
        layers.append(dict(
            wqkv=wqkv.astype(jnp.bfloat16),
            wo=wo.astype(jnp.bfloat16),
            w1=w1.astype(jnp.bfloat16),
            w2=w2.astype(jnp.bfloat16),
            pv=pv,
            b1=b1,
        ))
    stacked = {k: jnp.stack([lyr[k] for lyr in layers]) for k in layers[0]}
    return emb, stacked


def atacformer_forward(tokens, emb, stacked, *, nhead):
    # glue: embedding gather in plain JAX; `x + zeros_like(x)` (positional emb = 0) is a no-op
    x = jnp.take(emb, tokens, axis=0)                    # (B, S, D)
    return atacformer_encoder(x, stacked, nhead=nhead)   # all layers fused in one Pallas kernel


if __name__ == "__main__":
    # small shapes consistent with the module
    vocab_size = 64
    d_model = 32
    nhead = 8
    num_layers = 2
    dim_feedforward = 128
    B, S = 2, 8

    key = jax.random.PRNGKey(0)
    k_tok, k_par = jax.random.split(key)
    tokens = jax.random.randint(k_tok, (B, S), 0, vocab_size, dtype=jnp.int32)

    emb, stacked = init_params(k_par, vocab_size, d_model, dim_feedforward, num_layers, nhead)

    out = atacformer_forward(tokens, emb, stacked, nhead=nhead)
    out = jax.block_until_ready(out)
    assert out.shape == (B, S, d_model)
    assert bool(jnp.all(jnp.isfinite(out)))
    print("KERNEL_OK")
</pallas_src>

<mosaic_0001>
module attributes {stable_mosaic.version = 11 : i64} {
  func.func @fused_encoder_kernel(%arg0: i32, %arg1: i32, %arg2: memref<2x8x32xf32, #tpu.memory_space<vmem>>, %arg3: memref<1x32x96xbf16, #tpu.memory_space<vmem>>, %arg4: memref<1x32x32xbf16, #tpu.memory_space<vmem>>, %arg5: memref<1x32x128xbf16, #tpu.memory_space<vmem>>, %arg6: memref<1x128x32xbf16, #tpu.memory_space<vmem>>, %arg7: memref<1x9x32xf32, #tpu.memory_space<vmem>>, %arg8: memref<1x1x128xf32, #tpu.memory_space<vmem>>, %arg9: memref<2x8x32xf32, #tpu.memory_space<vmem>>, %arg10: memref<16x32xf32, #tpu.memory_space<vmem>>) attributes {dimension_semantics = [#tpu.dimension_semantics<parallel>, #tpu.dimension_semantics<arbitrary>], iteration_bounds = array<i64: 1, 2>, scalar_prefetch = 0 : i64, scratch_operands = 1 : i64, tpu.core_type = #tpu.core_type<tc>, window_params = [{transform_indices = @transform_0, window_bounds = array<i64: 2, 8, 32>}, {transform_indices = @transform_1, window_bounds = array<i64: 1, 32, 96>}, {transform_indices = @transform_2, window_bounds = array<i64: 1, 32, 32>}, {transform_indices = @transform_3, window_bounds = array<i64: 1, 32, 128>}, {transform_indices = @transform_4, window_bounds = array<i64: 1, 128, 32>}, {transform_indices = @transform_5, window_bounds = array<i64: 1, 9, 32>}, {transform_indices = @transform_6, window_bounds = array<i64: 1, 1, 128>}, {transform_indices = @transform_7, window_bounds = array<i64: 2, 8, 32>}]} {
    %c0_i32 = arith.constant 0 : i32
    %0 = arith.cmpi eq, %arg1, %c0_i32 : i32
    %1 = arith.extui %0 : i1 to i32
    %c0_i32_0 = arith.constant 0 : i32
    %2 = arith.cmpi ne, %1, %c0_i32_0 : i32
    scf.if %2 {
      %c0_69 = arith.constant 0 : index
      %c0_70 = arith.constant 0 : index
      %c0_71 = arith.constant 0 : index
      %285 = vector.load %arg2[%c0_69, %c0_70, %c0_71] : memref<2x8x32xf32, #tpu.memory_space<vmem>>, vector<2x8x32xf32>
      %286 = vector.shape_cast %285 : vector<2x8x32xf32> to vector<16x32xf32>
      %c0_72 = arith.constant 0 : index
      %c0_73 = arith.constant 0 : index
      %287 = vector.load %arg10[%c0_72, %c0_73] : memref<16x32xf32, #tpu.memory_space<vmem>>, vector<16x32xf32>
      tpu.vector_store %arg10[%c0_72, %c0_73], %286 {strides = array<i32>} : memref<16x32xf32, #tpu.memory_space<vmem>>, vector<16x32xf32>,
    } else {
    }
    %c0 = arith.constant 0 : index
    %c0_1 = arith.constant 0 : index
    %3 = vector.load %arg10[%c0, %c0_1] : memref<16x32xf32, #tpu.memory_space<vmem>>, vector<16x32xf32>
    %4 = arith.truncf %3 : vector<16x32xf32> to vector<16x32xbf16>
    %c0_2 = arith.constant 0 : index
    %c0_3 = arith.constant 0 : index
    %c0_4 = arith.constant 0 : index
    %5 = vector.load %arg7[%c0_2, %c0_3, %c0_4] : memref<1x9x32xf32, #tpu.memory_space<vmem>>, vector<1x9x32xf32>
    %6 = vector.shape_cast %5 : vector<1x9x32xf32> to vector<9x32xf32>
    %7 = vector.extract_strided_slice %6 {offsets = [0, 0], sizes = [1, 32], strides = [1, 1]} : vector<9x32xf32> to vector<1x32xf32>
    %8 = vector.extract_strided_slice %6 {offsets = [1, 0], sizes = [1, 32], strides = [1, 1]} : vector<9x32xf32> to vector<1x32xf32>
    %9 = vector.extract_strided_slice %6 {offsets = [2, 0], sizes = [1, 32], strides = [1, 1]} : vector<9x32xf32> to vector<1x32xf32>
    %10 = vector.extract_strided_slice %6 {offsets = [3, 0], sizes = [1, 32], strides = [1, 1]} : vector<9x32xf32> to vector<1x32xf32>
    %11 = vector.extract_strided_slice %6 {offsets = [4, 0], sizes = [1, 32], strides = [1, 1]} : vector<9x32xf32> to vector<1x32xf32>
    %12 = vector.extract_strided_slice %6 {offsets = [5, 0], sizes = [1, 32], strides = [1, 1]} : vector<9x32xf32> to vector<1x32xf32>
    %13 = vector.extract_strided_slice %6 {offsets = [6, 0], sizes = [1, 32], strides = [1, 1]} : vector<9x32xf32> to vector<1x32xf32>
    %14 = vector.extract_strided_slice %6 {offsets = [7, 0], sizes = [1, 32], strides = [1, 1]} : vector<9x32xf32> to vector<1x32xf32>
    %15 = vector.extract_strided_slice %6 {offsets = [8, 0], sizes = [1, 32], strides = [1, 1]} : vector<9x32xf32> to vector<1x32xf32>
    %c0_5 = arith.constant 0 : index
    %c0_6 = arith.constant 0 : index
    %c0_7 = arith.constant 0 : index
    %16 = vector.load %arg3[%c0_5, %c0_6, %c0_7] : memref<1x32x96xbf16, #tpu.memory_space<vmem>>, vector<1x32x96xbf16>
    %17 = vector.shape_cast %16 : vector<1x32x96xbf16> to vector<32x96xbf16>
    %cst = arith.constant dense<0.000000e+00> : vector<16x96xf32>
    %18 = tpu.matmul %4, %17, %cst {dimension_numbers = #tpu.dot_dimension_numbers<[1], [0], [0], [1], [0, 0, 1, 1], [], []>} : vector<16x32xbf16>, vector<32x96xbf16>, vector<16x96xf32> -> vector<16x96xf32>
    %19 = vector.extract_strided_slice %18 {offsets = [0, 0], sizes = [16, 32], strides = [1, 1]} : vector<16x96xf32> to vector<16x32xf32>
    %20 = vector.broadcast %7 : vector<1x32xf32> to vector<16x32xf32>
    %21 = arith.addf %19, %20 : vector<16x32xf32>
    %22 = vector.extract_strided_slice %18 {offsets = [0, 32], sizes = [16, 32], strides = [1, 1]} : vector<16x96xf32> to vector<16x32xf32>
    %23 = vector.broadcast %8 : vector<1x32xf32> to vector<16x32xf32>
    %24 = arith.addf %22, %23 : vector<16x32xf32>
    %25 = vector.extract_strided_slice %18 {offsets = [0, 64], sizes = [16, 32], strides = [1, 1]} : vector<16x96xf32> to vector<16x32xf32>
    %26 = vector.broadcast %9 : vector<1x32xf32> to vector<16x32xf32>
    %27 = arith.addf %25, %26 : vector<16x32xf32>
    %28 = vector.extract_strided_slice %21 {offsets = [0, 0], sizes = [16, 4], strides = [1, 1]} : vector<16x32xf32> to vector<16x4xf32>
    %29 = vector.shape_cast %28 : vector<16x4xf32> to vector<2x8x4xf32>
    %30 = arith.truncf %29 : vector<2x8x4xf32> to vector<2x8x4xbf16>
    %31 = vector.extract_strided_slice %24 {offsets = [0, 0], sizes = [16, 4], strides = [1, 1]} : vector<16x32xf32> to vector<16x4xf32>
    %32 = vector.shape_cast %31 : vector<16x4xf32> to vector<2x8x4xf32>
    %33 = arith.truncf %32 : vector<2x8x4xf32> to vector<2x8x4xbf16>
    %34 = vector.extract_strided_slice %27 {offsets = [0, 0], sizes = [16, 4], strides = [1, 1]} : vector<16x32xf32> to vector<16x4xf32>
    %35 = vector.shape_cast %34 : vector<16x4xf32> to vector<2x8x4xf32>
    %36 = arith.truncf %35 : vector<2x8x4xf32> to vector<2x8x4xbf16>
    "tpu.trace_start"() <{level = 10 : i32, message = "bqd,bkd->bqk"}> : () -> ()
    %cst_8 = arith.constant dense<0.000000e+00> : vector<2x8x8xf32>
    %37 = tpu.matmul %30, %33, %cst_8 {dimension_numbers = #tpu.dot_dimension_numbers<[2], [2], [1], [1], [0, 0, 0, 1, 1, 1], [0], [0]>} : vector<2x8x4xbf16>, vector<2x8x4xbf16>, vector<2x8x8xf32> -> vector<2x8x8xf32>
    "tpu.trace_stop"() : () -> ()
    %cst_9 = arith.constant dense<0xFF800000> : vector<2x8xf32>
    %38 = vector.multi_reduction <maximumf>, %37, %cst_9 [2] : vector<2x8x8xf32> to vector<2x8xf32>
    %39 = vector.shape_cast %38 : vector<2x8xf32> to vector<2x8x1xf32>
    %40 = vector.broadcast %39 : vector<2x8x1xf32> to vector<2x8x8xf32>
    %41 = arith.subf %37, %40 : vector<2x8x8xf32>
    %42 = math.exp %41 : vector<2x8x8xf32>
    %cst_10 = arith.constant dense<0.000000e+00> : vector<2x8xf32>
    %43 = vector.multi_reduction <add>, %42, %cst_10 [2] : vector<2x8x8xf32> to vector<2x8xf32>
    %44 = vector.shape_cast %43 : vector<2x8xf32> to vector<2x8x1xf32>
    %45 = tpu.reciprocal %44 {approx = true} : vector<2x8x1xf32> -> vector<2x8x1xf32>
    %46 = vector.broadcast %45 : vector<2x8x1xf32> to vector<2x8x8xf32>
    %47 = arith.mulf %42, %46 : vector<2x8x8xf32>
    %48 = arith.truncf %47 : vector<2x8x8xf32> to vector<2x8x8xbf16>
    "tpu.trace_start"() <{level = 10 : i32, message = "bqk,bkd->bqd"}> : () -> ()
    %cst_11 = arith.constant dense<0.000000e+00> : vector<2x8x4xf32>
    %49 = tpu.matmul %48, %36, %cst_11 {dimension_numbers = #tpu.dot_dimension_numbers<[2], [1], [1], [2], [0, 0, 0, 1, 1, 2], [0], [0]>} : vector<2x8x8xbf16>, vector<2x8x4xbf16>, vector<2x8x4xf32> -> vector<2x8x4xf32>
    "tpu.trace_stop"() : () -> ()
    %50 = vector.shape_cast %49 : vector<2x8x4xf32> to vector<16x4xf32>
    %51 = vector.extract_strided_slice %21 {offsets = [0, 4], sizes = [16, 4], strides = [1, 1]} : vector<16x32xf32> to vector<16x4xf32>
    %52 = vector.shape_cast %51 : vector<16x4xf32> to vector<2x8x4xf32>
    %53 = arith.truncf %52 : vector<2x8x4xf32> to vector<2x8x4xbf16>
    %54 = vector.extract_strided_slice %24 {offsets = [0, 4], sizes = [16, 4], strides = [1, 1]} : vector<16x32xf32> to vector<16x4xf32>
    %55 = vector.shape_cast %54 : vector<16x4xf32> to vector<2x8x4xf32>
    %56 = arith.truncf %55 : vector<2x8x4xf32> to vector<2x8x4xbf16>
    %57 = vector.extract_strided_slice %27 {offsets = [0, 4], sizes = [16, 4], strides = [1, 1]} : vector<16x32xf32> to vector<16x4xf32>
    %58 = vector.shape_cast %57 : vector<16x4xf32> to vector<2x8x4xf32>
    %59 = arith.truncf %58 : vector<2x8x4xf32> to vector<2x8x4xbf16>
    "tpu.trace_start"() <{level = 10 : i32, message = "bqd,bkd->bqk"}> : () -> ()
    %cst_12 = arith.constant dense<0.000000e+00> : vector<2x8x8xf32>
    %60 = tpu.matmul %53, %56, %cst_12 {dimension_numbers = #tpu.dot_dimension_numbers<[2], [2], [1], [1], [0, 0, 0, 1, 1, 1], [0], [0]>} : vector<2x8x4xbf16>, vector<2x8x4xbf16>, vector<2x8x8xf32> -> vector<2x8x8xf32>
    "tpu.trace_stop"() : () -> ()
    %cst_13 = arith.constant dense<0xFF800000> : vector<2x8xf32>
    %61 = vector.multi_reduction <maximumf>, %60, %cst_13 [2] : vector<2x8x8xf32> to vector<2x8xf32>
    %62 = vector.shape_cast %61 : vector<2x8xf32> to vector<2x8x1xf32>
    %63 = vector.broadcast %62 : vector<2x8x1xf32> to vector<2x8x8xf32>
    %64 = arith.subf %60, %63 : vector<2x8x8xf32>
    %65 = math.exp %64 : vector<2x8x8xf32>
    %cst_14 = arith.constant dense<0.000000e+00> : vector<2x8xf32>
    %66 = vector.multi_reduction <add>, %65, %cst_14 [2] : vector<2x8x8xf32> to vector<2x8xf32>
    %67 = vector.shape_cast %66 : vector<2x8xf32> to vector<2x8x1xf32>
    %68 = tpu.reciprocal %67 {approx = true} : vector<2x8x1xf32> -> vector<2x8x1xf32>
    %69 = vector.broadcast %68 : vector<2x8x1xf32> to vector<2x8x8xf32>
    %70 = arith.mulf %65, %69 : vector<2x8x8xf32>
    %71 = arith.truncf %70 : vector<2x8x8xf32> to vector<2x8x8xbf16>
    "tpu.trace_start"() <{level = 10 : i32, message = "bqk,bkd->bqd"}> : () -> ()
    %cst_15 = arith.constant dense<0.000000e+00> : vector<2x8x4xf32>
    %72 = tpu.matmul %71, %59, %cst_15 {dimension_numbers = #tpu.dot_dimension_numbers<[2], [1], [1], [2], [0, 0, 0, 1, 1, 2], [0], [0]>} : vector<2x8x8xbf16>, vector<2x8x4xbf16>, vector<2x8x4xf32> -> vector<2x8x4xf32>
    "tpu.trace_stop"() : () -> ()
    %73 = vector.shape_cast %72 : vector<2x8x4xf32> to vector<16x4xf32>
    %74 = vector.extract_strided_slice %21 {offsets = [0, 8], sizes = [16, 4], strides = [1, 1]} : vector<16x32xf32> to vector<16x4xf32>
    %75 = vector.shape_cast %74 : vector<16x4xf32> to vector<2x8x4xf32>
    %76 = arith.truncf %75 : vector<2x8x4xf32> to vector<2x8x4xbf16>
    %77 = vector.extract_strided_slice %24 {offsets = [0, 8], sizes = [16, 4], strides = [1, 1]} : vector<16x32xf32> to vector<16x4xf32>
    %78 = vector.shape_cast %77 : vector<16x4xf32> to vector<2x8x4xf32>
    %79 = arith.truncf %78 : vector<2x8x4xf32> to vector<2x8x4xbf16>
    %80 = vector.extract_strided_slice %27 {offsets = [0, 8], sizes = [16, 4], strides = [1, 1]} : vector<16x32xf32> to vector<16x4xf32>
    %81 = vector.shape_cast %80 : vector<16x4xf32> to vector<2x8x4xf32>
    %82 = arith.truncf %81 : vector<2x8x4xf32> to vector<2x8x4xbf16>
    "tpu.trace_start"() <{level = 10 : i32, message = "bqd,bkd->bqk"}> : () -> ()
    %cst_16 = arith.constant dense<0.000000e+00> : vector<2x8x8xf32>
    %83 = tpu.matmul %76, %79, %cst_16 {dimension_numbers = #tpu.dot_dimension_numbers<[2], [2], [1], [1], [0, 0, 0, 1, 1, 1], [0], [0]>} : vector<2x8x4xbf16>, vector<2x8x4xbf16>, vector<2x8x8xf32> -> vector<2x8x8xf32>
    "tpu.trace_stop"() : () -> ()
    %cst_17 = arith.constant dense<0xFF800000> : vector<2x8xf32>
    %84 = vector.multi_reduction <maximumf>, %83, %cst_17 [2] : vector<2x8x8xf32> to vector<2x8xf32>
    %85 = vector.shape_cast %84 : vector<2x8xf32> to vector<2x8x1xf32>
    %86 = vector.broadcast %85 : vector<2x8x1xf32> to vector<2x8x8xf32>
    %87 = arith.subf %83, %86 : vector<2x8x8xf32>
    %88 = math.exp %87 : vector<2x8x8xf32>
    %cst_18 = arith.constant dense<0.000000e+00> : vector<2x8xf32>
    %89 = vector.multi_reduction <add>, %88, %cst_18 [2] : vector<2x8x8xf32> to vector<2x8xf32>
    %90 = vector.shape_cast %89 : vector<2x8xf32> to vector<2x8x1xf32>
    %91 = tpu.reciprocal %90 {approx = true} : vector<2x8x1xf32> -> vector<2x8x1xf32>
    %92 = vector.broadcast %91 : vector<2x8x1xf32> to vector<2x8x8xf32>
    %93 = arith.mulf %88, %92 : vector<2x8x8xf32>
    %94 = arith.truncf %93 : vector<2x8x8xf32> to vector<2x8x8xbf16>
    "tpu.trace_start"() <{level = 10 : i32, message = "bqk,bkd->bqd"}> : () -> ()
    %cst_19 = arith.constant dense<0.000000e+00> : vector<2x8x4xf32>
    %95 = tpu.matmul %94, %82, %cst_19 {dimension_numbers = #tpu.dot_dimension_numbers<[2], [1], [1], [2], [0, 0, 0, 1, 1, 2], [0], [0]>} : vector<2x8x8xbf16>, vector<2x8x4xbf16>, vector<2x8x4xf32> -> vector<2x8x4xf32>
    "tpu.trace_stop"() : () -> ()
    %96 = vector.shape_cast %95 : vector<2x8x4xf32> to vector<16x4xf32>
    %97 = vector.extract_strided_slice %21 {offsets = [0, 12], sizes = [16, 4], strides = [1, 1]} : vector<16x32xf32> to vector<16x4xf32>
    %98 = vector.shape_cast %97 : vector<16x4xf32> to vector<2x8x4xf32>
    %99 = arith.truncf %98 : vector<2x8x4xf32> to vector<2x8x4xbf16>
    %100 = vector.extract_strided_slice %24 {offsets = [0, 12], sizes = [16, 4], strides = [1, 1]} : vector<16x32xf32> to vector<16x4xf32>
    %101 = vector.shape_cast %100 : vector<16x4xf32> to vector<2x8x4xf32>
    %102 = arith.truncf %101 : vector<2x8x4xf32> to vector<2x8x4xbf16>
    %103 = vector.extract_strided_slice %27 {offsets = [0, 12], sizes = [16, 4], strides = [1, 1]} : vector<16x32xf32> to vector<16x4xf32>
    %104 = vector.shape_cast %103 : vector<16x4xf32> to vector<2x8x4xf32>
    %105 = arith.truncf %104 : vector<2x8x4xf32> to vector<2x8x4xbf16>
    "tpu.trace_start"() <{level = 10 : i32, message = "bqd,bkd->bqk"}> : () -> ()
    %cst_20 = arith.constant dense<0.000000e+00> : vector<2x8x8xf32>
    %106 = tpu.matmul %99, %102, %cst_20 {dimension_numbers = #tpu.dot_dimension_numbers<[2], [2], [1], [1], [0, 0, 0, 1, 1, 1], [0], [0]>} : vector<2x8x4xbf16>, vector<2x8x4xbf16>, vector<2x8x8xf32> -> vector<2x8x8xf32>
    "tpu.trace_stop"() : () -> ()
    %cst_21 = arith.constant dense<0xFF800000> : vector<2x8xf32>
    %107 = vector.multi_reduction <maximumf>, %106, %cst_21 [2] : vector<2x8x8xf32> to vector<2x8xf32>
    %108 = vector.shape_cast %107 : vector<2x8xf32> to vector<2x8x1xf32>
    %109 = vector.broadcast %108 : vector<2x8x1xf32> to vector<2x8x8xf32>
    %110 = arith.subf %106, %109 : vector<2x8x8xf32>
    %111 = math.exp %110 : vector<2x8x8xf32>
    %cst_22 = arith.constant dense<0.000000e+00> : vector<2x8xf32>
    %112 = vector.multi_reduction <add>, %111, %cst_22 [2] : vector<2x8x8xf32> to vector<2x8xf32>
    %113 = vector.shape_cast %112 : vector<2x8xf32> to vector<2x8x1xf32>
    %114 = tpu.reciprocal %113 {approx = true} : vector<2x8x1xf32> -> vector<2x8x1xf32>
    %115 = vector.broadcast %114 : vector<2x8x1xf32> to vector<2x8x8xf32>
    %116 = arith.mulf %111, %115 : vector<2x8x8xf32>
    %117 = arith.truncf %116 : vector<2x8x8xf32> to vector<2x8x8xbf16>
    "tpu.trace_start"() <{level = 10 : i32, message = "bqk,bkd->bqd"}> : () -> ()
    %cst_23 = arith.constant dense<0.000000e+00> : vector<2x8x4xf32>
    %118 = tpu.matmul %117, %105, %cst_23 {dimension_numbers = #tpu.dot_dimension_numbers<[2], [1], [1], [2], [0, 0, 0, 1, 1, 2], [0], [0]>} : vector<2x8x8xbf16>, vector<2x8x4xbf16>, vector<2x8x4xf32> -> vector<2x8x4xf32>
    "tpu.trace_stop"() : () -> ()
    %119 = vector.shape_cast %118 : vector<2x8x4xf32> to vector<16x4xf32>
    %120 = vector.extract_strided_slice %21 {offsets = [0, 16], sizes = [16, 4], strides = [1, 1]} : vector<16x32xf32> to vector<16x4xf32>
    %121 = vector.shape_cast %120 : vector<16x4xf32> to vector<2x8x4xf32>
    %122 = arith.truncf %121 : vector<2x8x4xf32> to vector<2x8x4xbf16>
    %123 = vector.extract_strided_slice %24 {offsets = [0, 16], sizes = [16, 4], strides = [1, 1]} : vector<16x32xf32> to vector<16x4xf32>
    %124 = vector.shape_cast %123 : vector<16x4xf32> to vector<2x8x4xf32>
    %125 = arith.truncf %124 : vector<2x8x4xf32> to vector<2x8x4xbf16>
    %126 = vector.extract_strided_slice %27 {offsets = [0, 16], sizes = [16, 4], strides = [1, 1]} : vector<16x32xf32> to vector<16x4xf32>
    %127 = vector.shape_cast %126 : vector<16x4xf32> to vector<2x8x4xf32>
    %128 = arith.truncf %127 : vector<2x8x4xf32> to vector<2x8x4xbf16>
    "tpu.trace_start"() <{level = 10 : i32, message = "bqd,bkd->bqk"}> : () -> ()
    %cst_24 = arith.constant dense<0.000000e+00> : vector<2x8x8xf32>
    %129 = tpu.matmul %122, %125, %cst_24 {dimension_numbers = #tpu.dot_dimension_numbers<[2], [2], [1], [1], [0, 0, 0, 1, 1, 1], [0], [0]>} : vector<2x8x4xbf16>, vector<2x8x4xbf16>, vector<2x8x8xf32> -> vector<2x8x8xf32>
    "tpu.trace_stop"() : () -> ()
    %cst_25 = arith.constant dense<0xFF800000> : vector<2x8xf32>
    %130 = vector.multi_reduction <maximumf>, %129, %cst_25 [2] : vector<2x8x8xf32> to vector<2x8xf32>
    %131 = vector.shape_cast %130 : vector<2x8xf32> to vector<2x8x1xf32>
    %132 = vector.broadcast %131 : vector<2x8x1xf32> to vector<2x8x8xf32>
    %133 = arith.subf %129, %132 : vector<2x8x8xf32>
    %134 = math.exp %133 : vector<2x8x8xf32>
    %cst_26 = arith.constant dense<0.000000e+00> : vector<2x8xf32>
    %135 = vector.multi_reduction <add>, %134, %cst_26 [2] : vector<2x8x8xf32> to vector<2x8xf32>
    %136 = vector.shape_cast %135 : vector<2x8xf32> to vector<2x8x1xf32>
    %137 = tpu.reciprocal %136 {approx = true} : vector<2x8x1xf32> -> vector<2x8x1xf32>
    %138 = vector.broadcast %137 : vector<2x8x1xf32> to vector<2x8x8xf32>
    %139 = arith.mulf %134, %138 : vector<2x8x8xf32>
    %140 = arith.truncf %139 : vector<2x8x8xf32> to vector<2x8x8xbf16>
    "tpu.trace_start"() <{level = 10 : i32, message = "bqk,bkd->bqd"}> : () -> ()
    %cst_27 = arith.constant dense<0.000000e+00> : vector<2x8x4xf32>
    %141 = tpu.matmul %140, %128, %cst_27 {dimension_numbers = #tpu.dot_dimension_numbers<[2], [1], [1], [2], [0, 0, 0, 1, 1, 2], [0], [0]>} : vector<2x8x8xbf16>, vector<2x8x4xbf16>, vector<2x8x4xf32> -> vector<2x8x4xf32>
    "tpu.trace_stop"() : () -> ()
    %142 = vector.shape_cast %141 : vector<2x8x4xf32> to vector<16x4xf32>
    %143 = vector.extract_strided_slice %21 {offsets = [0, 20], sizes = [16, 4], strides = [1, 1]} : vector<16x32xf32> to vector<16x4xf32>
    %144 = vector.shape_cast %143 : vector<16x4xf32> to vector<2x8x4xf32>
    %145 = arith.truncf %144 : vector<2x8x4xf32> to vector<2x8x4xbf16>
    %146 = vector.extract_strided_slice %24 {offsets = [0, 20], sizes = [16, 4], strides = [1, 1]} : vector<16x32xf32> to vector<16x4xf32>
    %147 = vector.shape_cast %146 : vector<16x4xf32> to vector<2x8x4xf32>
    %148 = arith.truncf %147 : vector<2x8x4xf32> to vector<2x8x4xbf16>
    %149 = vector.extract_strided_slice %27 {offsets = [0, 20], sizes = [16, 4], strides = [1, 1]} : vector<16x32xf32> to vector<16x4xf32>
    %150 = vector.shape_cast %149 : vector<16x4xf32> to vector<2x8x4xf32>
    %151 = arith.truncf %150 : vector<2x8x4xf32> to vector<2x8x4xbf16>
    "tpu.trace_start"() <{level = 10 : i32, message = "bqd,bkd->bqk"}> : () -> ()
    %cst_28 = arith.constant dense<0.000000e+00> : vector<2x8x8xf32>
    %152 = tpu.matmul %145, %148, %cst_28 {dimension_numbers = #tpu.dot_dimension_numbers<[2], [2], [1], [1], [0, 0, 0, 1, 1, 1], [0], [0]>} : vector<2x8x4xbf16>, vector<2x8x4xbf16>, vector<2x8x8xf32> -> vector<2x8x8xf32>
    "tpu.trace_stop"() : () -> ()
    %cst_29 = arith.constant dense<0xFF800000> : vector<2x8xf32>
    %153 = vector.multi_reduction <maximumf>, %152, %cst_29 [2] : vector<2x8x8xf32> to vector<2x8xf32>
    %154 = vector.shape_cast %153 : vector<2x8xf32> to vector<2x8x1xf32>
    %155 = vector.broadcast %154 : vector<2x8x1xf32> to vector<2x8x8xf32>
    %156 = arith.subf %152, %155 : vector<2x8x8xf32>
    %157 = math.exp %156 : vector<2x8x8xf32>
    %cst_30 = arith.constant dense<0.000000e+00> : vector<2x8xf32>
    %158 = vector.multi_reduction <add>, %157, %cst_30 [2] : vector<2x8x8xf32> to vector<2x8xf32>
    %159 = vector.shape_cast %158 : vector<2x8xf32> to vector<2x8x1xf32>
    %160 = tpu.reciprocal %159 {approx = true} : vector<2x8x1xf32> -> vector<2x8x1xf32>
    %161 = vector.broadcast %160 : vector<2x8x1xf32> to vector<2x8x8xf32>
    %162 = arith.mulf %157, %161 : vector<2x8x8xf32>
    %163 = arith.truncf %162 : vector<2x8x8xf32> to vector<2x8x8xbf16>
    "tpu.trace_start"() <{level = 10 : i32, message = "bqk,bkd->bqd"}> : () -> ()
    %cst_31 = arith.constant dense<0.000000e+00> : vector<2x8x4xf32>
    %164 = tpu.matmul %163, %151, %cst_31 {dimension_numbers = #tpu.dot_dimension_numbers<[2], [1], [1], [2], [0, 0, 0, 1, 1, 2], [0], [0]>} : vector<2x8x8xbf16>, vector<2x8x4xbf16>, vector<2x8x4xf32> -> vector<2x8x4xf32>
    "tpu.trace_stop"() : () -> ()
    %165 = vector.shape_cast %164 : vector<2x8x4xf32> to vector<16x4xf32>
    %166 = vector.extract_strided_slice %21 {offsets = [0, 24], sizes = [16, 4], strides = [1, 1]} : vector<16x32xf32> to vector<16x4xf32>
    %167 = vector.shape_cast %166 : vector<16x4xf32> to vector<2x8x4xf32>
    %168 = arith.truncf %167 : vector<2x8x4xf32> to vector<2x8x4xbf16>
    %169 = vector.extract_strided_slice %24 {offsets = [0, 24], sizes = [16, 4], strides = [1, 1]} : vector<16x32xf32> to vector<16x4xf32>
    %170 = vector.shape_cast %169 : vector<16x4xf32> to vector<2x8x4xf32>
    %171 = arith.truncf %170 : vector<2x8x4xf32> to vector<2x8x4xbf16>
    %172 = vector.extract_strided_slice %27 {offsets = [0, 24], sizes = [16, 4], strides = [1, 1]} : vector<16x32xf32> to vector<16x4xf32>
    %173 = vector.shape_cast %172 : vector<16x4xf32> to vector<2x8x4xf32>
    %174 = arith.truncf %173 : vector<2x8x4xf32> to vector<2x8x4xbf16>
    "tpu.trace_start"() <{level = 10 : i32, message = "bqd,bkd->bqk"}> : () -> ()
    %cst_32 = arith.constant dense<0.000000e+00> : vector<2x8x8xf32>
    %175 = tpu.matmul %168, %171, %cst_32 {dimension_numbers = #tpu.dot_dimension_numbers<[2], [2], [1], [1], [0, 0, 0, 1, 1, 1], [0], [0]>} : vector<2x8x4xbf16>, vector<2x8x4xbf16>, vector<2x8x8xf32> -> vector<2x8x8xf32>
    "tpu.trace_stop"() : () -> ()
    %cst_33 = arith.constant dense<0xFF800000> : vector<2x8xf32>
    %176 = vector.multi_reduction <maximumf>, %175, %cst_33 [2] : vector<2x8x8xf32> to vector<2x8xf32>
    %177 = vector.shape_cast %176 : vector<2x8xf32> to vector<2x8x1xf32>
    %178 = vector.broadcast %177 : vector<2x8x1xf32> to vector<2x8x8xf32>
    %179 = arith.subf %175, %178 : vector<2x8x8xf32>
    %180 = math.exp %179 : vector<2x8x8xf32>
    %cst_34 = arith.constant dense<0.000000e+00> : vector<2x8xf32>
    %181 = vector.multi_reduction <add>, %180, %cst_34 [2] : vector<2x8x8xf32> to vector<2x8xf32>
    %182 = vector.shape_cast %181 : vector<2x8xf32> to vector<2x8x1xf32>
    %183 = tpu.reciprocal %182 {approx = true} : vector<2x8x1xf32> -> vector<2x8x1xf32>
    %184 = vector.broadcast %183 : vector<2x8x1xf32> to vector<2x8x8xf32>
    %185 = arith.mulf %180, %184 : vector<2x8x8xf32>
    %186 = arith.truncf %185 : vector<2x8x8xf32> to vector<2x8x8xbf16>
    "tpu.trace_start"() <{level = 10 : i32, message = "bqk,bkd->bqd"}> : () -> ()
    %cst_35 = arith.constant dense<0.000000e+00> : vector<2x8x4xf32>
    %187 = tpu.matmul %186, %174, %cst_35 {dimension_numbers = #tpu.dot_dimension_numbers<[2], [1], [1], [2], [0, 0, 0, 1, 1, 2], [0], [0]>} : vector<2x8x8xbf16>, vector<2x8x4xbf16>, vector<2x8x4xf32> -> vector<2x8x4xf32>
    "tpu.trace_stop"() : () -> ()
    %188 = vector.shape_cast %187 : vector<2x8x4xf32> to vector<16x4xf32>
    %189 = vector.extract_strided_slice %21 {offsets = [0, 28], sizes = [16, 4], strides = [1, 1]} : vector<16x32xf32> to vector<16x4xf32>
    %190 = vector.shape_cast %189 : vector<16x4xf32> to vector<2x8x4xf32>
    %191 = arith.truncf %190 : vector<2x8x4xf32> to vector<2x8x4xbf16>
    %192 = vector.extract_strided_slice %24 {offsets = [0, 28], sizes = [16, 4], strides = [1, 1]} : vector<16x32xf32> to vector<16x4xf32>
    %193 = vector.shape_cast %192 : vector<16x4xf32> to vector<2x8x4xf32>
    %194 = arith.truncf %193 : vector<2x8x4xf32> to vector<2x8x4xbf16>
    %195 = vector.extract_strided_slice %27 {offsets = [0, 28], sizes = [16, 4], strides = [1, 1]} : vector<16x32xf32> to vector<16x4xf32>
    %196 = vector.shape_cast %195 : vector<16x4xf32> to vector<2x8x4xf32>
    %197 = arith.truncf %196 : vector<2x8x4xf32> to vector<2x8x4xbf16>
    "tpu.trace_start"() <{level = 10 : i32, message = "bqd,bkd->bqk"}> : () -> ()
    %cst_36 = arith.constant dense<0.000000e+00> : vector<2x8x8xf32>
    %198 = tpu.matmul %191, %194, %cst_36 {dimension_numbers = #tpu.dot_dimension_numbers<[2], [2], [1], [1], [0, 0, 0, 1, 1, 1], [0], [0]>} : vector<2x8x4xbf16>, vector<2x8x4xbf16>, vector<2x8x8xf32> -> vector<2x8x8xf32>
    "tpu.trace_stop"() : () -> ()
    %cst_37 = arith.constant dense<0xFF800000> : vector<2x8xf32>
    %199 = vector.multi_reduction <maximumf>, %198, %cst_37 [2] : vector<2x8x8xf32> to vector<2x8xf32>
    %200 = vector.shape_cast %199 : vector<2x8xf32> to vector<2x8x1xf32>
    %201 = vector.broadcast %200 : vector<2x8x1xf32> to vector<2x8x8xf32>
    %202 = arith.subf %198, %201 : vector<2x8x8xf32>
    %203 = math.exp %202 : vector<2x8x8xf32>
    %cst_38 = arith.constant dense<0.000000e+00> : vector<2x8xf32>
    %204 = vector.multi_reduction <add>, %203, %cst_38 [2] : vector<2x8x8xf32> to vector<2x8xf32>
    %205 = vector.shape_cast %204 : vector<2x8xf32> to vector<2x8x1xf32>
    %206 = tpu.reciprocal %205 {approx = true} : vector<2x8x1xf32> -> vector<2x8x1xf32>
    %207 = vector.broadcast %206 : vector<2x8x1xf32> to vector<2x8x8xf32>
    %208 = arith.mulf %203, %207 : vector<2x8x8xf32>
    %209 = arith.truncf %208 : vector<2x8x8xf32> to vector<2x8x8xbf16>
    "tpu.trace_start"() <{level = 10 : i32, message = "bqk,bkd->bqd"}> : () -> ()
    %cst_39 = arith.constant dense<0.000000e+00> : vector<2x8x4xf32>
    %210 = tpu.matmul %209, %197, %cst_39 {dimension_numbers = #tpu.dot_dimension_numbers<[2], [1], [1], [2], [0, 0, 0, 1, 1, 2], [0], [0]>} : vector<2x8x8xbf16>, vector<2x8x4xbf16>, vector<2x8x4xf32> -> vector<2x8x4xf32>
    "tpu.trace_stop"() : () -> ()
    %211 = vector.shape_cast %210 : vector<2x8x4xf32> to vector<16x4xf32>
    %212 = tpu.concatenate %50, %73, %96, %119, %142, %165, %188, %211 in 1 : vector<16x4xf32>, vector<16x4xf32>, vector<16x4xf32>, vector<16x4xf32>, vector<16x4xf32>, vector<16x4xf32>, vector<16x4xf32>, vector<16x4xf32> -> vector<16x32xf32>
    %213 = arith.truncf %212 : vector<16x32xf32> to vector<16x32xbf16>
    %c0_40 = arith.constant 0 : index
    %c0_41 = arith.constant 0 : index
    %c0_42 = arith.constant 0 : index
    %214 = vector.load %arg4[%c0_40, %c0_41, %c0_42] : memref<1x32x32xbf16, #tpu.memory_space<vmem>>, vector<1x32x32xbf16>
    %215 = vector.shape_cast %214 : vector<1x32x32xbf16> to vector<32x32xbf16>
    %cst_43 = arith.constant dense<0.000000e+00> : vector<16x32xf32>
    %216 = tpu.matmul %213, %215, %cst_43 {dimension_numbers = #tpu.dot_dimension_numbers<[1], [0], [0], [1], [0, 0, 1, 1], [], []>} : vector<16x32xbf16>, vector<32x32xbf16>, vector<16x32xf32> -> vector<16x32xf32>
    %217 = vector.broadcast %10 : vector<1x32xf32> to vector<16x32xf32>
    %218 = arith.addf %216, %217 : vector<16x32xf32>
    %219 = arith.addf %3, %218 : vector<16x32xf32>
    %cst_44 = arith.constant dense<0.000000e+00> : vector<16xf32>
    %220 = vector.multi_reduction <add>, %219, %cst_44 [1] : vector<16x32xf32> to vector<16xf32>
    %221 = vector.shape_cast %220 : vector<16xf32> to vector<16x1xf32>
    %cst_45 = arith.constant 3.200000e+01 : f32
    %222 = vector.broadcast %cst_45 : f32 to vector<16x1xf32>
    %223 = arith.divf %221, %222 : vector<16x1xf32>
    %224 = vector.broadcast %223 : vector<16x1xf32> to vector<16x32xf32>
    %225 = arith.subf %219, %224 : vector<16x32xf32>
    %226 = arith.mulf %225, %225 : vector<16x32xf32>
    %cst_46 = arith.constant dense<0.000000e+00> : vector<16xf32>
    %227 = vector.multi_reduction <add>, %226, %cst_46 [1] : vector<16x32xf32> to vector<16xf32>
    %228 = vector.shape_cast %227 : vector<16xf32> to vector<16x1xf32>
    %cst_47 = arith.constant 3.200000e+01 : f32
    %229 = vector.broadcast %cst_47 : f32 to vector<16x1xf32>
    %230 = arith.divf %228, %229 : vector<16x1xf32>
    %231 = vector.broadcast %223 : vector<16x1xf32> to vector<16x32xf32>
    %232 = arith.subf %219, %231 : vector<16x32xf32>
    %cst_48 = arith.constant 9.99999974E-6 : f32
    %233 = vector.broadcast %cst_48 : f32 to vector<16x1xf32>
    %234 = arith.addf %230, %233 : vector<16x1xf32>
    %235 = math.rsqrt %234 : vector<16x1xf32>
    %236 = vector.broadcast %235 : vector<16x1xf32> to vector<16x32xf32>
    %237 = arith.mulf %232, %236 : vector<16x32xf32>
    %238 = vector.broadcast %12 : vector<1x32xf32> to vector<16x32xf32>
    %239 = arith.mulf %237, %238 : vector<16x32xf32>
    %240 = vector.broadcast %13 : vector<1x32xf32> to vector<16x32xf32>
    %241 = arith.addf %239, %240 : vector<16x32xf32>
    %242 = arith.truncf %241 : vector<16x32xf32> to vector<16x32xbf16>
    %c0_49 = arith.constant 0 : index
    %c0_50 = arith.constant 0 : index
    %c0_51 = arith.constant 0 : index
    %243 = vector.load %arg5[%c0_49, %c0_50, %c0_51] : memref<1x32x128xbf16, #tpu.memory_space<vmem>>, vector<1x32x128xbf16>
    %244 = vector.shape_cast %243 : vector<1x32x128xbf16> to vector<32x128xbf16>
    %cst_52 = arith.constant dense<0.000000e+00> : vector<16x128xf32>
    %245 = tpu.matmul %242, %244, %cst_52 {dimension_numbers = #tpu.dot_dimension_numbers<[1], [0], [0], [1], [0, 0, 1, 1], [], []>} : vector<16x32xbf16>, vector<32x128xbf16>, vector<16x128xf32> -> vector<16x128xf32>
    %c0_53 = arith.constant 0 : index
    %c0_54 = arith.constant 0 : index
    %c0_55 = arith.constant 0 : index
    %246 = vector.load %arg8[%c0_53, %c0_54, %c0_55] : memref<1x1x128xf32, #tpu.memory_space<vmem>>, vector<1x1x128xf32>
    %247 = vector.shape_cast %246 : vector<1x1x128xf32> to vector<1x128xf32>
    %248 = vector.broadcast %247 : vector<1x128xf32> to vector<16x128xf32>
    %249 = arith.addf %245, %248 : vector<16x128xf32>
    %cst_56 = arith.constant 0.000000e+00 : f32
    %250 = vector.broadcast %cst_56 : f32 to vector<16x128xf32>
    %251 = arith.maximumf %249, %250 : vector<16x128xf32>
    %252 = arith.truncf %251 : vector<16x128xf32> to vector<16x128xbf16>
    %c0_57 = arith.constant 0 : index
    %c0_58 = arith.constant 0 : index
    %c0_59 = arith.constant 0 : index
    %253 = vector.load %arg6[%c0_57, %c0_58, %c0_59] : memref<1x128x32xbf16, #tpu.memory_space<vmem>>, vector<1x128x32xbf16>
    %254 = vector.shape_cast %253 : vector<1x128x32xbf16> to vector<128x32xbf16>
    %cst_60 = arith.constant dense<0.000000e+00> : vector<16x32xf32>
    %255 = tpu.matmul %252, %254, %cst_60 {dimension_numbers = #tpu.dot_dimension_numbers<[1], [0], [0], [1], [0, 0, 1, 1], [], []>} : vector<16x128xbf16>, vector<128x32xbf16>, vector<16x32xf32> -> vector<16x32xf32>
    %256 = vector.broadcast %11 : vector<1x32xf32> to vector<16x32xf32>
    %257 = arith.addf %255, %256 : vector<16x32xf32>
    %258 = arith.addf %241, %257 : vector<16x32xf32>
    %cst_61 = arith.constant dense<0.000000e+00> : vector<16xf32>
    %259 = vector.multi_reduction <add>, %258, %cst_61 [1] : vector<16x32xf32> to vector<16xf32>
    %260 = vector.shape_cast %259 : vector<16xf32> to vector<16x1xf32>
    %cst_62 = arith.constant 3.200000e+01 : f32
    %261 = vector.broadcast %cst_62 : f32 to vector<16x1xf32>
    %262 = arith.divf %260, %261 : vector<16x1xf32>
    %263 = vector.broadcast %262 : vector<16x1xf32> to vector<16x32xf32>
    %264 = arith.subf %258, %263 : vector<16x32xf32>
    %265 = arith.mulf %264, %264 : vector<16x32xf32>
    %cst_63 = arith.constant dense<0.000000e+00> : vector<16xf32>
    %266 = vector.multi_reduction <add>, %265, %cst_63 [1] : vector<16x32xf32> to vector<16xf32>
    %267 = vector.shape_cast %266 : vector<16xf32> to vector<16x1xf32>
    %cst_64 = arith.constant 3.200000e+01 : f32
    %268 = vector.broadcast %cst_64 : f32 to vector<16x1xf32>
    %269 = arith.divf %267, %268 : vector<16x1xf32>
    %270 = vector.broadcast %262 : vector<16x1xf32> to vector<16x32xf32>
    %271 = arith.subf %258, %270 : vector<16x32xf32>
    %cst_65 = arith.constant 9.99999974E-6 : f32
    %272 = vector.broadcast %cst_65 : f32 to vector<16x1xf32>
    %273 = arith.addf %269, %272 : vector<16x1xf32>
    %274 = math.rsqrt %273 : vector<16x1xf32>
    %275 = vector.broadcast %274 : vector<16x1xf32> to vector<16x32xf32>
    %276 = arith.mulf %271, %275 : vector<16x32xf32>
    %277 = vector.broadcast %14 : vector<1x32xf32> to vector<16x32xf32>
    %278 = arith.mulf %276, %277 : vector<16x32xf32>
    %279 = vector.broadcast %15 : vector<1x32xf32> to vector<16x32xf32>
    %280 = arith.addf %278, %279 : vector<16x32xf32>
    %c0_66 = arith.constant 0 : index
    %c0_67 = arith.constant 0 : index
    %281 = vector.load %arg10[%c0_66, %c0_67] : memref<16x32xf32, #tpu.memory_space<vmem>>, vector<16x32xf32>
    tpu.vector_store %arg10[%c0_66, %c0_67], %280 {strides = array<i32>} : memref<16x32xf32, #tpu.memory_space<vmem>>, vector<16x32xf32>,
    %c1_i32 = arith.constant 1 : i32
    %282 = arith.cmpi eq, %arg1, %c1_i32 : i32
    %283 = arith.extui %282 : i1 to i32
    %c0_i32_68 = arith.constant 0 : i32
    %284 = arith.cmpi ne, %283, %c0_i32_68 : i32
    scf.if %284 {
      %285 = vector.shape_cast %280 : vector<16x32xf32> to vector<2x8x32xf32>
      %c0_69 = arith.constant 0 : index
      %c0_70 = arith.constant 0 : index
      %c0_71 = arith.constant 0 : index
      %286 = vector.load %arg9[%c0_69, %c0_70, %c0_71] : memref<2x8x32xf32, #tpu.memory_space<vmem>>, vector<2x8x32xf32>
      tpu.vector_store %arg9[%c0_69, %c0_70, %c0_71], %285 {strides = array<i32>} : memref<2x8x32xf32, #tpu.memory_space<vmem>>, vector<2x8x32xf32>,
    } else {
    }
    return
  }
  func.func @transform_0(%arg0: i32, %arg1: i32) -> (i32, i32, i32) {
    %c0_i32 = arith.constant 0 : i32
    %c0_i32_0 = arith.constant 0 : i32
    %c0_i32_1 = arith.constant 0 : i32
    return %arg0, %c0_i32, %c0_i32_0 : i32, i32, i32
  }
  func.func @transform_1(%arg0: i32, %arg1: i32) -> (i32, i32, i32) {
    %c0_i32 = arith.constant 0 : i32
    %c0_i32_0 = arith.constant 0 : i32
    %c0_i32_1 = arith.constant 0 : i32
    return %arg1, %c0_i32, %c0_i32_0 : i32, i32, i32
  }
  func.func @transform_2(%arg0: i32, %arg1: i32) -> (i32, i32, i32) {
    %c0_i32 = arith.constant 0 : i32
    %c0_i32_0 = arith.constant 0 : i32
    %c0_i32_1 = arith.constant 0 : i32
    return %arg1, %c0_i32, %c0_i32_0 : i32, i32, i32
  }
  func.func @transform_3(%arg0: i32, %arg1: i32) -> (i32, i32, i32) {
    %c0_i32 = arith.constant 0 : i32
    %c0_i32_0 = arith.constant 0 : i32
    %c0_i32_1 = arith.constant 0 : i32
    return %arg1, %c0_i32, %c0_i32_0 : i32, i32, i32
  }
  func.func @transform_4(%arg0: i32, %arg1: i32) -> (i32, i32, i32) {
    %c0_i32 = arith.constant 0 : i32
    %c0_i32_0 = arith.constant 0 : i32
    %c0_i32_1 = arith.constant 0 : i32
    return %arg1, %c0_i32, %c0_i32_0 : i32, i32, i32
  }
  func.func @transform_5(%arg0: i32, %arg1: i32) -> (i32, i32, i32) {
    %c0_i32 = arith.constant 0 : i32
    %c0_i32_0 = arith.constant 0 : i32
    %c0_i32_1 = arith.constant 0 : i32
    return %arg1, %c0_i32, %c0_i32_0 : i32, i32, i32
  }
  func.func @transform_6(%arg0: i32, %arg1: i32) -> (i32, i32, i32) {
    %c0_i32 = arith.constant 0 : i32
    %c0_i32_0 = arith.constant 0 : i32
    %c0_i32_1 = arith.constant 0 : i32
    return %arg1, %c0_i32, %c0_i32_0 : i32, i32, i32
  }
  func.func @transform_7(%arg0: i32, %arg1: i32) -> (i32, i32, i32) {
    %c0_i32 = arith.constant 0 : i32
    %c0_i32_0 = arith.constant 0 : i32
    %c0_i32_1 = arith.constant 0 : i32
    return %arg0, %c0_i32, %c0_i32_0 : i32, i32, i32
  }
}

</mosaic_0001>

<llo_original>
// kernel: tpu_custom_call.1
$region0: #{tpu_custom_call.1}
  #allocation0 [shape = 'u32[]', space=smem, size = 0x4, offset = 0x4, fixed_abs, tag = 'smem constant byte address 0x4 - core index']
  #allocation1 [shape = 'u32[144,128]{1,0:T(1,128)}', space=vmem, size = 0x12000, scoped, tag = 'internal scratch']
  #allocation2 [shape = 'f32[16,32]{1,0:T(8,128)}', space=vmem, size = 0x2000, scoped, tag = 'scratch operand']
  %s0 = inlined_call_operand.vmem [shape: f32[2,8,32], index: 0, kind: input, shape index: {}]
  %s1 = inlined_call_operand.vmem [shape: bf16[2,32,96], index: 1, kind: input, shape index: {}]
  %s2 = inlined_call_operand.vmem [shape: bf16[2,32,32], index: 2, kind: input, shape index: {}]
  %s3 = inlined_call_operand.vmem [shape: bf16[2,32,128], index: 3, kind: input, shape index: {}]
  %s4 = inlined_call_operand.vmem [shape: bf16[2,128,32], index: 4, kind: input, shape index: {}]
  %s5 = inlined_call_operand.vmem [shape: f32[2,9,32], index: 5, kind: input, shape index: {}]
  %s6 = inlined_call_operand.vmem [shape: f32[2,1,128], index: 6, kind: input, shape index: {}]
  %s7 = inlined_call_operand.hbm [shape: f32[2,8,32], index: 7, kind: output, shape index: {}]
  %s8 = sld [smem:[#allocation0]]
  $region69: #{tpu_custom_call.1} parent=0
    _
  %s10 = ssub.s32 1, %s8
  %s11 = scalar_select 0, %s10, %s8
  $region1: #{tpu_custom_call.1} parent=0
    #allocation3 [shape = 'u8[8192]{0}', space=vmem, size = 0x2000, scoped, tag = 'output window, operand 0, single buffered']
    #allocation4 [shape = 's32[2]{0}', space=sflag, size = 0x8, scoped, tag = 'scoped memory for tpu_custom_call.1']
    %12 = vsyncpa [#allocation4], 0
    loop: start=0, step=1, limit=4
    $region2: #{tpu_custom_call.1} parent=1 // loop_pre_header
      _
    $region3: #{tpu_custom_call.1} parent=1 // loop_header
      %s14 = sphi 0, %s18
      %p15 = scmp.ge.s32.totalorder %s14, 4
      %s21 = sphi 0, %s33
      %s22 = sphi 0, %s29
      %s23 = sphi 0, %s21
      %s24 = sphi 0, %s22
      %s25 = sphi 0, %s23
      %s26 = sphi 0, %s24
      %s36 = sphi 0, %s38
      %s39 = sphi 0, %s36
      %s40 = sphi 0, %s39
      %s56 = sphi 0, %s40
      %s62 = sphi 0, %s64
      %s65 = sphi 0, %s62
      %s66 = sphi 0, %s65
      %s82 = sphi 0, %s66
      %s88 = sphi 0, %s90
      %s91 = sphi 0, %s88
      %s92 = sphi 0, %s91
      %s108 = sphi 0, %s92
      %s114 = sphi 0, %s116
      %s117 = sphi 0, %s114
      %s118 = sphi 0, %s117
      %s134 = sphi 0, %s118
      %s140 = sphi 0, %s142
      %s143 = sphi 0, %s140
      %s144 = sphi 0, %s143
      %s160 = sphi 0, %s144
      %s166 = sphi 0, %s168
      %s169 = sphi 0, %s166
      %s170 = sphi 0, %s169
      %s186 = sphi 0, %s170
      %s192 = sphi 0, %s194
      %s195 = sphi 0, %s192
      %s196 = sphi 0, %s195
      %s212 = sphi 0, %s196
      %s218 = sphi 0, %s220
      %s221 = sphi 0, %s218
      %s222 = sphi 0, %s221
      %s238 = sphi 0, %s222
    $region4: #{tpu_custom_call.1} parent=1 // loop_header_branch
      %17 = sbr.rel (%p15) target = $region8
    $region5: #{tpu_custom_call.1} parent=1 // loop_body
      %s19 = ssub.s32 %s14, 1
      %s20 = ssub.s32 %s14, 2
      %s27 = sadd.s32 1, %s22
      %p28 = scmp.ge.s32.totalorder %s27, 2
      %s29 = scalar_select %p28, 0, %s27
      %s30 = sadd.s32 1, %s21
      %s31 = scalar_select %p28, %s30, %s21
      %p32 = scmp.ge.s32.totalorder %s31, 1
      %s33 = scalar_select %p32, 0, %s31
      %s34 = ssub.s32 %s21, %s33
      %p35 = scmp.eq.s32.totalorder %s34, 0
      %s37 = sadd.s32 %s36, 1
      %s38 = scalar_select %p35, %s36, %s37
      %p41 = pneg %p35
      %p42 = scmp.eq.s32.totalorder %s14, 1
      %p43 = por %p41, %p42
      %p44 = scmp.ne.s32.totalorder %s36, %s39
      %p45 = scmp.eq.s32.totalorder %s14, 0
      %p46 = por %p44, %p45
      %p47 = scmp.ne.s32.totalorder %s36, %s39
      %p48 = scmp.eq.s32.totalorder %s19, 1
      %p49 = por %p47, %p48
      %p50 = scmp.ne.s32.totalorder %s39, %s40
      %p51 = scmp.eq.s32.totalorder %s19, 0
      %p52 = por %p50, %p51
      %p53 = scmp.ne.s32.totalorder %s39, %s40
      %p54 = scmp.eq.s32.totalorder %s20, 1
      %p55 = por %p53, %p54
      %p57 = scmp.ne.s32.totalorder %s40, %s56
      %p58 = scmp.eq.s32.totalorder %s20, 0
      %p59 = por %p57, %p58
      %s60 = ssub.s32 %s22, %s29
      %p61 = scmp.eq.s32.totalorder %s60, 0
      %s63 = sadd.s32 %s62, 1
      %s64 = scalar_select %p61, %s62, %s63
      %p67 = pneg %p61
      %p68 = scmp.eq.s32.totalorder %s14, 1
      %p69 = por %p67, %p68
      %p70 = scmp.ne.s32.totalorder %s62, %s65
      %p71 = scmp.eq.s32.totalorder %s14, 0
      %p72 = por %p70, %p71
      %p73 = scmp.ne.s32.totalorder %s62, %s65
      %p74 = scmp.eq.s32.totalorder %s19, 1
      %p75 = por %p73, %p74
      %p76 = scmp.ne.s32.totalorder %s65, %s66
      %p77 = scmp.eq.s32.totalorder %s19, 0
      %p78 = por %p76, %p77
      %p79 = scmp.ne.s32.totalorder %s65, %s66
      %p80 = scmp.eq.s32.totalorder %s20, 1
      %p81 = por %p79, %p80
      %p83 = scmp.ne.s32.totalorder %s66, %s82
      %p84 = scmp.eq.s32.totalorder %s20, 0
      %p85 = por %p83, %p84
      %s86 = ssub.s32 %s22, %s29
      %p87 = scmp.eq.s32.totalorder %s86, 0
      %s89 = sadd.s32 %s88, 1
      %s90 = scalar_select %p87, %s88, %s89
      %p93 = pneg %p87
      %p94 = scmp.eq.s32.totalorder %s14, 1
      %p95 = por %p93, %p94
      %p96 = scmp.ne.s32.totalorder %s88, %s91
      %p97 = scmp.eq.s32.totalorder %s14, 0
      %p98 = por %p96, %p97
      %p99 = scmp.ne.s32.totalorder %s88, %s91
      %p100 = scmp.eq.s32.totalorder %s19, 1
      %p101 = por %p99, %p100
      %p102 = scmp.ne.s32.totalorder %s91, %s92
      %p103 = scmp.eq.s32.totalorder %s19, 0
      %p104 = por %p102, %p103
      %p105 = scmp.ne.s32.totalorder %s91, %s92
      %p106 = scmp.eq.s32.totalorder %s20, 1
      %p107 = por %p105, %p106
      %p109 = scmp.ne.s32.totalorder %s92, %s108
      %p110 = scmp.eq.s32.totalorder %s20, 0
      %p111 = por %p109, %p110
      %s112 = ssub.s32 %s22, %s29
      %p113 = scmp.eq.s32.totalorder %s112, 0
      %s115 = sadd.s32 %s114, 1
      %s116 = scalar_select %p113, %s114, %s115
      %p119 = pneg %p113
      %p120 = scmp.eq.s32.totalorder %s14, 1
      %p121 = por %p119, %p120
      %p122 = scmp.ne.s32.totalorder %s114, %s117
      %p123 = scmp.eq.s32.totalorder %s14, 0
      %p124 = por %p122, %p123
      %p125 = scmp.ne.s32.totalorder %s114, %s117
      %p126 = scmp.eq.s32.totalorder %s19, 1
      %p127 = por %p125, %p126
      %p128 = scmp.ne.s32.totalorder %s117, %s118
      %p129 = scmp.eq.s32.totalorder %s19, 0
      %p130 = por %p128, %p129
      %p131 = scmp.ne.s32.totalorder %s117, %s118
      %p132 = scmp.eq.s32.totalorder %s20, 1
      %p133 = por %p131, %p132
      %p135 = scmp.ne.s32.totalorder %s118, %s134
      %p136 = scmp.eq.s32.totalorder %s20, 0
      %p137 = por %p135, %p136
      %s138 = ssub.s32 %s22, %s29
      %p139 = scmp.eq.s32.totalorder %s138, 0
      %s141 = sadd.s32 %s140, 1
      %s142 = scalar_select %p139, %s140, %s141
      %p145 = pneg %p139
      %p146 = scmp.eq.s32.totalorder %s14, 1
      %p147 = por %p145, %p146
      %p148 = scmp.ne.s32.totalorder %s140, %s143
      %p149 = scmp.eq.s32.totalorder %s14, 0
      %p150 = por %p148, %p149
      %p151 = scmp.ne.s32.totalorder %s140, %s143
      %p152 = scmp.eq.s32.totalorder %s19, 1
      %p153 = por %p151, %p152
      %p154 = scmp.ne.s32.totalorder %s143, %s144
      %p155 = scmp.eq.s32.totalorder %s19, 0
      %p156 = por %p154, %p155
      %p157 = scmp.ne.s32.totalorder %s143, %s144
      %p158 = scmp.eq.s32.totalorder %s20, 1
      %p159 = por %p157, %p158
      %p161 = scmp.ne.s32.totalorder %s144, %s160
      %p162 = scmp.eq.s32.totalorder %s20, 0
      %p163 = por %p161, %p162
      %s164 = ssub.s32 %s22, %s29
      %p165 = scmp.eq.s32.totalorder %s164, 0
      %s167 = sadd.s32 %s166, 1
      %s168 = scalar_select %p165, %s166, %s167
      %p171 = pneg %p165
      %p172 = scmp.eq.s32.totalorder %s14, 1
      %p173 = por %p171, %p172
      %p174 = scmp.ne.s32.totalorder %s166, %s169
      %p175 = scmp.eq.s32.totalorder %s14, 0
      %p176 = por %p174, %p175
      %p177 = scmp.ne.s32.totalorder %s166, %s169
      %p178 = scmp.eq.s32.totalorder %s19, 1
      %p179 = por %p177, %p178
      %p180 = scmp.ne.s32.totalorder %s169, %s170
      %p181 = scmp.eq.s32.totalorder %s19, 0
      %p182 = por %p180, %p181
      %p183 = scmp.ne.s32.totalorder %s169, %s170
      %p184 = scmp.eq.s32.totalorder %s20, 1
      %p185 = por %p183, %p184
      %p187 = scmp.ne.s32.totalorder %s170, %s186
      %p188 = scmp.eq.s32.totalorder %s20, 0
      %p189 = por %p187, %p188
      %s190 = ssub.s32 %s22, %s29
      %p191 = scmp.eq.s32.totalorder %s190, 0
      %s193 = sadd.s32 %s192, 1
      %s194 = scalar_select %p191, %s192, %s193
      %p197 = pneg %p191
      %p198 = scmp.eq.s32.totalorder %s14, 1
      %p199 = por %p197, %p198
      %p200 = scmp.ne.s32.totalorder %s192, %s195
      %p201 = scmp.eq.s32.totalorder %s14, 0
      %p202 = por %p200, %p201
      %p203 = scmp.ne.s32.totalorder %s192, %s195
      %p204 = scmp.eq.s32.totalorder %s19, 1
      %p205 = por %p203, %p204
      %p206 = scmp.ne.s32.totalorder %s195, %s196
      %p207 = scmp.eq.s32.totalorder %s19, 0
      %p208 = por %p206, %p207
      %p209 = scmp.ne.s32.totalorder %s195, %s196
      %p210 = scmp.eq.s32.totalorder %s20, 1
      %p211 = por %p209, %p210
      %p213 = scmp.ne.s32.totalorder %s196, %s212
      %p214 = scmp.eq.s32.totalorder %s20, 0
      %p215 = por %p213, %p214
      %s216 = ssub.s32 %s21, %s33
      %p217 = scmp.eq.s32.totalorder %s216, 0
      %s219 = sadd.s32 %s218, 1
      %s220 = scalar_select %p217, %s218, %s219
      %p223 = pneg %p217
      %p224 = scmp.eq.s32.totalorder %s14, 1
      %p225 = por %p223, %p224
      %p226 = scmp.ne.s32.totalorder %s218, %s221
      %p227 = scmp.eq.s32.totalorder %s14, 0
      %p228 = por %p226, %p227
      %p229 = scmp.ne.s32.totalorder %s218, %s221
      %p230 = scmp.eq.s32.totalorder %s19, 1
      %p231 = por %p229, %p230
      %p232 = scmp.ne.s32.totalorder %s221, %s222
      %p233 = scmp.eq.s32.totalorder %s19, 0
      %p234 = por %p232, %p233
      %p235 = scmp.ne.s32.totalorder %s221, %s222
      %p236 = scmp.eq.s32.totalorder %s20, 1
      %p237 = por %p235, %p236
      %p239 = scmp.ne.s32.totalorder %s222, %s238
      %p240 = scmp.eq.s32.totalorder %s20, 0
      %p241 = por %p239, %p240
      %p242 = scmp.le.s32.totalorder 1, %s14
      %p243 = scmp.lt.s32.totalorder %s14, 3
      %p244 = pnand %p242, %p243
      %p245 = pneg %p244
      // Predicated region
      $region9: #{tpu_custom_call.1} parent=5 // pred_check
        _
      $region10: #{tpu_custom_call.1} parent=5 // pred_check_branch
        %247 = sbr.rel (%p244) target = $region12
      $region11: #{tpu_custom_call.1} parent=5 // pred_region
        %s248 = ssub.s32 %s14, 1
        // Predicated region
        $region13: #{tpu_custom_call.1} parent=11 // pred_check
          %p249 = pneg %p52
        $region14: #{tpu_custom_call.1} parent=11 // pred_check_branch
          %251 = sbr.rel (%p249) target = $region16
        $region15: #{tpu_custom_call.1} parent=11 // pred_region
          %s252 = smul.u32 2, %s23
          %p253 = scmp.lt.s32.totalorder %s252, 1
          %s254 = scalar_select %p253, %s252, 1
          %s255 = smul.addr %s254, 8
          %s256 = scalar_lea.vmem %s0, %s255
          %s257 = smul.u32 2, %s23
        $region16: #{tpu_custom_call.1} parent=11 // pred_fallthru
          _
      $region12: #{tpu_custom_call.1} parent=5 // pred_fallthru
        _
      %p258 = scmp.lt.s32.totalorder %s14, 2
      // Predicated region
      $region17: #{tpu_custom_call.1} parent=5 // pred_check
        %p259 = pneg %p258
      $region18: #{tpu_custom_call.1} parent=5 // pred_check_branch
        %261 = sbr.rel (%p259) target = $region20
      $region19: #{tpu_custom_call.1} parent=5 // pred_region
        // Predicated region
        $region21: #{tpu_custom_call.1} parent=19 // pred_check
          %p262 = pneg %p72
        $region22: #{tpu_custom_call.1} parent=19 // pred_check_branch
          %264 = sbr.rel (%p262) target = $region24
        $region23: #{tpu_custom_call.1} parent=19 // pred_region
          %p265 = scmp.lt.s32.totalorder %s22, 1
          %s266 = scalar_select %p265, %s22, 1
          %s267 = smul.addr %s266, 4
          %s268 = smul.addr %s267, 4
          %s269 = scalar_lea.vmem %s1, %s268
        $region24: #{tpu_custom_call.1} parent=19 // pred_fallthru
          _
        // Predicated region
        $region25: #{tpu_custom_call.1} parent=19 // pred_check
          %p270 = pneg %p98
        $region26: #{tpu_custom_call.1} parent=19 // pred_check_branch
          %272 = sbr.rel (%p270) target = $region28
        $region27: #{tpu_custom_call.1} parent=19 // pred_region
          %p273 = scmp.lt.s32.totalorder %s22, 1
          %s274 = scalar_select %p273, %s22, 1
          %s275 = smul.addr %s274, 4
          %s276 = smul.addr %s275, 4
          %s277 = scalar_lea.vmem %s2, %s276
        $region28: #{tpu_custom_call.1} parent=19 // pred_fallthru
          _
        // Predicated region
        $region29: #{tpu_custom_call.1} parent=19 // pred_check
          %p278 = pneg %p124
        $region30: #{tpu_custom_call.1} parent=19 // pred_check_branch
          %280 = sbr.rel (%p278) target = $region32
        $region31: #{tpu_custom_call.1} parent=19 // pred_region
          %p281 = scmp.lt.s32.totalorder %s22, 1
          %s282 = scalar_select %p281, %s22, 1
          %s283 = smul.addr %s282, 4
          %s284 = smul.addr %s283, 4
          %s285 = scalar_lea.vmem %s3, %s284
        $region32: #{tpu_custom_call.1} parent=19 // pred_fallthru
          _
        // Predicated region
        $region33: #{tpu_custom_call.1} parent=19 // pred_check
          %p286 = pneg %p150
        $region34: #{tpu_custom_call.1} parent=19 // pred_check_branch
          %288 = sbr.rel (%p286) target = $region36
        $region35: #{tpu_custom_call.1} parent=19 // pred_region
          %p289 = scmp.lt.s32.totalorder %s22, 1
          %s290 = scalar_select %p289, %s22, 1
          %s291 = smul.addr %s290, 16
          %s292 = smul.addr %s291, 4
          %s293 = scalar_lea.vmem %s4, %s292
        $region36: #{tpu_custom_call.1} parent=19 // pred_fallthru
          _
        // Predicated region
        $region37: #{tpu_custom_call.1} parent=19 // pred_check
          %p294 = pneg %p176
        $region38: #{tpu_custom_call.1} parent=19 // pred_check_branch
          %296 = sbr.rel (%p294) target = $region40
        $region39: #{tpu_custom_call.1} parent=19 // pred_region
          %p297 = scmp.lt.s32.totalorder %s22, 1
          %s298 = scalar_select %p297, %s22, 1
          %s299 = smul.addr %s298, 2
          %s300 = smul.addr %s299, 8
          %s301 = scalar_lea.vmem %s5, %s300
        $region40: #{tpu_custom_call.1} parent=19 // pred_fallthru
          _
        // Predicated region
        $region41: #{tpu_custom_call.1} parent=19 // pred_check
          %p302 = pneg %p202
        $region42: #{tpu_custom_call.1} parent=19 // pred_check_branch
          %304 = sbr.rel (%p302) target = $region44
        $region43: #{tpu_custom_call.1} parent=19 // pred_region
          %p305 = scmp.lt.s32.totalorder %s22, 1
          %s306 = scalar_select %p305, %s22, 1
          %s307 = scalar_lea.vmem %s6, %s306
        $region44: #{tpu_custom_call.1} parent=19 // pred_fallthru
          _
      $region20: #{tpu_custom_call.1} parent=5 // pred_fallthru
        _
      %p308 = scmp.le.s32.totalorder 1, %s14
      %p309 = scmp.lt.s32.totalorder %s14, 3
      %p310 = pnand %p308, %p309
      %p311 = pneg %p310
      // Predicated region
      $region45: #{tpu_custom_call.1} parent=5 // pred_check
        _
      $region46: #{tpu_custom_call.1} parent=5 // pred_check_branch
        %313 = sbr.rel (%p310) target = $region48
      $region47: #{tpu_custom_call.1} parent=5 // pred_region
        %s314 = ssub.s32 %s14, 1
        %s315 = smul.u32 2, %s23
        %p316 = scmp.lt.s32.totalorder %s315, 1
        %s317 = scalar_select %p316, %s315, 1
        %s318 = smul.addr %s317, 8
        %s319 = scalar_lea.vmem %s0, %s318
        %p320 = pneg %p52
        %p321 = pneg %p49
        %p322 = scmp.lt.s32.totalorder %s24, 1
        %s323 = scalar_select %p322, %s24, 1
        %s324 = smul.addr %s323, 4
        %s325 = smul.addr %s324, 4
        %s326 = scalar_lea.vmem %s1, %s325
        %p327 = pneg %p78
        %p328 = pneg %p75
        %p329 = scmp.lt.s32.totalorder %s24, 1
        %s330 = scalar_select %p329, %s24, 1
        %s331 = smul.addr %s330, 4
        %s332 = smul.addr %s331, 4
        %s333 = scalar_lea.vmem %s2, %s332
        %p334 = pneg %p104
        %p335 = pneg %p101
        %p336 = scmp.lt.s32.totalorder %s24, 1
        %s337 = scalar_select %p336, %s24, 1
        %s338 = smul.addr %s337, 4
        %s339 = smul.addr %s338, 4
        %s340 = scalar_lea.vmem %s3, %s339
        %p341 = pneg %p130
        %p342 = pneg %p127
        %p343 = scmp.lt.s32.totalorder %s24, 1
        %s344 = scalar_select %p343, %s24, 1
        %s345 = smul.addr %s344, 16
        %s346 = smul.addr %s345, 4
        %s347 = scalar_lea.vmem %s4, %s346
        %p348 = pneg %p156
        %p349 = pneg %p153
        %p350 = scmp.lt.s32.totalorder %s24, 1
        %s351 = scalar_select %p350, %s24, 1
        %s352 = smul.addr %s351, 2
        %s353 = smul.addr %s352, 8
        %s354 = scalar_lea.vmem %s5, %s353
        %p355 = pneg %p182
        %p356 = pneg %p179
        %p357 = scmp.lt.s32.totalorder %s24, 1
        %s358 = scalar_select %p357, %s24, 1
        %s359 = scalar_lea.vmem %s6, %s358
        %p360 = pneg %p208
        %p361 = pneg %p205
        %p362 = pneg %p234
        %p363 = pneg %p231
        %s364 = smul.u32 2, %s23
        %p365 = scmp.lt.s32.totalorder %s364, 1
        %s366 = scalar_select %p365, %s364, 1
        %s367 = smul.addr %s366, 8
        %s368 = scalar_lea.vmem %s0, %s367
        %s369 = smul.u32 2, %s23
        %p370 = scmp.lt.s32.totalorder %s24, 1
        %s371 = scalar_select %p370, %s24, 1
        %s372 = smul.addr %s371, 4
        %s373 = smul.addr %s372, 4
        %s374 = scalar_lea.vmem %s1, %s373
        %p375 = scmp.lt.s32.totalorder %s24, 1
        %s376 = scalar_select %p375, %s24, 1
        %s377 = smul.addr %s376, 4
        %s378 = smul.addr %s377, 4
        %s379 = scalar_lea.vmem %s2, %s378
        %p380 = scmp.lt.s32.totalorder %s24, 1
        %s381 = scalar_select %p380, %s24, 1
        %s382 = smul.addr %s381, 4
        %s383 = smul.addr %s382, 4
        %s384 = scalar_lea.vmem %s3, %s383
        %p385 = scmp.lt.s32.totalorder %s24, 1
        %s386 = scalar_select %p385, %s24, 1
        %s387 = smul.addr %s386, 16
        %s388 = smul.addr %s387, 4
        %s389 = scalar_lea.vmem %s4, %s388
        %p390 = scmp.lt.s32.totalorder %s24, 1
        %s391 = scalar_select %p390, %s24, 1
        %s392 = smul.addr %s391, 2
        %s393 = smul.addr %s392, 8
        %s394 = scalar_lea.vmem %s5, %s393
        %p395 = scmp.lt.s32.totalorder %s24, 1
        %s396 = scalar_select %p395, %s24, 1
        %s397 = scalar_lea.vmem %s6, %s396
        %s398 = smul.u32 2, %s23
        %p400 = scmp.eq.s32.totalorder %s24, 0
        // Predicated region
        $region49: #{tpu_custom_call.1} parent=47 // pred_check
          %p401 = pneg %p400
        $region50: #{tpu_custom_call.1} parent=47 // pred_check_branch
          %403 = sbr.rel (%p401) target = $region52
        $region51: #{tpu_custom_call.1} parent=47 // pred_region
          %v404 = vld [vmem:[%s368] sm:$0xff]
          %v405 = vld [vmem:[%s368 + $0x8] sm:$0xff]
          %vm406 = vcmask 261120
          %407 = vst.msk [vmem:[#allocation2] sm:$0xff] %vm406, %v404
          %408 = vst.msk [vmem:[#allocation2 + $0x8] sm:$0xff] %vm406, %v405
        $region52: #{tpu_custom_call.1} parent=47 // pred_fallthru
          _
        %v409 = vld [vmem:[#allocation2] sm:$0xff]
        %v410 = vld [vmem:[#allocation2 + $0x8] sm:$0xff]
        %v411 = vpack.c.bf16 %v410, %v409
        %v412 = vld [vmem:[%s394] sm:$0xff]
        %v413 = vld [vmem:[%s394 + $0x8] sm:$0x1]
        %v414 = vld [vmem:[%s374] sm:$0xf]
        %v415 = vld [vmem:[%s374 + $0x4] sm:$0xf]
        %v416 = vld [vmem:[%s374 + $0x8] sm:$0xf]
        %v417 = vld [vmem:[%s374 + $0xc] sm:$0xf]
        %v422 = vunpack.c.l.b16 %v414
        %v423 = vunpack.c.l.b16 %v415
        %v424 = vunpack.c.l.b16 %v416
        %v425 = vunpack.c.l.b16 %v417
        %v426 = vpack.c.b16 %v423, %v422
        %v427 = vpack.c.b16 %v425, %v424
        %vm430 = vcmask 261120
        %v432 = vsel %vm430, %v411, 0
        %434 = vmatprep.subr.bf16.mxu0 0
        %435 = vmatpush1.bf16.msra.mxu0 %v426
        %436 = vmatprep.subr.bf16.mxu0 0
        %437 = vmatpush1.bf16.msra.mxu0 %v427
        %438 = vmatprep.subr.bf16.mxu0 0
        %439 = vmatpush1.bf16.msra.mxu0 0
        %440 = vmatprep.subr.bf16.mxu0 0
        %441 = vmatpush1.bf16.msra.mxu0 0
        %442 = vmatprep.subr.bf16.mxu0 0
        %443 = vmatpush1.bf16.msra.mxu0 0
        %444 = vmatprep.subr.bf16.mxu0 0
        %445 = vmatpush1.bf16.msra.mxu0 0
        %446 = vmatprep.subr.bf16.mxu0 0
        %447 = vmatpush1.bf16.msra.mxu0 0
        %448 = vmatprep.subr.bf16.mxu0 0
        %449 = vmatpush1.bf16.msra.mxu0 0
        %450 = vmatprep.subr.bf16.mxu0 0
        %451 = vmatpush1.bf16.msra.mxu0 0
        %452 = vmatprep.subr.bf16.mxu0 0
        %453 = vmatpush1.bf16.msra.mxu0 0
        %454 = vmatprep.subr.bf16.mxu0 0
        %455 = vmatpush1.bf16.msra.mxu0 0
        %456 = vmatprep.subr.bf16.mxu0 0
        %457 = vmatpush1.bf16.msra.mxu0 0
        %458 = vmatprep.subr.bf16.mxu0 0
        %459 = vmatpush1.bf16.msra.mxu0 0
        %460 = vmatprep.subr.bf16.mxu0 0
        %461 = vmatpush1.bf16.msra.mxu0 0
        %462 = vmatprep.subr.bf16.mxu0 0
        %463 = vmatpush1.bf16.msra.mxu0 0
        %464 = vmatprep.subr.bf16.mxu0 0
        %465 = vmatpush1.bf16.msra.mxu0 0
        %466 = vmatprep.mubr.bf16.mxu0 0
        %467 = vmatmul.mubr.bf16.gmra.mrb[0].mxu0 %v432
        %v468 = vpop.f32.mrb[0].mxu0
        %v469 = vadd.f32 0.0, %v468
        %v470 = vpop.f32.mrb[0].mxu0
        %v471 = vpop.f32.mrb[0].mxu0
        %v472 = vadd.f32 0.0, %v471
        %v473 = vpop.f32.mrb[0].mxu0
        %474 = vdwg.mxu0
        %v475 = vlaneseq
        %v476 = vshrl.u32 %v475, 7
        %v477 = vsub.s32 0, %v476
        %v478 = vrot.slane %v412, %v477
        %v479 = vadd.f32 %v469, %v478
        %v480 = vadd.f32 %v472, %v478
        %v481 = vlaneseq
        %v482 = vshrl.u32 %v481, 7
        %v483 = vsub.s32 1, %v482
        %v484 = vrot.slane %v412, %v483
        %486 = vrot.lane.b32.xlu0 %v484, 32
        %v487 = vpop.permute.xlu0 %486
        %v489 = vadd.f32 %v469, %v487
        %v490 = vadd.f32 %v472, %v487
        %v491 = vlaneseq
        %v492 = vshrl.u32 %v491, 7
        %v493 = vsub.s32 2, %v492
        %v494 = vrot.slane %v412, %v493
        %496 = vrot.lane.b32.xlu0 %v494, 64
        %v497 = vpop.permute.xlu0 %496
        %v499 = vadd.f32 %v469, %v497
        %v500 = vadd.f32 %v472, %v497
        %v501 = vpack.c.bf16 %v479, %v479
        %v502 = vpack.c.bf16 %v480, %v480
        %v503 = vpack.c.bf16 %v489, %v489
        %v504 = vpack.c.bf16 %v490, %v490
        %v505 = vpack.c.bf16 %v499, %v499
        %v506 = vpack.c.bf16 %v500, %v500
        %508 = vrot.lane.b32.xlu0 %v503, 96
        %v509 = vpop.permute.xlu0 %508
        %vm510 = vcmask 31744
        %v512 = vsel %vm510, %v501, 0
        %v515 = vsel %vm510, %v509, 0
        %517 = vmatprep.subr.bf16.mxu0 0
        %518 = vmatpush1.bf16.xpose.msra.mxu0 %v515
        %519 = vmatprep.subr.bf16.mxu0 0
        %520 = vmatpush1.bf16.xpose.msra.mxu0 0
        %521 = vmatprep.subr.bf16.mxu0 0
        %522 = vmatpush1.bf16.xpose.msra.mxu0 0
        %523 = vmatprep.subr.bf16.mxu0 0
        %524 = vmatpush1.bf16.xpose.msra.mxu0 0
        %525 = vmatprep.subr.bf16.mxu0 0
        %526 = vmatpush1.bf16.xpose.msra.mxu0 0
        %527 = vmatprep.subr.bf16.mxu0 0
        %528 = vmatpush1.bf16.xpose.msra.mxu0 0
        %529 = vmatprep.subr.bf16.mxu0 0
        %530 = vmatpush1.bf16.xpose.msra.mxu0 0
        %531 = vmatprep.subr.bf16.mxu0 0
        %532 = vmatpush1.bf16.xpose.msra.mxu0 0
        %533 = vmatprep.subr.bf16.mxu0 0
        %534 = vmatpush1.bf16.xpose.msra.mxu0 0
        %535 = vmatprep.subr.bf16.mxu0 0
        %536 = vmatpush1.bf16.xpose.msra.mxu0 0
        %537 = vmatprep.subr.bf16.mxu0 0
        %538 = vmatpush1.bf16.xpose.msra.mxu0 0
        %539 = vmatprep.subr.bf16.mxu0 0
        %540 = vmatpush1.bf16.xpose.msra.mxu0 0
        %541 = vmatprep.subr.bf16.mxu0 0
        %542 = vmatpush1.bf16.xpose.msra.mxu0 0
        %543 = vmatprep.subr.bf16.mxu0 0
        %544 = vmatpush1.bf16.xpose.msra.mxu0 0
        %545 = vmatprep.subr.bf16.mxu0 0
        %546 = vmatpush1.bf16.xpose.msra.mxu0 0
        %547 = vmatprep.subr.bf16.mxu0 0
        %548 = vmatpush1.bf16.xpose.msra.mxu0 0
        %549 = vmatprep.mubr.bf16.mxu0 0
        %550 = vmatmul.mubr.bf16.gmra.mrb[0].mxu0 %v512
        %v551 = vpop.f32.mrb[0].mxu0
        %v552 = vadd.f32 0.0, %v551
        %v553 = vpop.f32.mrb[0].mxu0
        %v554 = vpop.f32.mrb[0].mxu0
        %v555 = vpop.f32.mrb[0].mxu0
        %556 = vdwg.mxu0
        %558 = vrot.lane.b32.xlu0 %v504, 96
        %v559 = vpop.permute.xlu0 %558
        %v561 = vsel %vm510, %v502, 0
        %v564 = vsel %vm510, %v559, 0
        %566 = vmatprep.subr.bf16.mxu0 0
        %567 = vmatpush1.bf16.xpose.msra.mxu0 %v564
        %568 = vmatprep.subr.bf16.mxu0 0
        %569 = vmatpush1.bf16.xpose.msra.mxu0 0
        %570 = vmatprep.subr.bf16.mxu0 0
        %571 = vmatpush1.bf16.xpose.msra.mxu0 0
        %572 = vmatprep.subr.bf16.mxu0 0
        %573 = vmatpush1.bf16.xpose.msra.mxu0 0
        %574 = vmatprep.subr.bf16.mxu0 0
        %575 = vmatpush1.bf16.xpose.msra.mxu0 0
        %576 = vmatprep.subr.bf16.mxu0 0
        %577 = vmatpush1.bf16.xpose.msra.mxu0 0
        %578 = vmatprep.subr.bf16.mxu0 0
        %579 = vmatpush1.bf16.xpose.msra.mxu0 0
        %580 = vmatprep.subr.bf16.mxu0 0
        %581 = vmatpush1.bf16.xpose.msra.mxu0 0
        %582 = vmatprep.subr.bf16.mxu0 0
        %583 = vmatpush1.bf16.xpose.msra.mxu0 0
        %584 = vmatprep.subr.bf16.mxu0 0
        %585 = vmatpush1.bf16.xpose.msra.mxu0 0
        %586 = vmatprep.subr.bf16.mxu0 0
        %587 = vmatpush1.bf16.xpose.msra.mxu0 0
        %588 = vmatprep.subr.bf16.mxu0 0
        %589 = vmatpush1.bf16.xpose.msra.mxu0 0
        %590 = vmatprep.subr.bf16.mxu0 0
        %591 = vmatpush1.bf16.xpose.msra.mxu0 0
        %592 = vmatprep.subr.bf16.mxu0 0
        %593 = vmatpush1.bf16.xpose.msra.mxu0 0
        %594 = vmatprep.subr.bf16.mxu0 0
        %595 = vmatpush1.bf16.xpose.msra.mxu0 0
        %596 = vmatprep.subr.bf16.mxu0 0
        %597 = vmatpush1.bf16.xpose.msra.mxu0 0
        %598 = vmatprep.mubr.bf16.mxu0 0
        %599 = vmatmul.mubr.bf16.gmra.mrb[0].mxu0 %v561
        %v600 = vpop.f32.mrb[0].mxu0
        %v601 = vadd.f32 0.0, %v600
        %v602 = vpop.f32.mrb[0].mxu0
        %v603 = vpop.f32.mrb[0].mxu0
        %v604 = vpop.f32.mrb[0].mxu0
        %605 = vdwg.mxu0
        %vm606 = vcmask 64512
        %v607 = vsel %vm606, %v552, -inf
        %608 = vmax.xlane.f32.xlu0 %v607
        %v609 = vpop.xlane.xlu0 %608
        %v610 = vsel %vm606, %v601, -inf
        %611 = vmax.xlane.f32.xlu0 %v610
        %v612 = vpop.xlane.xlu0 %611
        %v613 = vsub.f32 %v552, %v609
        %v614 = vsub.f32 %v601, %v612
        %v615 = vmul.f32 %v613, 1.442695
        %v616 = vpow.pop %v615
        %v617 = vmul.f32 %v614, 1.442695
        %v618 = vpow.pop %v617
        %v619 = vsel %vm606, %v616, 0.0
        %620 = vadd.xlane.f32.xlu0 %v619
        %v621 = vpop.xlane.xlu0 %620
        %v622 = vsel %vm606, %v618, 0.0
        %623 = vadd.xlane.f32.xlu0 %v622
        %v624 = vpop.xlane.xlu0 %623
        %v625 = vrcp.pop %v621
        %v626 = vrcp.pop %v624
        %v627 = vmul.f32 %v616, %v625
        %v628 = vmul.f32 %v618, %v626
        %v629 = vpack.c.bf16 %v627, %v627
        %v630 = vpack.c.bf16 %v628, %v628
        %632 = vrot.lane.b32.xlu0 %v505, 64
        %v633 = vpop.permute.xlu0 %632
        %v635 = vsel %vm606, %v629, 0
        %vm637 = vcmask 1043456
        %v639 = vsel %vm637, %v633, 0
        %641 = vmatprep.subr.bf16.mxu0 0
        %642 = vmatpush1.bf16.msra.mxu0 %v639
        %643 = vmatprep.subr.bf16.mxu0 0
        %644 = vmatpush1.bf16.msra.mxu0 0
        %645 = vmatprep.subr.bf16.mxu0 0
        %646 = vmatpush1.bf16.msra.mxu0 0
        %647 = vmatprep.subr.bf16.mxu0 0
        %648 = vmatpush1.bf16.msra.mxu0 0
        %649 = vmatprep.subr.bf16.mxu0 0
        %650 = vmatpush1.bf16.msra.mxu0 0
        %651 = vmatprep.subr.bf16.mxu0 0
        %652 = vmatpush1.bf16.msra.mxu0 0
        %653 = vmatprep.subr.bf16.mxu0 0
        %654 = vmatpush1.bf16.msra.mxu0 0
        %655 = vmatprep.subr.bf16.mxu0 0
        %656 = vmatpush1.bf16.msra.mxu0 0
        %657 = vmatprep.subr.bf16.mxu0 0
        %658 = vmatpush1.bf16.msra.mxu0 0
        %659 = vmatprep.subr.bf16.mxu0 0
        %660 = vmatpush1.bf16.msra.mxu0 0
        %661 = vmatprep.subr.bf16.mxu0 0
        %662 = vmatpush1.bf16.msra.mxu0 0
        %663 = vmatprep.subr.bf16.mxu0 0
        %664 = vmatpush1.bf16.msra.mxu0 0
        %665 = vmatprep.subr.bf16.mxu0 0
        %666 = vmatpush1.bf16.msra.mxu0 0
        %667 = vmatprep.subr.bf16.mxu0 0
        %668 = vmatpush1.bf16.msra.mxu0 0
        %669 = vmatprep.subr.bf16.mxu0 0
        %670 = vmatpush1.bf16.msra.mxu0 0
        %671 = vmatprep.subr.bf16.mxu0 0
        %672 = vmatpush1.bf16.msra.mxu0 0
        %673 = vmatprep.mubr.bf16.mxu0 0
        %674 = vmatmul.mubr.bf16.gmra.mrb[0].mxu0 %v635
        %v675 = vpop.f32.mrb[0].mxu0
        %v676 = vadd.f32 0.0, %v675
        %v677 = vpop.f32.mrb[0].mxu0
        %v678 = vpop.f32.mrb[0].mxu0
        %v679 = vpop.f32.mrb[0].mxu0
        %680 = vdwg.mxu0
        %682 = vrot.lane.b32.xlu0 %v506, 64
        %v683 = vpop.permute.xlu0 %682
        %v685 = vsel %vm606, %v630, 0
        %v688 = vsel %vm637, %v683, 0
        %690 = vmatprep.subr.bf16.mxu0 0
        %691 = vmatpush1.bf16.msra.mxu0 %v688
        %692 = vmatprep.subr.bf16.mxu0 0
        %693 = vmatpush1.bf16.msra.mxu0 0
        %694 = vmatprep.subr.bf16.mxu0 0
        %695 = vmatpush1.bf16.msra.mxu0 0
        %696 = vmatprep.subr.bf16.mxu0 0
        %697 = vmatpush1.bf16.msra.mxu0 0
        %698 = vmatprep.subr.bf16.mxu0 0
        %699 = vmatpush1.bf16.msra.mxu0 0
        %700 = vmatprep.subr.bf16.mxu0 0
        %701 = vmatpush1.bf16.msra.mxu0 0
        %702 = vmatprep.subr.bf16.mxu0 0
        %703 = vmatpush1.bf16.msra.mxu0 0
        %704 = vmatprep.subr.bf16.mxu0 0
        %705 = vmatpush1.bf16.msra.mxu0 0
        %706 = vmatprep.subr.bf16.mxu0 0
        %707 = vmatpush1.bf16.msra.mxu0 0
        %708 = vmatprep.subr.bf16.mxu0 0
        %709 = vmatpush1.bf16.msra.mxu0 0
        %710 = vmatprep.subr.bf16.mxu0 0
        %711 = vmatpush1.bf16.msra.mxu0 0
        %712 = vmatprep.subr.bf16.mxu0 0
        %713 = vmatpush1.bf16.msra.mxu0 0
        %714 = vmatprep.subr.bf16.mxu0 0
        %715 = vmatpush1.bf16.msra.mxu0 0
        %716 = vmatprep.subr.bf16.mxu0 0
        %717 = vmatpush1.bf16.msra.mxu0 0
        %718 = vmatprep.subr.bf16.mxu0 0
        %719 = vmatpush1.bf16.msra.mxu0 0
        %720 = vmatprep.subr.bf16.mxu0 0
        %721 = vmatpush1.bf16.msra.mxu0 0
        %722 = vmatprep.mubr.bf16.mxu0 0
        %723 = vmatmul.mubr.bf16.gmra.mrb[0].mxu0 %v685
        %v724 = vpop.f32.mrb[0].mxu0
        %v725 = vadd.f32 0.0, %v724
        %v726 = vpop.f32.mrb[0].mxu0
        %v727 = vpop.f32.mrb[0].mxu0
        %v728 = vpop.f32.mrb[0].mxu0
        %729 = vdwg.mxu0
        %731 = vrot.lane.b32.xlu0 %v501, 124
        %v732 = vpop.permute.xlu0 %731
        %733 = vrot.lane.b32.xlu0 %v503, 92
        %v734 = vpop.permute.xlu0 %733
        %v736 = vsel %vm510, %v732, 0
        %v739 = vsel %vm510, %v734, 0
        %741 = vmatprep.subr.bf16.mxu0 0
        %742 = vmatpush1.bf16.xpose.msra.mxu0 %v739
        %743 = vmatprep.subr.bf16.mxu0 0
        %744 = vmatpush1.bf16.xpose.msra.mxu0 0
        %745 = vmatprep.subr.bf16.mxu0 0
        %746 = vmatpush1.bf16.xpose.msra.mxu0 0
        %747 = vmatprep.subr.bf16.mxu0 0
        %748 = vmatpush1.bf16.xpose.msra.mxu0 0
        %749 = vmatprep.subr.bf16.mxu0 0
        %750 = vmatpush1.bf16.xpose.msra.mxu0 0
        %751 = vmatprep.subr.bf16.mxu0 0
        %752 = vmatpush1.bf16.xpose.msra.mxu0 0
        %753 = vmatprep.subr.bf16.mxu0 0
        %754 = vmatpush1.bf16.xpose.msra.mxu0 0
        %755 = vmatprep.subr.bf16.mxu0 0
        %756 = vmatpush1.bf16.xpose.msra.mxu0 0
        %757 = vmatprep.subr.bf16.mxu0 0
        %758 = vmatpush1.bf16.xpose.msra.mxu0 0
        %759 = vmatprep.subr.bf16.mxu0 0
        %760 = vmatpush1.bf16.xpose.msra.mxu0 0
        %761 = vmatprep.subr.bf16.mxu0 0
        %762 = vmatpush1.bf16.xpose.msra.mxu0 0
        %763 = vmatprep.subr.bf16.mxu0 0
        %764 = vmatpush1.bf16.xpose.msra.mxu0 0
        %765 = vmatprep.subr.bf16.mxu0 0
        %766 = vmatpush1.bf16.xpose.msra.mxu0 0
        %767 = vmatprep.subr.bf16.mxu0 0
        %768 = vmatpush1.bf16.xpose.msra.mxu0 0
        %769 = vmatprep.subr.bf16.mxu0 0
        %770 = vmatpush1.bf16.xpose.msra.mxu0 0
        %771 = vmatprep.subr.bf16.mxu0 0
        %772 = vmatpush1.bf16.xpose.msra.mxu0 0
        %773 = vmatprep.mubr.bf16.mxu0 0
        %774 = vmatmul.mubr.bf16.gmra.mrb[0].mxu0 %v736
        %v775 = vpop.f32.mrb[0].mxu0
        %v776 = vadd.f32 0.0, %v775
        %v777 = vpop.f32.mrb[0].mxu0
        %v778 = vpop.f32.mrb[0].mxu0
        %v779 = vpop.f32.mrb[0].mxu0
        %780 = vdwg.mxu0
        %782 = vrot.lane.b32.xlu0 %v502, 124
        %v783 = vpop.permute.xlu0 %782
        %784 = vrot.lane.b32.xlu0 %v504, 92
        %v785 = vpop.permute.xlu0 %784
        %v787 = vsel %vm510, %v783, 0
        %v790 = vsel %vm510, %v785, 0
        %792 = vmatprep.subr.bf16.mxu0 0
        %793 = vmatpush1.bf16.xpose.msra.mxu0 %v790
        %794 = vmatprep.subr.bf16.mxu0 0
        %795 = vmatpush1.bf16.xpose.msra.mxu0 0
        %796 = vmatprep.subr.bf16.mxu0 0
        %797 = vmatpush1.bf16.xpose.msra.mxu0 0
        %798 = vmatprep.subr.bf16.mxu0 0
        %799 = vmatpush1.bf16.xpose.msra.mxu0 0
        %800 = vmatprep.subr.bf16.mxu0 0
        %801 = vmatpush1.bf16.xpose.msra.mxu0 0
        %802 = vmatprep.subr.bf16.mxu0 0
        %803 = vmatpush1.bf16.xpose.msra.mxu0 0
        %804 = vmatprep.subr.bf16.mxu0 0
        %805 = vmatpush1.bf16.xpose.msra.mxu0 0
        %806 = vmatprep.subr.bf16.mxu0 0
        %807 = vmatpush1.bf16.xpose.msra.mxu0 0
        %808 = vmatprep.subr.bf16.mxu0 0
        %809 = vmatpush1.bf16.xpose.msra.mxu0 0
        %810 = vmatprep.subr.bf16.mxu0 0
        %811 = vmatpush1.bf16.xpose.msra.mxu0 0
        %812 = vmatprep.subr.bf16.mxu0 0
        %813 = vmatpush1.bf16.xpose.msra.mxu0 0
        %814 = vmatprep.subr.bf16.mxu0 0
        %815 = vmatpush1.bf16.xpose.msra.mxu0 0
        %816 = vmatprep.subr.bf16.mxu0 0
        %817 = vmatpush1.bf16.xpose.msra.mxu0 0
        %818 = vmatprep.subr.bf16.mxu0 0
        %819 = vmatpush1.bf16.xpose.msra.mxu0 0
        %820 = vmatprep.subr.bf16.mxu0 0
        %821 = vmatpush1.bf16.xpose.msra.mxu0 0
        %822 = vmatprep.subr.bf16.mxu0 0
        %823 = vmatpush1.bf16.xpose.msra.mxu0 0
        %824 = vmatprep.mubr.bf16.mxu0 0
        %825 = vmatmul.mubr.bf16.gmra.mrb[0].mxu0 %v787
        %v826 = vpop.f32.mrb[0].mxu0
        %v827 = vadd.f32 0.0, %v826
        %v828 = vpop.f32.mrb[0].mxu0
        %v829 = vpop.f32.mrb[0].mxu0
        %v830 = vpop.f32.mrb[0].mxu0
        %831 = vdwg.mxu0
        %v832 = vsel %vm606, %v776, -inf
        %833 = vmax.xlane.f32.xlu0 %v832
        %v834 = vpop.xlane.xlu0 %833
        %v835 = vsel %vm606, %v827, -inf
        %836 = vmax.xlane.f32.xlu0 %v835
        %v837 = vpop.xlane.xlu0 %836
        %v838 = vsub.f32 %v776, %v834
        %v839 = vsub.f32 %v827, %v837
        %v840 = vmul.f32 %v838, 1.442695
        %v841 = vpow.pop %v840
        %v842 = vmul.f32 %v839, 1.442695
        %v843 = vpow.pop %v842
        %v844 = vsel %vm606, %v841, 0.0
        %845 = vadd.xlane.f32.xlu0 %v844
        %v846 = vpop.xlane.xlu0 %845
        %v847 = vsel %vm606, %v843, 0.0
        %848 = vadd.xlane.f32.xlu0 %v847
        %v849 = vpop.xlane.xlu0 %848
        %v850 = vrcp.pop %v846
        %v851 = vrcp.pop %v849
        %v852 = vmul.f32 %v841, %v850
        %v853 = vmul.f32 %v843, %v851
        %v854 = vpack.c.bf16 %v852, %v852
        %v855 = vpack.c.bf16 %v853, %v853
        %856 = vrot.lane.b32.xlu0 %v505, 60
        %v857 = vpop.permute.xlu0 %856
        %v859 = vsel %vm606, %v854, 0
        %v862 = vsel %vm637, %v857, 0
        %864 = vmatprep.subr.bf16.mxu0 0
        %865 = vmatpush1.bf16.msra.mxu0 %v862
        %866 = vmatprep.subr.bf16.mxu0 0
        %867 = vmatpush1.bf16.msra.mxu0 0
        %868 = vmatprep.subr.bf16.mxu0 0
        %869 = vmatpush1.bf16.msra.mxu0 0
        %870 = vmatprep.subr.bf16.mxu0 0
        %871 = vmatpush1.bf16.msra.mxu0 0
        %872 = vmatprep.subr.bf16.mxu0 0
        %873 = vmatpush1.bf16.msra.mxu0 0
        %874 = vmatprep.subr.bf16.mxu0 0
        %875 = vmatpush1.bf16.msra.mxu0 0
        %876 = vmatprep.subr.bf16.mxu0 0
        %877 = vmatpush1.bf16.msra.mxu0 0
        %878 = vmatprep.subr.bf16.mxu0 0
        %879 = vmatpush1.bf16.msra.mxu0 0
        %880 = vmatprep.subr.bf16.mxu0 0
        %881 = vmatpush1.bf16.msra.mxu0 0
        %882 = vmatprep.subr.bf16.mxu0 0
        %883 = vmatpush1.bf16.msra.mxu0 0
        %884 = vmatprep.subr.bf16.mxu0 0
        %885 = vmatpush1.bf16.msra.mxu0 0
        %886 = vmatprep.subr.bf16.mxu0 0
        %887 = vmatpush1.bf16.msra.mxu0 0
        %888 = vmatprep.subr.bf16.mxu0 0
        %889 = vmatpush1.bf16.msra.mxu0 0
        %890 = vmatprep.subr.bf16.mxu0 0
        %891 = vmatpush1.bf16.msra.mxu0 0
        %892 = vmatprep.subr.bf16.mxu0 0
        %893 = vmatpush1.bf16.msra.mxu0 0
        %894 = vmatprep.subr.bf16.mxu0 0
        %895 = vmatpush1.bf16.msra.mxu0 0
        %896 = vmatprep.mubr.bf16.mxu0 0
        %897 = vmatmul.mubr.bf16.gmra.mrb[0].mxu0 %v859
        %v898 = vpop.f32.mrb[0].mxu0
        %v899 = vadd.f32 0.0, %v898
        %v900 = vpop.f32.mrb[0].mxu0
        %v901 = vpop.f32.mrb[0].mxu0
        %v902 = vpop.f32.mrb[0].mxu0
        %903 = vdwg.mxu0
        %904 = vrot.lane.b32.xlu0 %v506, 60
        %v905 = vpop.permute.xlu0 %904
        %v907 = vsel %vm606, %v855, 0
        %v910 = vsel %vm637, %v905, 0
        %912 = vmatprep.subr.bf16.mxu0 0
        %913 = vmatpush1.bf16.msra.mxu0 %v910
        %914 = vmatprep.subr.bf16.mxu0 0
        %915 = vmatpush1.bf16.msra.mxu0 0
        %916 = vmatprep.subr.bf16.mxu0 0
        %917 = vmatpush1.bf16.msra.mxu0 0
        %918 = vmatprep.subr.bf16.mxu0 0
        %919 = vmatpush1.bf16.msra.mxu0 0
        %920 = vmatprep.subr.bf16.mxu0 0
        %921 = vmatpush1.bf16.msra.mxu0 0
        %922 = vmatprep.subr.bf16.mxu0 0
        %923 = vmatpush1.bf16.msra.mxu0 0
        %924 = vmatprep.subr.bf16.mxu0 0
        %925 = vmatpush1.bf16.msra.mxu0 0
        %926 = vmatprep.subr.bf16.mxu0 0
        %927 = vmatpush1.bf16.msra.mxu0 0
        %928 = vmatprep.subr.bf16.mxu0 0
        %929 = vmatpush1.bf16.msra.mxu0 0
        %930 = vmatprep.subr.bf16.mxu0 0
        %931 = vmatpush1.bf16.msra.mxu0 0
        %932 = vmatprep.subr.bf16.mxu0 0
        %933 = vmatpush1.bf16.msra.mxu0 0
        %934 = vmatprep.subr.bf16.mxu0 0
        %935 = vmatpush1.bf16.msra.mxu0 0
        %936 = vmatprep.subr.bf16.mxu0 0
        %937 = vmatpush1.bf16.msra.mxu0 0
        %938 = vmatprep.subr.bf16.mxu0 0
        %939 = vmatpush1.bf16.msra.mxu0 0
        %940 = vmatprep.subr.bf16.mxu0 0
        %941 = vmatpush1.bf16.msra.mxu0 0
        %942 = vmatprep.subr.bf16.mxu0 0
        %943 = vmatpush1.bf16.msra.mxu0 0
        %944 = vmatprep.mubr.bf16.mxu0 0
        %945 = vmatmul.mubr.bf16.gmra.mrb[0].mxu0 %v907
        %v946 = vpop.f32.mrb[0].mxu0
        %v947 = vadd.f32 0.0, %v946
        %v948 = vpop.f32.mrb[0].mxu0
        %v949 = vpop.f32.mrb[0].mxu0
        %v950 = vpop.f32.mrb[0].mxu0
        %951 = vdwg.mxu0
        %952 = vrot.lane.b32.xlu0 %v501, 120
        %v953 = vpop.permute.xlu0 %952
        %954 = vrot.lane.b32.xlu0 %v503, 88
        %v955 = vpop.permute.xlu0 %954
        %v957 = vsel %vm510, %v953, 0
        %v960 = vsel %vm510, %v955, 0
        %962 = vmatprep.subr.bf16.mxu0 0
        %963 = vmatpush1.bf16.xpose.msra.mxu0 %v960
        %964 = vmatprep.subr.bf16.mxu0 0
        %965 = vmatpush1.bf16.xpose.msra.mxu0 0
        %966 = vmatprep.subr.bf16.mxu0 0
        %967 = vmatpush1.bf16.xpose.msra.mxu0 0
        %968 = vmatprep.subr.bf16.mxu0 0
        %969 = vmatpush1.bf16.xpose.msra.mxu0 0
        %970 = vmatprep.subr.bf16.mxu0 0
        %971 = vmatpush1.bf16.xpose.msra.mxu0 0
        %972 = vmatprep.subr.bf16.mxu0 0
        %973 = vmatpush1.bf16.xpose.msra.mxu0 0
        %974 = vmatprep.subr.bf16.mxu0 0
        %975 = vmatpush1.bf16.xpose.msra.mxu0 0
        %976 = vmatprep.subr.bf16.mxu0 0
        %977 = vmatpush1.bf16.xpose.msra.mxu0 0
        %978 = vmatprep.subr.bf16.mxu0 0
        %979 = vmatpush1.bf16.xpose.msra.mxu0 0
        %980 = vmatprep.subr.bf16.mxu0 0
        %981 = vmatpush1.bf16.xpose.msra.mxu0 0
        %982 = vmatprep.subr.bf16.mxu0 0
        %983 = vmatpush1.bf16.xpose.msra.mxu0 0
        %984 = vmatprep.subr.bf16.mxu0 0
        %985 = vmatpush1.bf16.xpose.msra.mxu0 0
        %986 = vmatprep.subr.bf16.mxu0 0
        %987 = vmatpush1.bf16.xpose.msra.mxu0 0
        %988 = vmatprep.subr.bf16.mxu0 0
        %989 = vmatpush1.bf16.xpose.msra.mxu0 0
        %990 = vmatprep.subr.bf16.mxu0 0
        %991 = vmatpush1.bf16.xpose.msra.mxu0 0
        %992 = vmatprep.subr.bf16.mxu0 0
        %993 = vmatpush1.bf16.xpose.msra.mxu0 0
        %994 = vmatprep.mubr.bf16.mxu0 0
        %995 = vmatmul.mubr.bf16.gmra.mrb[0].mxu0 %v957
        %v996 = vpop.f32.mrb[0].mxu0
        %v997 = vadd.f32 0.0, %v996
        %v998 = vpop.f32.mrb[0].mxu0
        %v999 = vpop.f32.mrb[0].mxu0
        %v1000 = vpop.f32.mrb[0].mxu0
        %1001 = vdwg.mxu0
        %1002 = vrot.lane.b32.xlu0 %v502, 120
        %v1003 = vpop.permute.xlu0 %1002
        %1004 = vrot.lane.b32.xlu0 %v504, 88
        %v1005 = vpop.permute.xlu0 %1004
        %v1007 = vsel %vm510, %v1003, 0
        %v1010 = vsel %vm510, %v1005, 0
        %1012 = vmatprep.subr.bf16.mxu0 0
        %1013 = vmatpush1.bf16.xpose.msra.mxu0 %v1010
        %1014 = vmatprep.subr.bf16.mxu0 0
        %1015 = vmatpush1.bf16.xpose.msra.mxu0 0
        %1016 = vmatprep.subr.bf16.mxu0 0
        %1017 = vmatpush1.bf16.xpose.msra.mxu0 0
        %1018 = vmatprep.subr.bf16.mxu0 0
        %1019 = vmatpush1.bf16.xpose.msra.mxu0 0
        %1020 = vmatprep.subr.bf16.mxu0 0
        %1021 = vmatpush1.bf16.xpose.msra.mxu0 0
        %1022 = vmatprep.subr.bf16.mxu0 0
        %1023 = vmatpush1.bf16.xpose.msra.mxu0 0
        %1024 = vmatprep.subr.bf16.mxu0 0
        %1025 = vmatpush1.bf16.xpose.msra.mxu0 0
        %1026 = vmatprep.subr.bf16.mxu0 0
        %1027 = vmatpush1.bf16.xpose.msra.mxu0 0
        %1028 = vmatprep.subr.bf16.mxu0 0
        %1029 = vmatpush1.bf16.xpose.msra.mxu0 0
        %1030 = vmatprep.subr.bf16.mxu0 0
        %1031 = vmatpush1.bf16.xpose.msra.mxu0 0
        %1032 = vmatprep.subr.bf16.mxu0 0
        %1033 = vmatpush1.bf16.xpose.msra.mxu0 0
        %1034 = vmatprep.subr.bf16.mxu0 0
        %1035 = vmatpush1.bf16.xpose.msra.mxu0 0
        %1036 = vmatprep.subr.bf16.mxu0 0
        %1037 = vmatpush1.bf16.xpose.msra.mxu0 0
        %1038 = vmatprep.subr.bf16.mxu0 0
        %1039 = vmatpush1.bf16.xpose.msra.mxu0 0
        %1040 = vmatprep.subr.bf16.mxu0 0
        %1041 = vmatpush1.bf16.xpose.msra.mxu0 0
        %1042 = vmatprep.subr.bf16.mxu0 0
        %1043 = vmatpush1.bf16.xpose.msra.mxu0 0
        %1044 = vmatprep.mubr.bf16.mxu0 0
        %1045 = vmatmul.mubr.bf16.gmra.mrb[0].mxu0 %v1007
        %v1046 = vpop.f32.mrb[0].mxu0
        %v1047 = vadd.f32 0.0, %v1046
        %v1048 = vpop.f32.mrb[0].mxu0
        %v1049 = vpop.f32.mrb[0].mxu0
        %v1050 = vpop.f32.mrb[0].mxu0
        %1051 = vdwg.mxu0
        %v1052 = vsel %vm606, %v997, -inf
        %1053 = vmax.xlane.f32.xlu0 %v1052
        %v1054 = vpop.xlane.xlu0 %1053
        %v1055 = vsel %vm606, %v1047, -inf
        %1056 = vmax.xlane.f32.xlu0 %v1055
        %v1057 = vpop.xlane.xlu0 %1056
        %v1058 = vsub.f32 %v997, %v1054
        %v1059 = vsub.f32 %v1047, %v1057
        %v1060 = vmul.f32 %v1058, 1.442695
        %v1061 = vpow.pop %v1060
        %v1062 = vmul.f32 %v1059, 1.442695
        %v1063 = vpow.pop %v1062
        %v1064 = vsel %vm606, %v1061, 0.0
        %1065 = vadd.xlane.f32.xlu0 %v1064
        %v1066 = vpop.xlane.xlu0 %1065
        %v1067 = vsel %vm606, %v1063, 0.0
        %1068 = vadd.xlane.f32.xlu0 %v1067
        %v1069 = vpop.xlane.xlu0 %1068
        %v1070 = vrcp.pop %v1066
        %v1071 = vrcp.pop %v1069
        %v1072 = vmul.f32 %v1061, %v1070
        %v1073 = vmul.f32 %v1063, %v1071
        %v1074 = vpack.c.bf16 %v1072, %v1072
        %v1075 = vpack.c.bf16 %v1073, %v1073
        %1076 = vrot.lane.b32.xlu0 %v505, 56
        %v1077 = vpop.permute.xlu0 %1076
        %v1079 = vsel %vm606, %v1074, 0
        %v1082 = vsel %vm637, %v1077, 0
        %1084 = vmatprep.subr.bf16.mxu0 0
        %1085 = vmatpush1.bf16.msra.mxu0 %v1082
        %1086 = vmatprep.subr.bf16.mxu0 0
        %1087 = vmatpush1.bf16.msra.mxu0 0
        %1088 = vmatprep.subr.bf16.mxu0 0
        %1089 = vmatpush1.bf16.msra.mxu0 0
        %1090 = vmatprep.subr.bf16.mxu0 0
        %1091 = vmatpush1.bf16.msra.mxu0 0
        %1092 = vmatprep.subr.bf16.mxu0 0
        %1093 = vmatpush1.bf16.msra.mxu0 0
        %1094 = vmatprep.subr.bf16.mxu0 0
        %1095 = vmatpush1.bf16.msra.mxu0 0
        %1096 = vmatprep.subr.bf16.mxu0 0
        %1097 = vmatpush1.bf16.msra.mxu0 0
        %1098 = vmatprep.subr.bf16.mxu0 0
        %1099 = vmatpush1.bf16.msra.mxu0 0
        %1100 = vmatprep.subr.bf16.mxu0 0
        %1101 = vmatpush1.bf16.msra.mxu0 0
        %1102 = vmatprep.subr.bf16.mxu0 0
        %1103 = vmatpush1.bf16.msra.mxu0 0
        %1104 = vmatprep.subr.bf16.mxu0 0
        %1105 = vmatpush1.bf16.msra.mxu0 0
        %1106 = vmatprep.subr.bf16.mxu0 0
        %1107 = vmatpush1.bf16.msra.mxu0 0
        %1108 = vmatprep.subr.bf16.mxu0 0
        %1109 = vmatpush1.bf16.msra.mxu0 0
        %1110 = vmatprep.subr.bf16.mxu0 0
        %1111 = vmatpush1.bf16.msra.mxu0 0
        %1112 = vmatprep.subr.bf16.mxu0 0
        %1113 = vmatpush1.bf16.msra.mxu0 0
        %1114 = vmatprep.subr.bf16.mxu0 0
        %1115 = vmatpush1.bf16.msra.mxu0 0
        %1116 = vmatprep.mubr.bf16.mxu0 0
        %1117 = vmatmul.mubr.bf16.gmra.mrb[0].mxu0 %v1079
        %v1118 = vpop.f32.mrb[0].mxu0
        %v1119 = vadd.f32 0.0, %v1118
        %v1120 = vpop.f32.mrb[0].mxu0
        %v1121 = vpop.f32.mrb[0].mxu0
        %v1122 = vpop.f32.mrb[0].mxu0
        %1123 = vdwg.mxu0
        %1124 = vrot.lane.b32.xlu0 %v506, 56
        %v1125 = vpop.permute.xlu0 %1124
        %v1127 = vsel %vm606, %v1075, 0
        %v1130 = vsel %vm637, %v1125, 0
        %1132 = vmatprep.subr.bf16.mxu0 0
        %1133 = vmatpush1.bf16.msra.mxu0 %v1130
        %1134 = vmatprep.subr.bf16.mxu0 0
        %1135 = vmatpush1.bf16.msra.mxu0 0
        %1136 = vmatprep.subr.bf16.mxu0 0
        %1137 = vmatpush1.bf16.msra.mxu0 0
        %1138 = vmatprep.subr.bf16.mxu0 0
        %1139 = vmatpush1.bf16.msra.mxu0 0
        %1140 = vmatprep.subr.bf16.mxu0 0
        %1141 = vmatpush1.bf16.msra.mxu0 0
        %1142 = vmatprep.subr.bf16.mxu0 0
        %1143 = vmatpush1.bf16.msra.mxu0 0
        %1144 = vmatprep.subr.bf16.mxu0 0
        %1145 = vmatpush1.bf16.msra.mxu0 0
        %1146 = vmatprep.subr.bf16.mxu0 0
        %1147 = vmatpush1.bf16.msra.mxu0 0
        %1148 = vmatprep.subr.bf16.mxu0 0
        %1149 = vmatpush1.bf16.msra.mxu0 0
        %1150 = vmatprep.subr.bf16.mxu0 0
        %1151 = vmatpush1.bf16.msra.mxu0 0
        %1152 = vmatprep.subr.bf16.mxu0 0
        %1153 = vmatpush1.bf16.msra.mxu0 0
        %1154 = vmatprep.subr.bf16.mxu0 0
        %1155 = vmatpush1.bf16.msra.mxu0 0
        %1156 = vmatprep.subr.bf16.mxu0 0
        %1157 = vmatpush1.bf16.msra.mxu0 0
        %1158 = vmatprep.subr.bf16.mxu0 0
        %1159 = vmatpush1.bf16.msra.mxu0 0
        %1160 = vmatprep.subr.bf16.mxu0 0
        %1161 = vmatpush1.bf16.msra.mxu0 0
        %1162 = vmatprep.subr.bf16.mxu0 0
        %1163 = vmatpush1.bf16.msra.mxu0 0
        %1164 = vmatprep.mubr.bf16.mxu0 0
        %1165 = vmatmul.mubr.bf16.gmra.mrb[0].mxu0 %v1127
        %v1166 = vpop.f32.mrb[0].mxu0
        %v1167 = vadd.f32 0.0, %v1166
        %v1168 = vpop.f32.mrb[0].mxu0
        %v1169 = vpop.f32.mrb[0].mxu0
        %v1170 = vpop.f32.mrb[0].mxu0
        %1171 = vdwg.mxu0
        %1172 = vrot.lane.b32.xlu0 %v501, 116
        %v1173 = vpop.permute.xlu0 %1172
        %1174 = vrot.lane.b32.xlu0 %v503, 84
        %v1175 = vpop.permute.xlu0 %1174
        %v1177 = vsel %vm510, %v1173, 0
        %v1180 = vsel %vm510, %v1175, 0
        %1182 = vmatprep.subr.bf16.mxu0 0
        %1183 = vmatpush1.bf16.xpose.msra.mxu0 %v1180
        %1184 = vmatprep.subr.bf16.mxu0 0
        %1185 = vmatpush1.bf16.xpose.msra.mxu0 0
        %1186 = vmatprep.subr.bf16.mxu0 0
        %1187 = vmatpush1.bf16.xpose.msra.mxu0 0
        %1188 = vmatprep.subr.bf16.mxu0 0
        %1189 = vmatpush1.bf16.xpose.msra.mxu0 0
        %1190 = vmatprep.subr.bf16.mxu0 0
        %1191 = vmatpush1.bf16.xpose.msra.mxu0 0
        %1192 = vmatprep.subr.bf16.mxu0 0
        %1193 = vmatpush1.bf16.xpose.msra.mxu0 0
        %1194 = vmatprep.subr.bf16.mxu0 0
        %1195 = vmatpush1.bf16.xpose.msra.mxu0 0
        %1196 = vmatprep.subr.bf16.mxu0 0
        %1197 = vmatpush1.bf16.xpose.msra.mxu0 0
        %1198 = vmatprep.subr.bf16.mxu0 0
        %1199 = vmatpush1.bf16.xpose.msra.mxu0 0
        %1200 = vmatprep.subr.bf16.mxu0 0
        %1201 = vmatpush1.bf16.xpose.msra.mxu0 0
        %1202 = vmatprep.subr.bf16.mxu0 0
        %1203 = vmatpush1.bf16.xpose.msra.mxu0 0
        %1204 = vmatprep.subr.bf16.mxu0 0
        %1205 = vmatpush1.bf16.xpose.msra.mxu0 0
        %1206 = vmatprep.subr.bf16.mxu0 0
        %1207 = vmatpush1.bf16.xpose.msra.mxu0 0
        %1208 = vmatprep.subr.bf16.mxu0 0
        %1209 = vmatpush1.bf16.xpose.msra.mxu0 0
        %1210 = vmatprep.subr.bf16.mxu0 0
        %1211 = vmatpush1.bf16.xpose.msra.mxu0 0
        %1212 = vmatprep.subr.bf16.mxu0 0
        %1213 = vmatpush1.bf16.xpose.msra.mxu0 0
        %1214 = vmatprep.mubr.bf16.mxu0 0
        %1215 = vmatmul.mubr.bf16.gmra.mrb[0].mxu0 %v1177
        %v1216 = vpop.f32.mrb[0].mxu0
        %v1217 = vadd.f32 0.0, %v1216
        %v1218 = vpop.f32.mrb[0].mxu0
        %v1219 = vpop.f32.mrb[0].mxu0
        %v1220 = vpop.f32.mrb[0].mxu0
        %1221 = vdwg.mxu0
        %1222 = vrot.lane.b32.xlu0 %v502, 116
        %v1223 = vpop.permute.xlu0 %1222
        %1224 = vrot.lane.b32.xlu0 %v504, 84
        %v1225 = vpop.permute.xlu0 %1224
        %v1227 = vsel %vm510, %v1223, 0
        %v1230 = vsel %vm510, %v1225, 0
        %1232 = vmatprep.subr.bf16.mxu0 0
        %1233 = vmatpush1.bf16.xpose.msra.mxu0 %v1230
        %1234 = vmatprep.subr.bf16.mxu0 0
        %1235 = vmatpush1.bf16.xpose.msra.mxu0 0
        %1236 = vmatprep.subr.bf16.mxu0 0
        %1237 = vmatpush1.bf16.xpose.msra.mxu0 0
        %1238 = vmatprep.subr.bf16.mxu0 0
        %1239 = vmatpush1.bf16.xpose.msra.mxu0 0
        %1240 = vmatprep.subr.bf16.mxu0 0
        %1241 = vmatpush1.bf16.xpose.msra.mxu0 0
        %1242 = vmatprep.subr.bf16.mxu0 0
        %1243 = vmatpush1.bf16.xpose.msra.mxu0 0
        %1244 = vmatprep.subr.bf16.mxu0 0
        %1245 = vmatpush1.bf16.xpose.msra.mxu0 0
        %1246 = vmatprep.subr.bf16.mxu0 0
        %1247 = vmatpush1.bf16.xpose.msra.mxu0 0
        %1248 = vmatprep.subr.bf16.mxu0 0
        %1249 = vmatpush1.bf16.xpose.msra.mxu0 0
        %1250 = vmatprep.subr.bf16.mxu0 0
        %1251 = vmatpush1.bf16.xpose.msra.mxu0 0
        %1252 = vmatprep.subr.bf16.mxu0 0
        %1253 = vmatpush1.bf16.xpose.msra.mxu0 0
        %1254 = vmatprep.subr.bf16.mxu0 0
        %1255 = vmatpush1.bf16.xpose.msra.mxu0 0
        %1256 = vmatprep.subr.bf16.mxu0 0
        %1257 = vmatpush1.bf16.xpose.msra.mxu0 0
        %1258 = vmatprep.subr.bf16.mxu0 0
        %1259 = vmatpush1.bf16.xpose.msra.mxu0 0
        %1260 = vmatprep.subr.bf16.mxu0 0
        %1261 = vmatpush1.bf16.xpose.msra.mxu0 0
        %1262 = vmatprep.subr.bf16.mxu0 0
        %1263 = vmatpush1.bf16.xpose.msra.mxu0 0
        %1264 = vmatprep.mubr.bf16.mxu0 0
        %1265 = vmatmul.mubr.bf16.gmra.mrb[0].mxu0 %v1227
        %v1266 = vpop.f32.mrb[0].mxu0
        %v1267 = vadd.f32 0.0, %v1266
        %v1268 = vpop.f32.mrb[0].mxu0
        %v1269 = vpop.f32.mrb[0].mxu0
        %v1270 = vpop.f32.mrb[0].mxu0
        %1271 = vdwg.mxu0
        %v1272 = vsel %vm606, %v1217, -inf
        %1273 = vmax.xlane.f32.xlu0 %v1272
        %v1274 = vpop.xlane.xlu0 %1273
        %v1275 = vsel %vm606, %v1267, -inf
        %1276 = vmax.xlane.f32.xlu0 %v1275
        %v1277 = vpop.xlane.xlu0 %1276
        %v1278 = vsub.f32 %v1217, %v1274
        %v1279 = vsub.f32 %v1267, %v1277
        %v1280 = vmul.f32 %v1278, 1.442695
        %v1281 = vpow.pop %v1280
        %v1282 = vmul.f32 %v1279, 1.442695
        %v1283 = vpow.pop %v1282
        %v1284 = vsel %vm606, %v1281, 0.0
        %1285 = vadd.xlane.f32.xlu0 %v1284
        %v1286 = vpop.xlane.xlu0 %1285
        %v1287 = vsel %vm606, %v1283, 0.0
        %1288 = vadd.xlane.f32.xlu0 %v1287
        %v1289 = vpop.xlane.xlu0 %1288
        %v1290 = vrcp.pop %v1286
        %v1291 = vrcp.pop %v1289
        %v1292 = vmul.f32 %v1281, %v1290
        %v1293 = vmul.f32 %v1283, %v1291
        %v1294 = vpack.c.bf16 %v1292, %v1292
        %v1295 = vpack.c.bf16 %v1293, %v1293
        %1296 = vrot.lane.b32.xlu0 %v505, 52
        %v1297 = vpop.permute.xlu0 %1296
        %v1299 = vsel %vm606, %v1294, 0
        %v1302 = vsel %vm637, %v1297, 0
        %1304 = vmatprep.subr.bf16.mxu0 0
        %1305 = vmatpush1.bf16.msra.mxu0 %v1302
        %1306 = vmatprep.subr.bf16.mxu0 0
        %1307 = vmatpush1.bf16.msra.mxu0 0
        %1308 = vmatprep.subr.bf16.mxu0 0
        %1309 = vmatpush1.bf16.msra.mxu0 0
        %1310 = vmatprep.subr.bf16.mxu0 0
        %1311 = vmatpush1.bf16.msra.mxu0 0
        %1312 = vmatprep.subr.bf16.mxu0 0
        %1313 = vmatpush1.bf16.msra.mxu0 0
        %1314 = vmatprep.subr.bf16.mxu0 0
        %1315 = vmatpush1.bf16.msra.mxu0 0
        %1316 = vmatprep.subr.bf16.mxu0 0
        %1317 = vmatpush1.bf16.msra.mxu0 0
        %1318 = vmatprep.subr.bf16.mxu0 0
        %1319 = vmatpush1.bf16.msra.mxu0 0
        %1320 = vmatprep.subr.bf16.mxu0 0
        %1321 = vmatpush1.bf16.msra.mxu0 0
        %1322 = vmatprep.subr.bf16.mxu0 0
        %1323 = vmatpush1.bf16.msra.mxu0 0
        %1324 = vmatprep.subr.bf16.mxu0 0
        %1325 = vmatpush1.bf16.msra.mxu0 0
        %1326 = vmatprep.subr.bf16.mxu0 0
        %1327 = vmatpush1.bf16.msra.mxu0 0
        %1328 = vmatprep.subr.bf16.mxu0 0
        %1329 = vmatpush1.bf16.msra.mxu0 0
        %1330 = vmatprep.subr.bf16.mxu0 0
        %1331 = vmatpush1.bf16.msra.mxu0 0
        %1332 = vmatprep.subr.bf16.mxu0 0
        %1333 = vmatpush1.bf16.msra.mxu0 0
        %1334 = vmatprep.subr.bf16.mxu0 0
        %1335 = vmatpush1.bf16.msra.mxu0 0
        %1336 = vmatprep.mubr.bf16.mxu0 0
        %1337 = vmatmul.mubr.bf16.gmra.mrb[0].mxu0 %v1299
        %v1338 = vpop.f32.mrb[0].mxu0
        %v1339 = vadd.f32 0.0, %v1338
        %v1340 = vpop.f32.mrb[0].mxu0
        %v1341 = vpop.f32.mrb[0].mxu0
        %v1342 = vpop.f32.mrb[0].mxu0
        %1343 = vdwg.mxu0
        %1344 = vrot.lane.b32.xlu0 %v506, 52
        %v1345 = vpop.permute.xlu0 %1344
        %v1347 = vsel %vm606, %v1295, 0
        %v1350 = vsel %vm637, %v1345, 0
        %1352 = vmatprep.subr.bf16.mxu0 0
        %1353 = vmatpush1.bf16.msra.mxu0 %v1350
        %1354 = vmatprep.subr.bf16.mxu0 0
        %1355 = vmatpush1.bf16.msra.mxu0 0
        %1356 = vmatprep.subr.bf16.mxu0 0
        %1357 = vmatpush1.bf16.msra.mxu0 0
        %1358 = vmatprep.subr.bf16.mxu0 0
        %1359 = vmatpush1.bf16.msra.mxu0 0
        %1360 = vmatprep.subr.bf16.mxu0 0
        %1361 = vmatpush1.bf16.msra.mxu0 0
        %1362 = vmatprep.subr.bf16.mxu0 0
        %1363 = vmatpush1.bf16.msra.mxu0 0
        %1364 = vmatprep.subr.bf16.mxu0 0
        %1365 = vmatpush1.bf16.msra.mxu0 0
        %1366 = vmatprep.subr.bf16.mxu0 0
        %1367 = vmatpush1.bf16.msra.mxu0 0
        %1368 = vmatprep.subr.bf16.mxu0 0
        %1369 = vmatpush1.bf16.msra.mxu0 0
        %1370 = vmatprep.subr.bf16.mxu0 0
        %1371 = vmatpush1.bf16.msra.mxu0 0
        %1372 = vmatprep.subr.bf16.mxu0 0
        %1373 = vmatpush1.bf16.msra.mxu0 0
        %1374 = vmatprep.subr.bf16.mxu0 0
        %1375 = vmatpush1.bf16.msra.mxu0 0
        %1376 = vmatprep.subr.bf16.mxu0 0
        %1377 = vmatpush1.bf16.msra.mxu0 0
        %1378 = vmatprep.subr.bf16.mxu0 0
        %1379 = vmatpush1.bf16.msra.mxu0 0
        %1380 = vmatprep.subr.bf16.mxu0 0
        %1381 = vmatpush1.bf16.msra.mxu0 0
        %1382 = vmatprep.subr.bf16.mxu0 0
        %1383 = vmatpush1.bf16.msra.mxu0 0
        %1384 = vmatprep.mubr.bf16.mxu0 0
        %1385 = vmatmul.mubr.bf16.gmra.mrb[0].mxu0 %v1347
        %v1386 = vpop.f32.mrb[0].mxu0
        %v1387 = vadd.f32 0.0, %v1386
        %v1388 = vpop.f32.mrb[0].mxu0
        %v1389 = vpop.f32.mrb[0].mxu0
        %v1390 = vpop.f32.mrb[0].mxu0
        %1391 = vdwg.mxu0
        %1392 = vrot.lane.b32.xlu0 %v501, 112
        %v1393 = vpop.permute.xlu0 %1392
        %1394 = vrot.lane.b32.xlu0 %v503, 80
        %v1395 = vpop.permute.xlu0 %1394
        %v1397 = vsel %vm510, %v1393, 0
        %v1400 = vsel %vm510, %v1395, 0
        %1402 = vmatprep.subr.bf16.mxu0 0
        %1403 = vmatpush1.bf16.xpose.msra.mxu0 %v1400
        %1404 = vmatprep.subr.bf16.mxu0 0
        %1405 = vmatpush1.bf16.xpose.msra.mxu0 0
        %1406 = vmatprep.subr.bf16.mxu0 0
        %1407 = vmatpush1.bf16.xpose.msra.mxu0 0
        %1408 = vmatprep.subr.bf16.mxu0 0
        %1409 = vmatpush1.bf16.xpose.msra.mxu0 0
        %1410 = vmatprep.subr.bf16.mxu0 0
        %1411 = vmatpush1.bf16.xpose.msra.mxu0 0
        %1412 = vmatprep.subr.bf16.mxu0 0
        %1413 = vmatpush1.bf16.xpose.msra.mxu0 0
        %1414 = vmatprep.subr.bf16.mxu0 0
        %1415 = vmatpush1.bf16.xpose.msra.mxu0 0
        %1416 = vmatprep.subr.bf16.mxu0 0
        %1417 = vmatpush1.bf16.xpose.msra.mxu0 0
        %1418 = vmatprep.subr.bf16.mxu0 0
        %1419 = vmatpush1.bf16.xpose.msra.mxu0 0
        %1420 = vmatprep.subr.bf16.mxu0 0
        %1421 = vmatpush1.bf16.xpose.msra.mxu0 0
        %1422 = vmatprep.subr.bf16.mxu0 0
        %1423 = vmatpush1.bf16.xpose.msra.mxu0 0
        %1424 = vmatprep.subr.bf16.mxu0 0
        %1425 = vmatpush1.bf16.xpose.msra.mxu0 0
        %1426 = vmatprep.subr.bf16.mxu0 0
        %1427 = vmatpush1.bf16.xpose.msra.mxu0 0
        %1428 = vmatprep.subr.bf16.mxu0 0
        %1429 = vmatpush1.bf16.xpose.msra.mxu0 0
        %1430 = vmatprep.subr.bf16.mxu0 0
        %1431 = vmatpush1.bf16.xpose.msra.mxu0 0
        %1432 = vmatprep.subr.bf16.mxu0 0
        %1433 = vmatpush1.bf16.xpose.msra.mxu0 0
        %1434 = vmatprep.mubr.bf16.mxu0 0
        %1435 = vmatmul.mubr.bf16.gmra.mrb[0].mxu0 %v1397
        %v1436 = vpop.f32.mrb[0].mxu0
        %v1437 = vadd.f32 0.0, %v1436
        %v1438 = vpop.f32.mrb[0].mxu0
        %v1439 = vpop.f32.mrb[0].mxu0
        %v1440 = vpop.f32.mrb[0].mxu0
        %1441 = vdwg.mxu0
        %1442 = vrot.lane.b32.xlu0 %v502, 112
        %v1443 = vpop.permute.xlu0 %1442
        %1444 = vrot.lane.b32.xlu0 %v504, 80
        %v1445 = vpop.permute.xlu0 %1444
        %v1447 = vsel %vm510, %v1443, 0
        %v1450 = vsel %vm510, %v1445, 0
        %1452 = vmatprep.subr.bf16.mxu0 0
        %1453 = vmatpush1.bf16.xpose.msra.mxu0 %v1450
        %1454 = vmatprep.subr.bf16.mxu0 0
        %1455 = vmatpush1.bf16.xpose.msra.mxu0 0
        %1456 = vmatprep.subr.bf16.mxu0 0
        %1457 = vmatpush1.bf16.xpose.msra.mxu0 0
        %1458 = vmatprep.subr.bf16.mxu0 0
        %1459 = vmatpush1.bf16.xpose.msra.mxu0 0
        %1460 = vmatprep.subr.bf16.mxu0 0
        %1461 = vmatpush1.bf16.xpose.msra.mxu0 0
        %1462 = vmatprep.subr.bf16.mxu0 0
        %1463 = vmatpush1.bf16.xpose.msra.mxu0 0
        %1464 = vmatprep.subr.bf16.mxu0 0
        %1465 = vmatpush1.bf16.xpose.msra.mxu0 0
        %1466 = vmatprep.subr.bf16.mxu0 0
        %1467 = vmatpush1.bf16.xpose.msra.mxu0 0
        %1468 = vmatprep.subr.bf16.mxu0 0
        %1469 = vmatpush1.bf16.xpose.msra.mxu0 0
        %1470 = vmatprep.subr.bf16.mxu0 0
        %1471 = vmatpush1.bf16.xpose.msra.mxu0 0
        %1472 = vmatprep.subr.bf16.mxu0 0
        %1473 = vmatpush1.bf16.xpose.msra.mxu0 0
        %1474 = vmatprep.subr.bf16.mxu0 0
        %1475 = vmatpush1.bf16.xpose.msra.mxu0 0
        %1476 = vmatprep.subr.bf16.mxu0 0
        %1477 = vmatpush1.bf16.xpose.msra.mxu0 0
        %1478 = vmatprep.subr.bf16.mxu0 0
        %1479 = vmatpush1.bf16.xpose.msra.mxu0 0
        %1480 = vmatprep.subr.bf16.mxu0 0
        %1481 = vmatpush1.bf16.xpose.msra.mxu0 0
        %1482 = vmatprep.subr.bf16.mxu0 0
        %1483 = vmatpush1.bf16.xpose.msra.mxu0 0
        %1484 = vmatprep.mubr.bf16.mxu0 0
        %1485 = vmatmul.mubr.bf16.gmra.mrb[0].mxu0 %v1447
        %v1486 = vpop.f32.mrb[0].mxu0
        %v1487 = vadd.f32 0.0, %v1486
        %v1488 = vpop.f32.mrb[0].mxu0
        %v1489 = vpop.f32.mrb[0].mxu0
        %v1490 = vpop.f32.mrb[0].mxu0
        %1491 = vdwg.mxu0
        %v1492 = vsel %vm606, %v1437, -inf
        %1493 = vmax.xlane.f32.xlu0 %v1492
        %v1494 = vpop.xlane.xlu0 %1493
        %v1495 = vsel %vm606, %v1487, -inf
        %1496 = vmax.xlane.f32.xlu0 %v1495
        %v1497 = vpop.xlane.xlu0 %1496
        %v1498 = vsub.f32 %v1437, %v1494
        %v1499 = vsub.f32 %v1487, %v1497
        %v1500 = vmul.f32 %v1498, 1.442695
        %v1501 = vpow.pop %v1500
        %v1502 = vmul.f32 %v1499, 1.442695
        %v1503 = vpow.pop %v1502
        %v1504 = vsel %vm606, %v1501, 0.0
        %1505 = vadd.xlane.f32.xlu0 %v1504
        %v1506 = vpop.xlane.xlu0 %1505
        %v1507 = vsel %vm606, %v1503, 0.0
        %1508 = vadd.xlane.f32.xlu0 %v1507
        %v1509 = vpop.xlane.xlu0 %1508
        %v1510 = vrcp.pop %v1506
        %v1511 = vrcp.pop %v1509
        %v1512 = vmul.f32 %v1501, %v1510
        %v1513 = vmul.f32 %v1503, %v1511
        %v1514 = vpack.c.bf16 %v1512, %v1512
        %v1515 = vpack.c.bf16 %v1513, %v1513
        %1516 = vrot.lane.b32.xlu0 %v505, 48
        %v1517 = vpop.permute.xlu0 %1516
        %v1519 = vsel %vm606, %v1514, 0
        %v1522 = vsel %vm637, %v1517, 0
        %1524 = vmatprep.subr.bf16.mxu0 0
        %1525 = vmatpush1.bf16.msra.mxu0 %v1522
        %1526 = vmatprep.subr.bf16.mxu0 0
        %1527 = vmatpush1.bf16.msra.mxu0 0
        %1528 = vmatprep.subr.bf16.mxu0 0
        %1529 = vmatpush1.bf16.msra.mxu0 0
        %1530 = vmatprep.subr.bf16.mxu0 0
        %1531 = vmatpush1.bf16.msra.mxu0 0
        %1532 = vmatprep.subr.bf16.mxu0 0
        %1533 = vmatpush1.bf16.msra.mxu0 0
        %1534 = vmatprep.subr.bf16.mxu0 0
        %1535 = vmatpush1.bf16.msra.mxu0 0
        %1536 = vmatprep.subr.bf16.mxu0 0
        %1537 = vmatpush1.bf16.msra.mxu0 0
        %1538 = vmatprep.subr.bf16.mxu0 0
        %1539 = vmatpush1.bf16.msra.mxu0 0
        %1540 = vmatprep.subr.bf16.mxu0 0
        %1541 = vmatpush1.bf16.msra.mxu0 0
        %1542 = vmatprep.subr.bf16.mxu0 0
        %1543 = vmatpush1.bf16.msra.mxu0 0
        %1544 = vmatprep.subr.bf16.mxu0 0
        %1545 = vmatpush1.bf16.msra.mxu0 0
        %1546 = vmatprep.subr.bf16.mxu0 0
        %1547 = vmatpush1.bf16.msra.mxu0 0
        %1548 = vmatprep.subr.bf16.mxu0 0
        %1549 = vmatpush1.bf16.msra.mxu0 0
        %1550 = vmatprep.subr.bf16.mxu0 0
        %1551 = vmatpush1.bf16.msra.mxu0 0
        %1552 = vmatprep.subr.bf16.mxu0 0
        %1553 = vmatpush1.bf16.msra.mxu0 0
        %1554 = vmatprep.subr.bf16.mxu0 0
        %1555 = vmatpush1.bf16.msra.mxu0 0
        %1556 = vmatprep.mubr.bf16.mxu0 0
        %1557 = vmatmul.mubr.bf16.gmra.mrb[0].mxu0 %v1519
        %v1558 = vpop.f32.mrb[0].mxu0
        %v1559 = vadd.f32 0.0, %v1558
        %v1560 = vpop.f32.mrb[0].mxu0
        %v1561 = vpop.f32.mrb[0].mxu0
        %v1562 = vpop.f32.mrb[0].mxu0
        %1563 = vdwg.mxu0
        %1564 = vrot.lane.b32.xlu0 %v506, 48
        %v1565 = vpop.permute.xlu0 %1564
        %v1567 = vsel %vm606, %v1515, 0
        %v1570 = vsel %vm637, %v1565, 0
        %1572 = vmatprep.subr.bf16.mxu0 0
        %1573 = vmatpush1.bf16.msra.mxu0 %v1570
        %1574 = vmatprep.subr.bf16.mxu0 0
        %1575 = vmatpush1.bf16.msra.mxu0 0
        %1576 = vmatprep.subr.bf16.mxu0 0
        %1577 = vmatpush1.bf16.msra.mxu0 0
        %1578 = vmatprep.subr.bf16.mxu0 0
        %1579 = vmatpush1.bf16.msra.mxu0 0
        %1580 = vmatprep.subr.bf16.mxu0 0
        %1581 = vmatpush1.bf16.msra.mxu0 0
        %1582 = vmatprep.subr.bf16.mxu0 0
        %1583 = vmatpush1.bf16.msra.mxu0 0
        %1584 = vmatprep.subr.bf16.mxu0 0
        %1585 = vmatpush1.bf16.msra.mxu0 0
        %1586 = vmatprep.subr.bf16.mxu0 0
        %1587 = vmatpush1.bf16.msra.mxu0 0
        %1588 = vmatprep.subr.bf16.mxu0 0
        %1589 = vmatpush1.bf16.msra.mxu0 0
        %1590 = vmatprep.subr.bf16.mxu0 0
        %1591 = vmatpush1.bf16.msra.mxu0 0
        %1592 = vmatprep.subr.bf16.mxu0 0
        %1593 = vmatpush1.bf16.msra.mxu0 0
        %1594 = vmatprep.subr.bf16.mxu0 0
        %1595 = vmatpush1.bf16.msra.mxu0 0
        %1596 = vmatprep.subr.bf16.mxu0 0
        %1597 = vmatpush1.bf16.msra.mxu0 0
        %1598 = vmatprep.subr.bf16.mxu0 0
        %1599 = vmatpush1.bf16.msra.mxu0 0
        %1600 = vmatprep.subr.bf16.mxu0 0
        %1601 = vmatpush1.bf16.msra.mxu0 0
        %1602 = vmatprep.subr.bf16.mxu0 0
        %1603 = vmatpush1.bf16.msra.mxu0 0
        %1604 = vmatprep.mubr.bf16.mxu0 0
        %1605 = vmatmul.mubr.bf16.gmra.mrb[0].mxu0 %v1567
        %v1606 = vpop.f32.mrb[0].mxu0
        %v1607 = vadd.f32 0.0, %v1606
        %v1608 = vpop.f32.mrb[0].mxu0
        %v1609 = vpop.f32.mrb[0].mxu0
        %v1610 = vpop.f32.mrb[0].mxu0
        %1611 = vdwg.mxu0
        %1612 = vrot.lane.b32.xlu0 %v501, 108
        %v1613 = vpop.permute.xlu0 %1612
        %1614 = vrot.lane.b32.xlu0 %v503, 76
        %v1615 = vpop.permute.xlu0 %1614
        %v1617 = vsel %vm510, %v1613, 0
        %v1620 = vsel %vm510, %v1615, 0
        %1622 = vmatprep.subr.bf16.mxu0 0
        %1623 = vmatpush1.bf16.xpose.msra.mxu0 %v1620
        %1624 = vmatprep.subr.bf16.mxu0 0
        %1625 = vmatpush1.bf16.xpose.msra.mxu0 0
        %1626 = vmatprep.subr.bf16.mxu0 0
        %1627 = vmatpush1.bf16.xpose.msra.mxu0 0
        %1628 = vmatprep.subr.bf16.mxu0 0
        %1629 = vmatpush1.bf16.xpose.msra.mxu0 0
        %1630 = vmatprep.subr.bf16.mxu0 0
        %1631 = vmatpush1.bf16.xpose.msra.mxu0 0
        %1632 = vmatprep.subr.bf16.mxu0 0
        %1633 = vmatpush1.bf16.xpose.msra.mxu0 0
        %1634 = vmatprep.subr.bf16.mxu0 0
        %1635 = vmatpush1.bf16.xpose.msra.mxu0 0
        %1636 = vmatprep.subr.bf16.mxu0 0
        %1637 = vmatpush1.bf16.xpose.msra.mxu0 0
        %1638 = vmatprep.subr.bf16.mxu0 0
        %1639 = vmatpush1.bf16.xpose.msra.mxu0 0
        %1640 = vmatprep.subr.bf16.mxu0 0
        %1641 = vmatpush1.bf16.xpose.msra.mxu0 0
        %1642 = vmatprep.subr.bf16.mxu0 0
        %1643 = vmatpush1.bf16.xpose.msra.mxu0 0
        %1644 = vmatprep.subr.bf16.mxu0 0
        %1645 = vmatpush1.bf16.xpose.msra.mxu0 0
        %1646 = vmatprep.subr.bf16.mxu0 0
        %1647 = vmatpush1.bf16.xpose.msra.mxu0 0
        %1648 = vmatprep.subr.bf16.mxu0 0
        %1649 = vmatpush1.bf16.xpose.msra.mxu0 0
        %1650 = vmatprep.subr.bf16.mxu0 0
        %1651 = vmatpush1.bf16.xpose.msra.mxu0 0
        %1652 = vmatprep.subr.bf16.mxu0 0
        %1653 = vmatpush1.bf16.xpose.msra.mxu0 0
        %1654 = vmatprep.mubr.bf16.mxu0 0
        %1655 = vmatmul.mubr.bf16.gmra.mrb[0].mxu0 %v1617
        %v1656 = vpop.f32.mrb[0].mxu0
        %v1657 = vadd.f32 0.0, %v1656
        %v1658 = vpop.f32.mrb[0].mxu0
        %v1659 = vpop.f32.mrb[0].mxu0
        %v1660 = vpop.f32.mrb[0].mxu0
        %1661 = vdwg.mxu0
        %1662 = vrot.lane.b32.xlu0 %v502, 108
        %v1663 = vpop.permute.xlu0 %1662
        %1664 = vrot.lane.b32.xlu0 %v504, 76
        %v1665 = vpop.permute.xlu0 %1664
        %v1667 = vsel %vm510, %v1663, 0
        %v1670 = vsel %vm510, %v1665, 0
        %1672 = vmatprep.subr.bf16.mxu0 0
        %1673 = vmatpush1.bf16.xpose.msra.mxu0 %v1670
        %1674 = vmatprep.subr.bf16.mxu0 0
        %1675 = vmatpush1.bf16.xpose.msra.mxu0 0
        %1676 = vmatprep.subr.bf16.mxu0 0
        %1677 = vmatpush1.bf16.xpose.msra.mxu0 0
        %1678 = vmatprep.subr.bf16.mxu0 0
        %1679 = vmatpush1.bf16.xpose.msra.mxu0 0
        %1680 = vmatprep.subr.bf16.mxu0 0
        %1681 = vmatpush1.bf16.xpose.msra.mxu0 0
        %1682 = vmatprep.subr.bf16.mxu0 0
        %1683 = vmatpush1.bf16.xpose.msra.mxu0 0
        %1684 = vmatprep.subr.bf16.mxu0 0
        %1685 = vmatpush1.bf16.xpose.msra.mxu0 0
        %1686 = vmatprep.subr.bf16.mxu0 0
        %1687 = vmatpush1.bf16.xpose.msra.mxu0 0
        %1688 = vmatprep.subr.bf16.mxu0 0
        %1689 = vmatpush1.bf16.xpose.msra.mxu0 0
        %1690 = vmatprep.subr.bf16.mxu0 0
        %1691 = vmatpush1.bf16.xpose.msra.mxu0 0
        %1692 = vmatprep.subr.bf16.mxu0 0
        %1693 = vmatpush1.bf16.xpose.msra.mxu0 0
        %1694 = vmatprep.subr.bf16.mxu0 0
        %1695 = vmatpush1.bf16.xpose.msra.mxu0 0
        %1696 = vmatprep.subr.bf16.mxu0 0
        %1697 = vmatpush1.bf16.xpose.msra.mxu0 0
        %1698 = vmatprep.subr.bf16.mxu0 0
        %1699 = vmatpush1.bf16.xpose.msra.mxu0 0
        %1700 = vmatprep.subr.bf16.mxu0 0
        %1701 = vmatpush1.bf16.xpose.msra.mxu0 0
        %1702 = vmatprep.subr.bf16.mxu0 0
        %1703 = vmatpush1.bf16.xpose.msra.mxu0 0
        %1704 = vmatprep.mubr.bf16.mxu0 0
        %1705 = vmatmul.mubr.bf16.gmra.mrb[0].mxu0 %v1667
        %v1706 = vpop.f32.mrb[0].mxu0
        %v1707 = vadd.f32 0.0, %v1706
        %v1708 = vpop.f32.mrb[0].mxu0
        %v1709 = vpop.f32.mrb[0].mxu0
        %v1710 = vpop.f32.mrb[0].mxu0
        %1711 = vdwg.mxu0
        %v1712 = vsel %vm606, %v1657, -inf
        %1713 = vmax.xlane.f32.xlu0 %v1712
        %v1714 = vpop.xlane.xlu0 %1713
        %v1715 = vsel %vm606, %v1707, -inf
        %1716 = vmax.xlane.f32.xlu0 %v1715
        %v1717 = vpop.xlane.xlu0 %1716
        %v1718 = vsub.f32 %v1657, %v1714
        %v1719 = vsub.f32 %v1707, %v1717
        %v1720 = vmul.f32 %v1718, 1.442695
        %v1721 = vpow.pop %v1720
        %v1722 = vmul.f32 %v1719, 1.442695
        %v1723 = vpow.pop %v1722
        %v1724 = vsel %vm606, %v1721, 0.0
        %1725 = vadd.xlane.f32.xlu0 %v1724
        %v1726 = vpop.xlane.xlu0 %1725
        %v1727 = vsel %vm606, %v1723, 0.0
        %1728 = vadd.xlane.f32.xlu0 %v1727
        %v1729 = vpop.xlane.xlu0 %1728
        %v1730 = vrcp.pop %v1726
        %v1731 = vrcp.pop %v1729
        %v1732 = vmul.f32 %v1721, %v1730
        %v1733 = vmul.f32 %v1723, %v1731
        %v1734 = vpack.c.bf16 %v1732, %v1732
        %v1735 = vpack.c.bf16 %v1733, %v1733
        %1736 = vrot.lane.b32.xlu0 %v505, 44
        %v1737 = vpop.permute.xlu0 %1736
        %v1739 = vsel %vm606, %v1734, 0
        %v1742 = vsel %vm637, %v1737, 0
        %1744 = vmatprep.subr.bf16.mxu0 0
        %1745 = vmatpush1.bf16.msra.mxu0 %v1742
        %1746 = vmatprep.subr.bf16.mxu0 0
        %1747 = vmatpush1.bf16.msra.mxu0 0
        %1748 = vmatprep.subr.bf16.mxu0 0
        %1749 = vmatpush1.bf16.msra.mxu0 0
        %1750 = vmatprep.subr.bf16.mxu0 0
        %1751 = vmatpush1.bf16.msra.mxu0 0
        %1752 = vmatprep.subr.bf16.mxu0 0
        %1753 = vmatpush1.bf16.msra.mxu0 0
        %1754 = vmatprep.subr.bf16.mxu0 0
        %1755 = vmatpush1.bf16.msra.mxu0 0
        %1756 = vmatprep.subr.bf16.mxu0 0
        %1757 = vmatpush1.bf16.msra.mxu0 0
        %1758 = vmatprep.subr.bf16.mxu0 0
        %1759 = vmatpush1.bf16.msra.mxu0 0
        %1760 = vmatprep.subr.bf16.mxu0 0
        %1761 = vmatpush1.bf16.msra.mxu0 0
        %1762 = vmatprep.subr.bf16.mxu0 0
        %1763 = vmatpush1.bf16.msra.mxu0 0
        %1764 = vmatprep.subr.bf16.mxu0 0
        %1765 = vmatpush1.bf16.msra.mxu0 0
        %1766 = vmatprep.subr.bf16.mxu0 0
        %1767 = vmatpush1.bf16.msra.mxu0 0
        %1768 = vmatprep.subr.bf16.mxu0 0
        %1769 = vmatpush1.bf16.msra.mxu0 0
        %1770 = vmatprep.subr.bf16.mxu0 0
        %1771 = vmatpush1.bf16.msra.mxu0 0
        %1772 = vmatprep.subr.bf16.mxu0 0
        %1773 = vmatpush1.bf16.msra.mxu0 0
        %1774 = vmatprep.subr.bf16.mxu0 0
        %1775 = vmatpush1.bf16.msra.mxu0 0
        %1776 = vmatprep.mubr.bf16.mxu0 0
        %1777 = vmatmul.mubr.bf16.gmra.mrb[0].mxu0 %v1739
        %v1778 = vpop.f32.mrb[0].mxu0
        %v1779 = vadd.f32 0.0, %v1778
        %v1780 = vpop.f32.mrb[0].mxu0
        %v1781 = vpop.f32.mrb[0].mxu0
        %v1782 = vpop.f32.mrb[0].mxu0
        %1783 = vdwg.mxu0
        %1784 = vrot.lane.b32.xlu0 %v506, 44
        %v1785 = vpop.permute.xlu0 %1784
        %v1787 = vsel %vm606, %v1735, 0
        %v1790 = vsel %vm637, %v1785, 0
        %1792 = vmatprep.subr.bf16.mxu0 0
        %1793 = vmatpush1.bf16.msra.mxu0 %v1790
        %1794 = vmatprep.subr.bf16.mxu0 0
        %1795 = vmatpush1.bf16.msra.mxu0 0
        %1796 = vmatprep.subr.bf16.mxu0 0
        %1797 = vmatpush1.bf16.msra.mxu0 0
        %1798 = vmatprep.subr.bf16.mxu0 0
        %1799 = vmatpush1.bf16.msra.mxu0 0
        %1800 = vmatprep.subr.bf16.mxu0 0
        %1801 = vmatpush1.bf16.msra.mxu0 0
        %1802 = vmatprep.subr.bf16.mxu0 0
        %1803 = vmatpush1.bf16.msra.mxu0 0
        %1804 = vmatprep.subr.bf16.mxu0 0
        %1805 = vmatpush1.bf16.msra.mxu0 0
        %1806 = vmatprep.subr.bf16.mxu0 0
        %1807 = vmatpush1.bf16.msra.mxu0 0
        %1808 = vmatprep.subr.bf16.mxu0 0
        %1809 = vmatpush1.bf16.msra.mxu0 0
        %1810 = vmatprep.subr.bf16.mxu0 0
        %1811 = vmatpush1.bf16.msra.mxu0 0
        %1812 = vmatprep.subr.bf16.mxu0 0
        %1813 = vmatpush1.bf16.msra.mxu0 0
        %1814 = vmatprep.subr.bf16.mxu0 0
        %1815 = vmatpush1.bf16.msra.mxu0 0
        %1816 = vmatprep.subr.bf16.mxu0 0
        %1817 = vmatpush1.bf16.msra.mxu0 0
        %1818 = vmatprep.subr.bf16.mxu0 0
        %1819 = vmatpush1.bf16.msra.mxu0 0
        %1820 = vmatprep.subr.bf16.mxu0 0
        %1821 = vmatpush1.bf16.msra.mxu0 0
        %1822 = vmatprep.subr.bf16.mxu0 0
        %1823 = vmatpush1.bf16.msra.mxu0 0
        %1824 = vmatprep.mubr.bf16.mxu0 0
        %1825 = vmatmul.mubr.bf16.gmra.mrb[0].mxu0 %v1787
        %v1826 = vpop.f32.mrb[0].mxu0
        %v1827 = vadd.f32 0.0, %v1826
        %v1828 = vpop.f32.mrb[0].mxu0
        %v1829 = vpop.f32.mrb[0].mxu0
        %v1830 = vpop.f32.mrb[0].mxu0
        %1831 = vdwg.mxu0
        %1832 = vrot.lane.b32.xlu0 %v501, 104
        %v1833 = vpop.permute.xlu0 %1832
        %1834 = vrot.lane.b32.xlu0 %v503, 72
        %v1835 = vpop.permute.xlu0 %1834
        %v1837 = vsel %vm510, %v1833, 0
        %v1840 = vsel %vm510, %v1835, 0
        %1842 = vmatprep.subr.bf16.mxu0 0
        %1843 = vmatpush1.bf16.xpose.msra.mxu0 %v1840
        %1844 = vmatprep.subr.bf16.mxu0 0
        %1845 = vmatpush1.bf16.xpose.msra.mxu0 0
        %1846 = vmatprep.subr.bf16.mxu0 0
        %1847 = vmatpush1.bf16.xpose.msra.mxu0 0
        %1848 = vmatprep.subr.bf16.mxu0 0
        %1849 = vmatpush1.bf16.xpose.msra.mxu0 0
        %1850 = vmatprep.subr.bf16.mxu0 0
        %1851 = vmatpush1.bf16.xpose.msra.mxu0 0
        %1852 = vmatprep.subr.bf16.mxu0 0
        %1853 = vmatpush1.bf16.xpose.msra.mxu0 0
        %1854 = vmatprep.subr.bf16.mxu0 0
        %1855 = vmatpush1.bf16.xpose.msra.mxu0 0
        %1856 = vmatprep.subr.bf16.mxu0 0
        %1857 = vmatpush1.bf16.xpose.msra.mxu0 0
        %1858 = vmatprep.subr.bf16.mxu0 0
        %1859 = vmatpush1.bf16.xpose.msra.mxu0 0
        %1860 = vmatprep.subr.bf16.mxu0 0
        %1861 = vmatpush1.bf16.xpose.msra.mxu0 0
        %1862 = vmatprep.subr.bf16.mxu0 0
        %1863 = vmatpush1.bf16.xpose.msra.mxu0 0
        %1864 = vmatprep.subr.bf16.mxu0 0
        %1865 = vmatpush1.bf16.xpose.msra.mxu0 0
        %1866 = vmatprep.subr.bf16.mxu0 0
        %1867 = vmatpush1.bf16.xpose.msra.mxu0 0
        %1868 = vmatprep.subr.bf16.mxu0 0
        %1869 = vmatpush1.bf16.xpose.msra.mxu0 0
        %1870 = vmatprep.subr.bf16.mxu0 0
        %1871 = vmatpush1.bf16.xpose.msra.mxu0 0
        %1872 = vmatprep.subr.bf16.mxu0 0
        %1873 = vmatpush1.bf16.xpose.msra.mxu0 0
        %1874 = vmatprep.mubr.bf16.mxu0 0
        %1875 = vmatmul.mubr.bf16.gmra.mrb[0].mxu0 %v1837
        %v1876 = vpop.f32.mrb[0].mxu0
        %v1877 = vadd.f32 0.0, %v1876
        %v1878 = vpop.f32.mrb[0].mxu0
        %v1879 = vpop.f32.mrb[0].mxu0
        %v1880 = vpop.f32.mrb[0].mxu0
        %1881 = vdwg.mxu0
        %1882 = vrot.lane.b32.xlu0 %v502, 104
        %v1883 = vpop.permute.xlu0 %1882
        %1884 = vrot.lane.b32.xlu0 %v504, 72
        %v1885 = vpop.permute.xlu0 %1884
        %v1887 = vsel %vm510, %v1883, 0
        %v1890 = vsel %vm510, %v1885, 0
        %1892 = vmatprep.subr.bf16.mxu0 0
        %1893 = vmatpush1.bf16.xpose.msra.mxu0 %v1890
        %1894 = vmatprep.subr.bf16.mxu0 0
        %1895 = vmatpush1.bf16.xpose.msra.mxu0 0
        %1896 = vmatprep.subr.bf16.mxu0 0
        %1897 = vmatpush1.bf16.xpose.msra.mxu0 0
        %1898 = vmatprep.subr.bf16.mxu0 0
        %1899 = vmatpush1.bf16.xpose.msra.mxu0 0
        %1900 = vmatprep.subr.bf16.mxu0 0
        %1901 = vmatpush1.bf16.xpose.msra.mxu0 0
        %1902 = vmatprep.subr.bf16.mxu0 0
        %1903 = vmatpush1.bf16.xpose.msra.mxu0 0
        %1904 = vmatprep.subr.bf16.mxu0 0
        %1905 = vmatpush1.bf16.xpose.msra.mxu0 0
        %1906 = vmatprep.subr.bf16.mxu0 0
        %1907 = vmatpush1.bf16.xpose.msra.mxu0 0
        %1908 = vmatprep.subr.bf16.mxu0 0
        %1909 = vmatpush1.bf16.xpose.msra.mxu0 0
        %1910 = vmatprep.subr.bf16.mxu0 0
        %1911 = vmatpush1.bf16.xpose.msra.mxu0 0
        %1912 = vmatprep.subr.bf16.mxu0 0
        %1913 = vmatpush1.bf16.xpose.msra.mxu0 0
        %1914 = vmatprep.subr.bf16.mxu0 0
        %1915 = vmatpush1.bf16.xpose.msra.mxu0 0
        %1916 = vmatprep.subr.bf16.mxu0 0
        %1917 = vmatpush1.bf16.xpose.msra.mxu0 0
        %1918 = vmatprep.subr.bf16.mxu0 0
        %1919 = vmatpush1.bf16.xpose.msra.mxu0 0
        %1920 = vmatprep.subr.bf16.mxu0 0
        %1921 = vmatpush1.bf16.xpose.msra.mxu0 0
        %1922 = vmatprep.subr.bf16.mxu0 0
        %1923 = vmatpush1.bf16.xpose.msra.mxu0 0
        %1924 = vmatprep.mubr.bf16.mxu0 0
        %1925 = vmatmul.mubr.bf16.gmra.mrb[0].mxu0 %v1887
        %v1926 = vpop.f32.mrb[0].mxu0
        %v1927 = vadd.f32 0.0, %v1926
        %v1928 = vpop.f32.mrb[0].mxu0
        %v1929 = vpop.f32.mrb[0].mxu0
        %v1930 = vpop.f32.mrb[0].mxu0
        %1931 = vdwg.mxu0
        %v1932 = vsel %vm606, %v1877, -inf
        %1933 = vmax.xlane.f32.xlu0 %v1932
        %v1934 = vpop.xlane.xlu0 %1933
        %v1935 = vsel %vm606, %v1927, -inf
        %1936 = vmax.xlane.f32.xlu0 %v1935
        %v1937 = vpop.xlane.xlu0 %1936
        %v1938 = vsub.f32 %v1877, %v1934
        %v1939 = vsub.f32 %v1927, %v1937
        %v1940 = vmul.f32 %v1938, 1.442695
        %v1941 = vpow.pop %v1940
        %v1942 = vmul.f32 %v1939, 1.442695
        %v1943 = vpow.pop %v1942
        %v1944 = vsel %vm606, %v1941, 0.0
        %1945 = vadd.xlane.f32.xlu0 %v1944
        %v1946 = vpop.xlane.xlu0 %1945
        %v1947 = vsel %vm606, %v1943, 0.0
        %1948 = vadd.xlane.f32.xlu0 %v1947
        %v1949 = vpop.xlane.xlu0 %1948
        %v1950 = vrcp.pop %v1946
        %v1951 = vrcp.pop %v1949
        %v1952 = vmul.f32 %v1941, %v1950
        %v1953 = vmul.f32 %v1943, %v1951
        %v1954 = vpack.c.bf16 %v1952, %v1952
        %v1955 = vpack.c.bf16 %v1953, %v1953
        %1956 = vrot.lane.b32.xlu0 %v505, 40
        %v1957 = vpop.permute.xlu0 %1956
        %v1959 = vsel %vm606, %v1954, 0
        %v1962 = vsel %vm637, %v1957, 0
        %1964 = vmatprep.subr.bf16.mxu0 0
        %1965 = vmatpush1.bf16.msra.mxu0 %v1962
        %1966 = vmatprep.subr.bf16.mxu0 0
        %1967 = vmatpush1.bf16.msra.mxu0 0
        %1968 = vmatprep.subr.bf16.mxu0 0
        %1969 = vmatpush1.bf16.msra.mxu0 0
        %1970 = vmatprep.subr.bf16.mxu0 0
        %1971 = vmatpush1.bf16.msra.mxu0 0
        %1972 = vmatprep.subr.bf16.mxu0 0
        %1973 = vmatpush1.bf16.msra.mxu0 0
        %1974 = vmatprep.subr.bf16.mxu0 0
        %1975 = vmatpush1.bf16.msra.mxu0 0
        %1976 = vmatprep.subr.bf16.mxu0 0
        %1977 = vmatpush1.bf16.msra.mxu0 0
        %1978 = vmatprep.subr.bf16.mxu0 0
        %1979 = vmatpush1.bf16.msra.mxu0 0
        %1980 = vmatprep.subr.bf16.mxu0 0
        %1981 = vmatpush1.bf16.msra.mxu0 0
        %1982 = vmatprep.subr.bf16.mxu0 0
        %1983 = vmatpush1.bf16.msra.mxu0 0
        %1984 = vmatprep.subr.bf16.mxu0 0
        %1985 = vmatpush1.bf16.msra.mxu0 0
        %1986 = vmatprep.subr.bf16.mxu0 0
        %1987 = vmatpush1.bf16.msra.mxu0 0
        %1988 = vmatprep.subr.bf16.mxu0 0
        %1989 = vmatpush1.bf16.msra.mxu0 0
        %1990 = vmatprep.subr.bf16.mxu0 0
        %1991 = vmatpush1.bf16.msra.mxu0 0
        %1992 = vmatprep.subr.bf16.mxu0 0
        %1993 = vmatpush1.bf16.msra.mxu0 0
        %1994 = vmatprep.subr.bf16.mxu0 0
        %1995 = vmatpush1.bf16.msra.mxu0 0
        %1996 = vmatprep.mubr.bf16.mxu0 0
        %1997 = vmatmul.mubr.bf16.gmra.mrb[0].mxu0 %v1959
        %v1998 = vpop.f32.mrb[0].mxu0
        %v1999 = vadd.f32 0.0, %v1998
        %v2000 = vpop.f32.mrb[0].mxu0
        %v2001 = vpop.f32.mrb[0].mxu0
        %v2002 = vpop.f32.mrb[0].mxu0
        %2003 = vdwg.mxu0
        %2004 = vrot.lane.b32.xlu0 %v506, 40
        %v2005 = vpop.permute.xlu0 %2004
        %v2007 = vsel %vm606, %v1955, 0
        %v2010 = vsel %vm637, %v2005, 0
        %2012 = vmatprep.subr.bf16.mxu0 0
        %2013 = vmatpush1.bf16.msra.mxu0 %v2010
        %2014 = vmatprep.subr.bf16.mxu0 0
        %2015 = vmatpush1.bf16.msra.mxu0 0
        %2016 = vmatprep.subr.bf16.mxu0 0
        %2017 = vmatpush1.bf16.msra.mxu0 0
        %2018 = vmatprep.subr.bf16.mxu0 0
        %2019 = vmatpush1.bf16.msra.mxu0 0
        %2020 = vmatprep.subr.bf16.mxu0 0
        %2021 = vmatpush1.bf16.msra.mxu0 0
        %2022 = vmatprep.subr.bf16.mxu0 0
        %2023 = vmatpush1.bf16.msra.mxu0 0
        %2024 = vmatprep.subr.bf16.mxu0 0
        %2025 = vmatpush1.bf16.msra.mxu0 0
        %2026 = vmatprep.subr.bf16.mxu0 0
        %2027 = vmatpush1.bf16.msra.mxu0 0
        %2028 = vmatprep.subr.bf16.mxu0 0
        %2029 = vmatpush1.bf16.msra.mxu0 0
        %2030 = vmatprep.subr.bf16.mxu0 0
        %2031 = vmatpush1.bf16.msra.mxu0 0
        %2032 = vmatprep.subr.bf16.mxu0 0
        %2033 = vmatpush1.bf16.msra.mxu0 0
        %2034 = vmatprep.subr.bf16.mxu0 0
        %2035 = vmatpush1.bf16.msra.mxu0 0
        %2036 = vmatprep.subr.bf16.mxu0 0
        %2037 = vmatpush1.bf16.msra.mxu0 0
        %2038 = vmatprep.subr.bf16.mxu0 0
        %2039 = vmatpush1.bf16.msra.mxu0 0
        %2040 = vmatprep.subr.bf16.mxu0 0
        %2041 = vmatpush1.bf16.msra.mxu0 0
        %2042 = vmatprep.subr.bf16.mxu0 0
        %2043 = vmatpush1.bf16.msra.mxu0 0
        %2044 = vmatprep.mubr.bf16.mxu0 0
        %2045 = vmatmul.mubr.bf16.gmra.mrb[0].mxu0 %v2007
        %v2046 = vpop.f32.mrb[0].mxu0
        %v2047 = vadd.f32 0.0, %v2046
        %v2048 = vpop.f32.mrb[0].mxu0
        %v2049 = vpop.f32.mrb[0].mxu0
        %v2050 = vpop.f32.mrb[0].mxu0
        %2051 = vdwg.mxu0
        %2052 = vrot.lane.b32.xlu0 %v501, 100
        %v2053 = vpop.permute.xlu0 %2052
        %2054 = vrot.lane.b32.xlu0 %v503, 68
        %v2055 = vpop.permute.xlu0 %2054
        %v2057 = vsel %vm510, %v2053, 0
        %v2060 = vsel %vm510, %v2055, 0
        %2062 = vmatprep.subr.bf16.mxu0 0
        %2063 = vmatpush1.bf16.xpose.msra.mxu0 %v2060
        %2064 = vmatprep.subr.bf16.mxu0 0
        %2065 = vmatpush1.bf16.xpose.msra.mxu0 0
        %2066 = vmatprep.subr.bf16.mxu0 0
        %2067 = vmatpush1.bf16.xpose.msra.mxu0 0
        %2068 = vmatprep.subr.bf16.mxu0 0
        %2069 = vmatpush1.bf16.xpose.msra.mxu0 0
        %2070 = vmatprep.subr.bf16.mxu0 0
        %2071 = vmatpush1.bf16.xpose.msra.mxu0 0
        %2072 = vmatprep.subr.bf16.mxu0 0
        %2073 = vmatpush1.bf16.xpose.msra.mxu0 0
        %2074 = vmatprep.subr.bf16.mxu0 0
        %2075 = vmatpush1.bf16.xpose.msra.mxu0 0
        %2076 = vmatprep.subr.bf16.mxu0 0
        %2077 = vmatpush1.bf16.xpose.msra.mxu0 0
        %2078 = vmatprep.subr.bf16.mxu0 0
        %2079 = vmatpush1.bf16.xpose.msra.mxu0 0
        %2080 = vmatprep.subr.bf16.mxu0 0
        %2081 = vmatpush1.bf16.xpose.msra.mxu0 0
        %2082 = vmatprep.subr.bf16.mxu0 0
        %2083 = vmatpush1.bf16.xpose.msra.mxu0 0
        %2084 = vmatprep.subr.bf16.mxu0 0
        %2085 = vmatpush1.bf16.xpose.msra.mxu0 0
        %2086 = vmatprep.subr.bf16.mxu0 0
        %2087 = vmatpush1.bf16.xpose.msra.mxu0 0
        %2088 = vmatprep.subr.bf16.mxu0 0
        %2089 = vmatpush1.bf16.xpose.msra.mxu0 0
        %2090 = vmatprep.subr.bf16.mxu0 0
        %2091 = vmatpush1.bf16.xpose.msra.mxu0 0
        %2092 = vmatprep.subr.bf16.mxu0 0
        %2093 = vmatpush1.bf16.xpose.msra.mxu0 0
        %2094 = vmatprep.mubr.bf16.mxu0 0
        %2095 = vmatmul.mubr.bf16.gmra.mrb[0].mxu0 %v2057
        %v2096 = vpop.f32.mrb[0].mxu0
        %v2097 = vadd.f32 0.0, %v2096
        %v2098 = vpop.f32.mrb[0].mxu0
        %v2099 = vpop.f32.mrb[0].mxu0
        %v2100 = vpop.f32.mrb[0].mxu0
        %2101 = vdwg.mxu0
        %2102 = vrot.lane.b32.xlu0 %v502, 100
        %v2103 = vpop.permute.xlu0 %2102
        %2104 = vrot.lane.b32.xlu0 %v504, 68
        %v2105 = vpop.permute.xlu0 %2104
        %v2107 = vsel %vm510, %v2103, 0
        %v2110 = vsel %vm510, %v2105, 0
        %2112 = vmatprep.subr.bf16.mxu0 0
        %2113 = vmatpush1.bf16.xpose.msra.mxu0 %v2110
        %2114 = vmatprep.subr.bf16.mxu0 0
        %2115 = vmatpush1.bf16.xpose.msra.mxu0 0
        %2116 = vmatprep.subr.bf16.mxu0 0
        %2117 = vmatpush1.bf16.xpose.msra.mxu0 0
        %2118 = vmatprep.subr.bf16.mxu0 0
        %2119 = vmatpush1.bf16.xpose.msra.mxu0 0
        %2120 = vmatprep.subr.bf16.mxu0 0
        %2121 = vmatpush1.bf16.xpose.msra.mxu0 0
        %2122 = vmatprep.subr.bf16.mxu0 0
        %2123 = vmatpush1.bf16.xpose.msra.mxu0 0
        %2124 = vmatprep.subr.bf16.mxu0 0
        %2125 = vmatpush1.bf16.xpose.msra.mxu0 0
        %2126 = vmatprep.subr.bf16.mxu0 0
        %2127 = vmatpush1.bf16.xpose.msra.mxu0 0
        %2128 = vmatprep.subr.bf16.mxu0 0
        %2129 = vmatpush1.bf16.xpose.msra.mxu0 0
        %2130 = vmatprep.subr.bf16.mxu0 0
        %2131 = vmatpush1.bf16.xpose.msra.mxu0 0
        %2132 = vmatprep.subr.bf16.mxu0 0
        %2133 = vmatpush1.bf16.xpose.msra.mxu0 0
        %2134 = vmatprep.subr.bf16.mxu0 0
        %2135 = vmatpush1.bf16.xpose.msra.mxu0 0
        %2136 = vmatprep.subr.bf16.mxu0 0
        %2137 = vmatpush1.bf16.xpose.msra.mxu0 0
        %2138 = vmatprep.subr.bf16.mxu0 0
        %2139 = vmatpush1.bf16.xpose.msra.mxu0 0
        %2140 = vmatprep.subr.bf16.mxu0 0
        %2141 = vmatpush1.bf16.xpose.msra.mxu0 0
        %2142 = vmatprep.subr.bf16.mxu0 0
        %2143 = vmatpush1.bf16.xpose.msra.mxu0 0
        %2144 = vmatprep.mubr.bf16.mxu0 0
        %2145 = vmatmul.mubr.bf16.gmra.mrb[0].mxu0 %v2107
        %v2146 = vpop.f32.mrb[0].mxu0
        %v2147 = vadd.f32 0.0, %v2146
        %v2148 = vpop.f32.mrb[0].mxu0
        %v2149 = vpop.f32.mrb[0].mxu0
        %v2150 = vpop.f32.mrb[0].mxu0
        %2151 = vdwg.mxu0
        %v2152 = vsel %vm606, %v2097, -inf
        %2153 = vmax.xlane.f32.xlu0 %v2152
        %v2154 = vpop.xlane.xlu0 %2153
        %v2155 = vsel %vm606, %v2147, -inf
        %2156 = vmax.xlane.f32.xlu0 %v2155
        %v2157 = vpop.xlane.xlu0 %2156
        %v2158 = vsub.f32 %v2097, %v2154
        %v2159 = vsub.f32 %v2147, %v2157
        %v2160 = vmul.f32 %v2158, 1.442695
        %v2161 = vpow.pop %v2160
        %v2162 = vmul.f32 %v2159, 1.442695
        %v2163 = vpow.pop %v2162
        %v2164 = vsel %vm606, %v2161, 0.0
        %2165 = vadd.xlane.f32.xlu0 %v2164
        %v2166 = vpop.xlane.xlu0 %2165
        %v2167 = vsel %vm606, %v2163, 0.0
        %2168 = vadd.xlane.f32.xlu0 %v2167
        %v2169 = vpop.xlane.xlu0 %2168
        %v2170 = vrcp.pop %v2166
        %v2171 = vrcp.pop %v2169
        %v2172 = vmul.f32 %v2161, %v2170
        %v2173 = vmul.f32 %v2163, %v2171
        %v2174 = vpack.c.bf16 %v2172, %v2172
        %v2175 = vpack.c.bf16 %v2173, %v2173
        %2176 = vrot.lane.b32.xlu0 %v505, 36
        %v2177 = vpop.permute.xlu0 %2176
        %v2179 = vsel %vm606, %v2174, 0
        %v2182 = vsel %vm637, %v2177, 0
        %2184 = vmatprep.subr.bf16.mxu0 0
        %2185 = vmatpush1.bf16.msra.mxu0 %v2182
        %2186 = vmatprep.subr.bf16.mxu0 0
        %2187 = vmatpush1.bf16.msra.mxu0 0
        %2188 = vmatprep.subr.bf16.mxu0 0
        %2189 = vmatpush1.bf16.msra.mxu0 0
        %2190 = vmatprep.subr.bf16.mxu0 0
        %2191 = vmatpush1.bf16.msra.mxu0 0
        %2192 = vmatprep.subr.bf16.mxu0 0
        %2193 = vmatpush1.bf16.msra.mxu0 0
        %2194 = vmatprep.subr.bf16.mxu0 0
        %2195 = vmatpush1.bf16.msra.mxu0 0
        %2196 = vmatprep.subr.bf16.mxu0 0
        %2197 = vmatpush1.bf16.msra.mxu0 0
        %2198 = vmatprep.subr.bf16.mxu0 0
        %2199 = vmatpush1.bf16.msra.mxu0 0
        %2200 = vmatprep.subr.bf16.mxu0 0
        %2201 = vmatpush1.bf16.msra.mxu0 0
        %2202 = vmatprep.subr.bf16.mxu0 0
        %2203 = vmatpush1.bf16.msra.mxu0 0
        %2204 = vmatprep.subr.bf16.mxu0 0
        %2205 = vmatpush1.bf16.msra.mxu0 0
        %2206 = vmatprep.subr.bf16.mxu0 0
        %2207 = vmatpush1.bf16.msra.mxu0 0
        %2208 = vmatprep.subr.bf16.mxu0 0
        %2209 = vmatpush1.bf16.msra.mxu0 0
        %2210 = vmatprep.subr.bf16.mxu0 0
        %2211 = vmatpush1.bf16.msra.mxu0 0
        %2212 = vmatprep.subr.bf16.mxu0 0
        %2213 = vmatpush1.bf16.msra.mxu0 0
        %2214 = vmatprep.subr.bf16.mxu0 0
        %2215 = vmatpush1.bf16.msra.mxu0 0
        %2216 = vmatprep.mubr.bf16.mxu0 0
        %2217 = vmatmul.mubr.bf16.gmra.mrb[0].mxu0 %v2179
        %v2218 = vpop.f32.mrb[0].mxu0
        %v2219 = vadd.f32 0.0, %v2218
        %v2220 = vpop.f32.mrb[0].mxu0
        %v2221 = vpop.f32.mrb[0].mxu0
        %v2222 = vpop.f32.mrb[0].mxu0
        %2223 = vdwg.mxu0
        %2224 = vrot.lane.b32.xlu0 %v506, 36
        %v2225 = vpop.permute.xlu0 %2224
        %v2227 = vsel %vm606, %v2175, 0
        %v2230 = vsel %vm637, %v2225, 0
        %2232 = vmatprep.subr.bf16.mxu0 0
        %2233 = vmatpush1.bf16.msra.mxu0 %v2230
        %2234 = vmatprep.subr.bf16.mxu0 0
        %2235 = vmatpush1.bf16.msra.mxu0 0
        %2236 = vmatprep.subr.bf16.mxu0 0
        %2237 = vmatpush1.bf16.msra.mxu0 0
        %2238 = vmatprep.subr.bf16.mxu0 0
        %2239 = vmatpush1.bf16.msra.mxu0 0
        %2240 = vmatprep.subr.bf16.mxu0 0
        %2241 = vmatpush1.bf16.msra.mxu0 0
        %2242 = vmatprep.subr.bf16.mxu0 0
        %2243 = vmatpush1.bf16.msra.mxu0 0
        %2244 = vmatprep.subr.bf16.mxu0 0
        %2245 = vmatpush1.bf16.msra.mxu0 0
        %2246 = vmatprep.subr.bf16.mxu0 0
        %2247 = vmatpush1.bf16.msra.mxu0 0
        %2248 = vmatprep.subr.bf16.mxu0 0
        %2249 = vmatpush1.bf16.msra.mxu0 0
        %2250 = vmatprep.subr.bf16.mxu0 0
        %2251 = vmatpush1.bf16.msra.mxu0 0
        %2252 = vmatprep.subr.bf16.mxu0 0
        %2253 = vmatpush1.bf16.msra.mxu0 0
        %2254 = vmatprep.subr.bf16.mxu0 0
        %2255 = vmatpush1.bf16.msra.mxu0 0
        %2256 = vmatprep.subr.bf16.mxu0 0
        %2257 = vmatpush1.bf16.msra.mxu0 0
        %2258 = vmatprep.subr.bf16.mxu0 0
        %2259 = vmatpush1.bf16.msra.mxu0 0
        %2260 = vmatprep.subr.bf16.mxu0 0
        %2261 = vmatpush1.bf16.msra.mxu0 0
        %2262 = vmatprep.subr.bf16.mxu0 0
        %2263 = vmatpush1.bf16.msra.mxu0 0
        %2264 = vmatprep.mubr.bf16.mxu0 0
        %2265 = vmatmul.mubr.bf16.gmra.mrb[0].mxu0 %v2227
        %v2266 = vpop.f32.mrb[0].mxu0
        %v2267 = vadd.f32 0.0, %v2266
        %v2268 = vpop.f32.mrb[0].mxu0
        %v2269 = vpop.f32.mrb[0].mxu0
        %v2270 = vpop.f32.mrb[0].mxu0
        %2271 = vdwg.mxu0
        %2274 = vrot.lane.b32.xlu0 %v899, 4
        %v2275 = vpop.permute.xlu0 %2274
        %2276 = vrot.lane.b32.xlu0 %v947, 4
        %v2277 = vpop.permute.xlu0 %2276
        %2282 = vrot.lane.b32.xlu0 %v1119, 8
        %v2283 = vpop.permute.xlu0 %2282
        %2284 = vrot.lane.b32.xlu0 %v1167, 8
        %v2285 = vpop.permute.xlu0 %2284
        %2290 = vrot.lane.b32.xlu0 %v1339, 12
        %v2291 = vpop.permute.xlu0 %2290
        %2292 = vrot.lane.b32.xlu0 %v1387, 12
        %v2293 = vpop.permute.xlu0 %2292
        %2298 = vrot.lane.b32.xlu0 %v1559, 16
        %v2299 = vpop.permute.xlu0 %2298
        %2300 = vrot.lane.b32.xlu0 %v1607, 16
        %v2301 = vpop.permute.xlu0 %2300
        %2306 = vrot.lane.b32.xlu0 %v1779, 20
        %v2307 = vpop.permute.xlu0 %2306
        %2308 = vrot.lane.b32.xlu0 %v1827, 20
        %v2309 = vpop.permute.xlu0 %2308
        %2314 = vrot.lane.b32.xlu0 %v1999, 24
        %v2315 = vpop.permute.xlu0 %2314
        %2316 = vrot.lane.b32.xlu0 %v2047, 24
        %v2317 = vpop.permute.xlu0 %2316
        %2322 = vrot.lane.b32.xlu0 %v2219, 28
        %v2323 = vpop.permute.xlu0 %2322
        %2324 = vrot.lane.b32.xlu0 %v2267, 28
        %v2325 = vpop.permute.xlu0 %2324
        %v2328 = vsel %vm510, %v676, %v2275
        %v2329 = vsel %vm510, %v725, %v2277
        %v2330 = vsel %vm606, %v2328, %v2283
        %v2331 = vsel %vm606, %v2329, %v2285
        %vm2332 = vcmask 97280
        %v2333 = vsel %vm2332, %v2330, %v2291
        %v2334 = vsel %vm2332, %v2331, %v2293
        %vm2335 = vcmask 130048
        %v2336 = vsel %vm2335, %v2333, %v2299
        %v2337 = vsel %vm2335, %v2334, %v2301
        %vm2338 = vcmask 162816
        %v2339 = vsel %vm2338, %v2336, %v2307
        %v2340 = vsel %vm2338, %v2337, %v2309
        %vm2341 = vcmask 195584
        %v2342 = vsel %vm2341, %v2339, %v2315
        %v2343 = vsel %vm2341, %v2340, %v2317
        %vm2344 = vcmask 228352
        %v2345 = vsel %vm2344, %v2342, %v2323
        %v2346 = vsel %vm2344, %v2343, %v2325
        %v2347 = vpack.c.bf16 %v2346, %v2345
        %v2348 = vld [vmem:[%s379] sm:$0xf]
        %v2349 = vld [vmem:[%s379 + $0x4] sm:$0xf]
        %v2350 = vld [vmem:[%s379 + $0x8] sm:$0xf]
        %v2351 = vld [vmem:[%s379 + $0xc] sm:$0xf]
        %v2352 = vlaneseq
        %v2353 = vshrl.u32 %v2352, 7
        %v2354 = vsub.s32 3, %v2353
        %v2355 = vrot.slane %v412, %v2354
        %v2360 = vunpack.c.l.b16 %v2348
        %v2361 = vunpack.c.l.b16 %v2349
        %v2362 = vunpack.c.l.b16 %v2350
        %v2363 = vunpack.c.l.b16 %v2351
        %v2364 = vpack.c.b16 %v2361, %v2360
        %v2365 = vpack.c.b16 %v2363, %v2362
        %v2369 = vsel %vm430, %v2347, 0
        %2371 = vmatprep.subr.bf16.mxu0 0
        %2372 = vmatpush1.bf16.msra.mxu0 %v2364
        %2373 = vmatprep.subr.bf16.mxu0 0
        %2374 = vmatpush1.bf16.msra.mxu0 %v2365
        %2375 = vmatprep.subr.bf16.mxu0 0
        %2376 = vmatpush1.bf16.msra.mxu0 0
        %2377 = vmatprep.subr.bf16.mxu0 0
        %2378 = vmatpush1.bf16.msra.mxu0 0
        %2379 = vmatprep.subr.bf16.mxu0 0
        %2380 = vmatpush1.bf16.msra.mxu0 0
        %2381 = vmatprep.subr.bf16.mxu0 0
        %2382 = vmatpush1.bf16.msra.mxu0 0
        %2383 = vmatprep.subr.bf16.mxu0 0
        %2384 = vmatpush1.bf16.msra.mxu0 0
        %2385 = vmatprep.subr.bf16.mxu0 0
        %2386 = vmatpush1.bf16.msra.mxu0 0
        %2387 = vmatprep.subr.bf16.mxu0 0
        %2388 = vmatpush1.bf16.msra.mxu0 0
        %2389 = vmatprep.subr.bf16.mxu0 0
        %2390 = vmatpush1.bf16.msra.mxu0 0
        %2391 = vmatprep.subr.bf16.mxu0 0
        %2392 = vmatpush1.bf16.msra.mxu0 0
        %2393 = vmatprep.subr.bf16.mxu0 0
        %2394 = vmatpush1.bf16.msra.mxu0 0
        %2395 = vmatprep.subr.bf16.mxu0 0
        %2396 = vmatpush1.bf16.msra.mxu0 0
        %2397 = vmatprep.subr.bf16.mxu0 0
        %2398 = vmatpush1.bf16.msra.mxu0 0
        %2399 = vmatprep.subr.bf16.mxu0 0
        %2400 = vmatpush1.bf16.msra.mxu0 0
        %2401 = vmatprep.subr.bf16.mxu0 0
        %2402 = vmatpush1.bf16.msra.mxu0 0
        %2403 = vmatprep.mubr.bf16.mxu0 0
        %2404 = vmatmul.mubr.bf16.gmra.mrb[0].mxu0 %v2369
        %v2405 = vpop.f32.mrb[0].mxu0
        %v2406 = vadd.f32 %v2355, %v2405
        %v2407 = vpop.f32.mrb[0].mxu0
        %v2408 = vpop.f32.mrb[0].mxu0
        %v2409 = vadd.f32 %v2355, %v2408
        %v2410 = vpop.f32.mrb[0].mxu0
        %2411 = vdwg.mxu0
        %v2412 = vadd.f32 %v409, %v2406
        %v2413 = vadd.f32 %v410, %v2409
        %v2414 = vsel %vm430, %v2412, 0.0
        %2415 = vadd.xlane.f32.xlu0 %v2414
        %v2416 = vpop.xlane.xlu0 %2415
        %v2417 = vsel %vm430, %v2413, 0.0
        %2418 = vadd.xlane.f32.xlu0 %v2417
        %v2419 = vpop.xlane.xlu0 %2418
        %v2420 = vrcp.pop 32.0
        %v2421 = vmul.f32 %v2416, %v2420
        %v2422 = vmul.f32 %v2419, %v2420
        %v2423 = vsub.f32 %v2412, %v2421
        %v2424 = vsub.f32 %v2413, %v2422
        %v2425 = vmul.f32 %v2423, %v2423
        %v2426 = vmul.f32 %v2424, %v2424
        %v2427 = vsel %vm430, %v2425, 0.0
        %2428 = vadd.xlane.f32.xlu0 %v2427
        %v2429 = vpop.xlane.xlu0 %2428
        %v2430 = vsel %vm430, %v2426, 0.0
        %2431 = vadd.xlane.f32.xlu0 %v2430
        %v2432 = vpop.xlane.xlu0 %2431
        %v2433 = vmul.f32 %v2429, %v2420
        %v2434 = vmul.f32 %v2432, %v2420
        %v2435 = vadd.f32 %v2433, 1e-05
        %v2436 = vadd.f32 %v2434, 1e-05
        %v2437 = vrsqrt.pop %v2435
        %v2438 = vrsqrt.pop %v2436
        %v2439 = vmul.f32 %v2423, %v2437
        %v2440 = vmul.f32 %v2424, %v2438
        %v2441 = vlaneseq
        %v2442 = vshrl.u32 %v2441, 7
        %v2443 = vsub.s32 5, %v2442
        %v2444 = vrot.slane %v412, %v2443
        %v2445 = vmul.f32 %v2439, %v2444
        %v2446 = vmul.f32 %v2440, %v2444
        %v2447 = vlaneseq
        %v2448 = vshrl.u32 %v2447, 7
        %v2449 = vsub.s32 6, %v2448
        %v2450 = vrot.slane %v412, %v2449
        %v2451 = vadd.f32 %v2445, %v2450
        %v2452 = vadd.f32 %v2446, %v2450
        %v2453 = vpack.c.bf16 %v2452, %v2451
        %v2454 = vld [vmem:[%s384] sm:$0xf]
        %v2455 = vld [vmem:[%s384 + $0x4] sm:$0xf]
        %v2456 = vld [vmem:[%s384 + $0x8] sm:$0xf]
        %v2457 = vld [vmem:[%s384 + $0xc] sm:$0xf]
        %v2458 = vld [vmem:[%s397] sm:$0x1]
        %v2460 = vlaneseq
        %v2461 = vshrl.u32 %v2460, 7
        %v2462 = vsub.s32 0, %v2461
        %v2463 = vrot.slane %v2458, %v2462
        %v2469 = vunpack.c.l.b16 %v2454
        %v2470 = vunpack.c.l.b16 %v2455
        %v2471 = vunpack.c.l.b16 %v2456
        %v2472 = vunpack.c.l.b16 %v2457
        %v2473 = vpack.c.b16 %v2470, %v2469
        %v2474 = vpack.c.b16 %v2472, %v2471
        %v2478 = vsel %vm430, %v2453, 0
        %2480 = vmatprep.subr.bf16.mxu0 0
        %2481 = vmatpush1.bf16.msra.mxu0 %v2473
        %2482 = vmatprep.subr.bf16.mxu0 0
        %2483 = vmatpush1.bf16.msra.mxu0 %v2474
        %2484 = vmatprep.subr.bf16.mxu0 0
        %2485 = vmatpush1.bf16.msra.mxu0 0
        %2486 = vmatprep.subr.bf16.mxu0 0
        %2487 = vmatpush1.bf16.msra.mxu0 0
        %2488 = vmatprep.subr.bf16.mxu0 0
        %2489 = vmatpush1.bf16.msra.mxu0 0
        %2490 = vmatprep.subr.bf16.mxu0 0
        %2491 = vmatpush1.bf16.msra.mxu0 0
        %2492 = vmatprep.subr.bf16.mxu0 0
        %2493 = vmatpush1.bf16.msra.mxu0 0
        %2494 = vmatprep.subr.bf16.mxu0 0
        %2495 = vmatpush1.bf16.msra.mxu0 0
        %2496 = vmatprep.subr.bf16.mxu0 0
        %2497 = vmatpush1.bf16.msra.mxu0 0
        %2498 = vmatprep.subr.bf16.mxu0 0
        %2499 = vmatpush1.bf16.msra.mxu0 0
        %2500 = vmatprep.subr.bf16.mxu0 0
        %2501 = vmatpush1.bf16.msra.mxu0 0
        %2502 = vmatprep.subr.bf16.mxu0 0
        %2503 = vmatpush1.bf16.msra.mxu0 0
        %2504 = vmatprep.subr.bf16.mxu0 0
        %2505 = vmatpush1.bf16.msra.mxu0 0
        %2506 = vmatprep.subr.bf16.mxu0 0
        %2507 = vmatpush1.bf16.msra.mxu0 0
        %2508 = vmatprep.subr.bf16.mxu0 0
        %2509 = vmatpush1.bf16.msra.mxu0 0
        %2510 = vmatprep.subr.bf16.mxu0 0
        %2511 = vmatpush1.bf16.msra.mxu0 0
        %2512 = vmatprep.mubr.bf16.mxu0 0
        %2513 = vmatmul.mubr.bf16.gmra.mrb[0].mxu0 %v2478
        %v2514 = vpop.f32.mrb[0].mxu0
        %v2515 = vadd.f32 %v2463, %v2514
        %v2516 = vpop.f32.mrb[0].mxu0
        %v2517 = vpop.f32.mrb[0].mxu0
        %v2518 = vadd.f32 %v2463, %v2517
        %v2519 = vpop.f32.mrb[0].mxu0
        %2520 = vdwg.mxu0
        %v2521 = vmax.f32 %v2515, 0.0
        %v2522 = vmax.f32 %v2518, 0.0
        %v2523 = vpack.c.bf16 %v2522, %v2521
        %v2524 = vld [vmem:[%s389] sm:$0xf]
        %v2525 = vld [vmem:[%s389 + $0x4] sm:$0xf]
        %v2526 = vld [vmem:[%s389 + $0x8] sm:$0xf]
        %v2527 = vld [vmem:[%s389 + $0xc] sm:$0xf]
        %v2528 = vld [vmem:[%s389 + $0x10] sm:$0xf]
        %v2529 = vld [vmem:[%s389 + $0x14] sm:$0xf]
        %v2530 = vld [vmem:[%s389 + $0x18] sm:$0xf]
        %v2531 = vld [vmem:[%s389 + $0x1c] sm:$0xf]
        %v2532 = vld [vmem:[%s389 + $0x20] sm:$0xf]
        %v2533 = vld [vmem:[%s389 + $0x24] sm:$0xf]
        %v2534 = vld [vmem:[%s389 + $0x28] sm:$0xf]
        %v2535 = vld [vmem:[%s389 + $0x2c] sm:$0xf]
        %v2536 = vld [vmem:[%s389 + $0x30] sm:$0xf]
        %v2537 = vld [vmem:[%s389 + $0x34] sm:$0xf]
        %v2538 = vld [vmem:[%s389 + $0x38] sm:$0xf]
        %v2539 = vld [vmem:[%s389 + $0x3c] sm:$0xf]
        %v2540 = vlaneseq
        %v2541 = vshrl.u32 %v2540, 7
        %v2542 = vsub.s32 4, %v2541
        %v2543 = vrot.slane %v412, %v2542
        %v2560 = vunpack.c.l.b16 %v2524
        %v2561 = vunpack.c.l.b16 %v2525
        %v2562 = vunpack.c.l.b16 %v2526
        %v2563 = vunpack.c.l.b16 %v2527
        %v2564 = vunpack.c.l.b16 %v2528
        %v2565 = vunpack.c.l.b16 %v2529
        %v2566 = vunpack.c.l.b16 %v2530
        %v2567 = vunpack.c.l.b16 %v2531
        %v2568 = vunpack.c.l.b16 %v2532
        %v2569 = vunpack.c.l.b16 %v2533
        %v2570 = vunpack.c.l.b16 %v2534
        %v2571 = vunpack.c.l.b16 %v2535
        %v2572 = vunpack.c.l.b16 %v2536
        %v2573 = vunpack.c.l.b16 %v2537
        %v2574 = vunpack.c.l.b16 %v2538
        %v2575 = vunpack.c.l.b16 %v2539
        %v2576 = vpack.c.b16 %v2561, %v2560
        %v2577 = vpack.c.b16 %v2563, %v2562
        %v2578 = vpack.c.b16 %v2565, %v2564
        %v2579 = vpack.c.b16 %v2567, %v2566
        %v2580 = vpack.c.b16 %v2569, %v2568
        %v2581 = vpack.c.b16 %v2571, %v2570
        %v2582 = vpack.c.b16 %v2573, %v2572
        %v2583 = vpack.c.b16 %v2575, %v2574
        %2592 = vmatprep.subr.bf16.mxu0 0
        %2593 = vmatpush1.bf16.msra.mxu0 %v2576
        %2594 = vmatprep.subr.bf16.mxu0 0
        %2595 = vmatpush1.bf16.msra.mxu0 %v2577
        %2596 = vmatprep.subr.bf16.mxu0 0
        %2597 = vmatpush1.bf16.msra.mxu0 %v2578
        %2598 = vmatprep.subr.bf16.mxu0 0
        %2599 = vmatpush1.bf16.msra.mxu0 %v2579
        %2600 = vmatprep.subr.bf16.mxu0 0
        %2601 = vmatpush1.bf16.msra.mxu0 %v2580
        %2602 = vmatprep.subr.bf16.mxu0 0
        %2603 = vmatpush1.bf16.msra.mxu0 %v2581
        %2604 = vmatprep.subr.bf16.mxu0 0
        %2605 = vmatpush1.bf16.msra.mxu0 %v2582
        %2606 = vmatprep.subr.bf16.mxu0 0
        %2607 = vmatpush1.bf16.msra.mxu0 %v2583
        %2608 = vmatprep.subr.bf16.mxu0 0
        %2609 = vmatpush1.bf16.msra.mxu0 0
        %2610 = vmatprep.subr.bf16.mxu0 0
        %2611 = vmatpush1.bf16.msra.mxu0 0
        %2612 = vmatprep.subr.bf16.mxu0 0
        %2613 = vmatpush1.bf16.msra.mxu0 0
        %2614 = vmatprep.subr.bf16.mxu0 0
        %2615 = vmatpush1.bf16.msra.mxu0 0
        %2616 = vmatprep.subr.bf16.mxu0 0
        %2617 = vmatpush1.bf16.msra.mxu0 0
        %2618 = vmatprep.subr.bf16.mxu0 0
        %2619 = vmatpush1.bf16.msra.mxu0 0
        %2620 = vmatprep.subr.bf16.mxu0 0
        %2621 = vmatpush1.bf16.msra.mxu0 0
        %2622 = vmatprep.subr.bf16.mxu0 0
        %2623 = vmatpush1.bf16.msra.mxu0 0
        %2624 = vmatprep.mubr.bf16.mxu0 0
        %2625 = vmatmul.mubr.bf16.gmra.mrb[0].mxu0 %v2523
        %v2626 = vpop.f32.mrb[0].mxu0
        %v2627 = vadd.f32 %v2543, %v2626
        %v2628 = vpop.f32.mrb[0].mxu0
        %v2629 = vpop.f32.mrb[0].mxu0
        %v2630 = vadd.f32 %v2543, %v2629
        %v2631 = vpop.f32.mrb[0].mxu0
        %2632 = vdwg.mxu0
        %v2633 = vadd.f32 %v2451, %v2627
        %v2634 = vadd.f32 %v2452, %v2630
        %v2635 = vsel %vm430, %v2633, 0.0
        %2636 = vadd.xlane.f32.xlu0 %v2635
        %v2637 = vpop.xlane.xlu0 %2636
        %v2638 = vsel %vm430, %v2634, 0.0
        %2639 = vadd.xlane.f32.xlu0 %v2638
        %v2640 = vpop.xlane.xlu0 %2639
        %v2641 = vmul.f32 %v2637, %v2420
        %v2642 = vmul.f32 %v2640, %v2420
        %v2643 = vsub.f32 %v2633, %v2641
        %v2644 = vsub.f32 %v2634, %v2642
        %v2645 = vmul.f32 %v2643, %v2643
        %v2646 = vmul.f32 %v2644, %v2644
        %v2647 = vsel %vm430, %v2645, 0.0
        %2648 = vadd.xlane.f32.xlu0 %v2647
        %v2649 = vpop.xlane.xlu0 %2648
        %v2650 = vsel %vm430, %v2646, 0.0
        %2651 = vadd.xlane.f32.xlu0 %v2650
        %v2652 = vpop.xlane.xlu0 %2651
        %v2653 = vmul.f32 %v2649, %v2420
        %v2654 = vmul.f32 %v2652, %v2420
        %v2655 = vadd.f32 %v2653, 1e-05
        %v2656 = vadd.f32 %v2654, 1e-05
        %v2657 = vrsqrt.pop %v2655
        %v2658 = vrsqrt.pop %v2656
        %v2659 = vmul.f32 %v2643, %v2657
        %v2660 = vmul.f32 %v2644, %v2658
        %v2661 = vlaneseq
        %v2662 = vshrl.u32 %v2661, 7
        %v2663 = vsub.s32 7, %v2662
        %v2664 = vrot.slane %v412, %v2663
        %v2665 = vmul.f32 %v2659, %v2664
        %v2666 = vmul.f32 %v2660, %v2664
        %v2667 = vlaneseq
        %v2668 = vshrl.u32 %v2667, 7
        %v2669 = vsub.s32 0, %v2668
        %v2670 = vrot.slane %v413, %v2669
        %v2671 = vadd.f32 %v2665, %v2670
        %v2672 = vadd.f32 %v2666, %v2670
        %2673 = vst.msk [vmem:[#allocation2] sm:$0xff] %vm430, %v2671
        %2674 = vst.msk [vmem:[#allocation2 + $0x8] sm:$0xff] %vm430, %v2672
        %p2675 = scmp.eq.s32.totalorder %s24, 1
        // Predicated region
        $region53: #{tpu_custom_call.1} parent=47 // pred_check
          %p2676 = pneg %p2675
        $region54: #{tpu_custom_call.1} parent=47 // pred_check_branch
          %2678 = sbr.rel (%p2676) target = $region56
        $region55: #{tpu_custom_call.1} parent=47 // pred_region
          %2679 = vst.msk [vmem:[#allocation3] sm:$0xff] %vm430, %v2671
          %2680 = vst.msk [vmem:[#allocation3 + $0x8] sm:$0xff] %vm430, %v2672
        $region56: #{tpu_custom_call.1} parent=47 // pred_fallthru
          _
        // Predicated region
        $region57: #{tpu_custom_call.1} parent=47 // pred_check
          %p2681 = pneg %p231
        $region58: #{tpu_custom_call.1} parent=47 // pred_check_branch
          %2683 = sbr.rel (%p2681) target = $region60
        $region59: #{tpu_custom_call.1} parent=47 // pred_region
          %s2684 = smul.u32 2, %s23
          %s2686 = ssub.s32 256, 256
          %2687 = vsyncadd [#allocation4], %s2686
          %s2688 = smul.addr %s2684, 128
          %s2689 = scalar_lea.hbm %s7, %s2688
          %s2690 = sshll.u32 [#allocation3], 4
          %s2691 = int_to_ptr.vmem [resolvable:$true] %s2690
          %2696 = dma.vmem_to_hbm [thread:$0]  %s2691, 256, %s2689, [#allocation4], 128, 128, 8
        $region60: #{tpu_custom_call.1} parent=47 // pred_fallthru
          _
        // Predicated region
        $region61: #{tpu_custom_call.1} parent=47 // pred_check
          %p2697 = pneg %p231
        $region62: #{tpu_custom_call.1} parent=47 // pred_check_branch
          %2699 = sbr.rel (%p2697) target = $region64
        $region63: #{tpu_custom_call.1} parent=47 // pred_region
          %2700 = dma.done [#allocation4], 256
        $region64: #{tpu_custom_call.1} parent=47 // pred_fallthru
          _
      $region48: #{tpu_custom_call.1} parent=5 // pred_fallthru
        _
      %p2701 = scmp.le.s32.totalorder 2, %s14
      // Predicated region
      $region65: #{tpu_custom_call.1} parent=5 // pred_check
        %p2702 = pneg %p2701
      $region66: #{tpu_custom_call.1} parent=5 // pred_check_branch
        %2704 = sbr.rel (%p2702) target = $region68
      $region67: #{tpu_custom_call.1} parent=5 // pred_region
        %s2705 = ssub.s32 %s14, 2
      $region68: #{tpu_custom_call.1} parent=5 // pred_fallthru
        _
    $region6: #{tpu_custom_call.1} parent=1 // loop_footer
      %s18 = sadd.s32 1, %s14
    $region7: #{tpu_custom_call.1} parent=1 // loop_footer_branch
      %13 = sbr.rel target = $region3
    $region8: #{tpu_custom_call.1} parent=1 // loop_exit
      _
    %2706 = vsyncpa [#allocation4], 1
    %s2707 = scalar_lea.sflag [#allocation4], 1
    %2708 = vsyncpa %s2707, 1

</llo_original>
